<compile_context>
chip_gen: v7x
topology: tpu7x:2x2x1
jax: 0.10.0
libtpu: 0.0.40
codegen_flags: <defaults>
</compile_context>

<pallas_src>
import jax
import jax.numpy as jnp
from jax.experimental import pallas as pl
from jax.experimental.pallas import tpu as pltpu


def _round_up(v, q):
    return ((v + q - 1) // q) * q


def _sublane_quantum(dtype):
    # f32 -> 8 sublanes, bf16 -> 16, int8/fp8 -> 32 (packed-sublane quanta).
    return {4: 8, 2: 16, 1: 32}.get(jnp.dtype(dtype).itemsize, 8)


def _linear_bias_kernel(x_ref, w_ref, b_ref, o_ref):
    # (tm, pack*300) @ (pack*300, pack*8) on the MXU, f32 accumulation;
    # bias add fused (VPU work, free next to the DMA-bound stream).
    o_ref[...] = (
        jnp.dot(x_ref[...], w_ref[...], preferred_element_type=jnp.float32)
        + b_ref[...]
    ).astype(o_ref.dtype)


def linear_cat_unsqueeze(x, w, b, *, tm_rows=4096, min_pallas_rows=4096):
    """x: (..., 300), w: (8, 300), b: (8,)  ->  (prod(leading dims), 1, 8)."""
    k_in = w.shape[1]     # 300
    n_out = w.shape[0]    # 8

    x2d = x.reshape(-1, k_in)            # free row-major view
    m = x2d.shape[0]
    wt = w.T.astype(x.dtype)             # (300, 8)

    # Tiny problems: pallas_call launch/pipeline overhead dominates; let XLA
    # do its fused GEMV.
    if m < min_pallas_rows:
        out2d = (x2d @ wt + b.astype(jnp.float32)).astype(x.dtype)
        return out2d.reshape(m, 1, n_out)

    # ---- lane packing: fold `pack` rows together so the output is lane-dense
    pack = 1
    for p in (16, 8, 4, 2):
        if m % p == 0:
            pack = p
            break
    m_pack = m // pack
    kp = pack * k_in                     # packed K   (4800 for pack=16)
    npk = pack * n_out                   # packed N   (128  for pack=16)

    xp = x2d.reshape(m_pack, kp)         # free row-major view, no HBM traffic
    # Block-diagonal weight: diagonal blocks are wt, so the packed matmul is
    # exactly the per-row fc applied to each of the `pack` folded rows.
    w_big = jnp.kron(jnp.eye(pack, dtype=wt.dtype), wt)            # (kp, npk)
    b_big = jnp.tile(b.astype(jnp.float32), pack).reshape(1, npk)  # (1, npk)

    # ---- row-tile size (in packed rows)
    q = _sublane_quantum(x.dtype)
    tm = min(max(tm_rows // pack, 1), m_pack)
    if m_pack >= 2:
        # Moderate m: keep >=2 grid steps (both v7x TCs busy + pipelining).
        tm = min(tm, pl.cdiv(m_pack, 2))
    tm = max(_round_up(tm, q), q)

    grid = (pl.cdiv(m_pack, tm),)        # ragged last block, no padding

    out_bytes = m_pack * npk * jnp.dtype(x.dtype).itemsize
    cost = pl.CostEstimate(
        flops=2 * m * k_in * n_out,
        transcendentals=0,
        bytes_accessed=xp.size * xp.dtype.itemsize
        + w_big.size * w_big.dtype.itemsize
        + b_big.size * b_big.dtype.itemsize
        + out_bytes,
    )

    out_p = pl.pallas_call(
        _linear_bias_kernel,
        out_shape=jax.ShapeDtypeStruct((m_pack, npk), x.dtype),
        grid_spec=pltpu.PrefetchScalarGridSpec(
            num_scalar_prefetch=0,
            grid=grid,
            in_specs=[
                # Stream x row-tiles; last block is clipped by Pallas
                # (OOB reads are scratch, OOB writes dropped) -- no jnp.pad.
                pl.BlockSpec((tm, kp), lambda i: (i, 0)),
                # Weight / bias: constant block index -> VMEM resident.
                pl.BlockSpec((kp, npk), lambda i: (0, 0)),
                pl.BlockSpec((1, npk), lambda i: (0, 0)),
            ],
            out_specs=pl.BlockSpec((tm, npk), lambda i: (i, 0)),
        ),
        compiler_params=pltpu.CompilerParams(
            # Independent row tiles: shard across both TensorCores on v7x;
            # harmless on single-TC v5e/v6e.
            dimension_semantics=("parallel",),
            # Headroom for ~4096-row tiles on v5e's 16 MiB default scoped
            # VMEM; well under v7x's 64 MiB physical.
            vmem_limit_bytes=32 * 1024 * 1024,
        ),
        cost_estimate=cost,
    )(xp, w_big, b_big)

    # (m_pack, pack*8) and (m, 8) share the same row-major HBM layout.
    out2d = out_p.reshape(m, n_out)
    # torch.cat over dim 0 == reshape to (m, 8); .unsqueeze(1) -> (m, 1, 8).
    return out2d.reshape(m, 1, n_out)


if __name__ == "__main__":
    key = jax.random.PRNGKey(0)
    kw, kb, k1, k2, k3 = jax.random.split(key, 5)

    K_IN, N_OUT = 300, 8
    w = jax.random.normal(kw, (N_OUT, K_IN), jnp.float32) * 0.05
    b = jax.random.normal(kb, (N_OUT,), jnp.float32) * 0.05

    def ref_forward(xv):
        out = xv.reshape(-1, K_IN) @ w.T + b
        return out.reshape(-1, 1, N_OUT)

    # 1) Main Pallas path: m = 2*2080 = 4160 rows -> pack=16 (lane-dense
    #    128-wide output tiles), 2-step grid with a ragged last block.
    x1 = jax.random.normal(k1, (2, 2080, K_IN), jnp.float32)
    fwd1 = jax.jit(lambda xv: linear_cat_unsqueeze(xv, w, b))
    out1 = jax.block_until_ready(fwd1(x1))
    assert out1.shape == (2 * 2080, 1, N_OUT), out1.shape
    assert jnp.allclose(out1, ref_forward(x1), atol=1e-3, rtol=1e-3)

    # 2) Degenerate pack=1 path (m=21, odd), Pallas path forced.
    x2 = jax.random.normal(k2, (3, 7, K_IN), jnp.float32)
    fwd2 = jax.jit(
        lambda xv: linear_cat_unsqueeze(xv, w, b, tm_rows=256, min_pallas_rows=0)
    )
    out2 = jax.block_until_ready(fwd2(x2))
    assert out2.shape == (21, 1, N_OUT), out2.shape
    assert jnp.allclose(out2, ref_forward(x2), atol=1e-3, rtol=1e-3)

    # 3) Tiny-M XLA fallback at the module-scale shape.
    x3 = jax.random.normal(k3, (2, 8, K_IN), jnp.float32)
    out3 = jax.block_until_ready(fwd1(x3))
    assert out3.shape == (16, 1, N_OUT), out3.shape
    assert jnp.allclose(out3, ref_forward(x3), atol=1e-3, rtol=1e-3)

    print("KERNEL_OK")
</pallas_src>

<mosaic_0001>
module attributes {stable_mosaic.version = 11 : i64} {
  func.func @_linear_bias_kernel(%arg0: i32, %arg1: memref<136x4800xf32, #tpu.memory_space<vmem>>, %arg2: memref<4800x128xf32, #tpu.memory_space<vmem>>, %arg3: memref<1x128xf32, #tpu.memory_space<vmem>>, %arg4: memref<136x128xf32, #tpu.memory_space<vmem>>) attributes {dimension_semantics = [#tpu.dimension_semantics<parallel>], iteration_bounds = array<i64: 2>, scalar_prefetch = 0 : i64, scratch_operands = 0 : i64, tpu.core_type = #tpu.core_type<tc>, window_params = [{transform_indices = @transform_0, window_bounds = array<i64: 136, 4800>}, {pipeline_mode = #tpu.pipeline_mode<synchronous>, transform_indices = @transform_1, window_bounds = array<i64: 4800, 128>}, {pipeline_mode = #tpu.pipeline_mode<synchronous>, transform_indices = @transform_2, window_bounds = array<i64: 1, 128>}, {transform_indices = @transform_3, window_bounds = array<i64: 136, 128>}]} {
    %c0 = arith.constant 0 : index
    %c0_0 = arith.constant 0 : index
    %0 = vector.load %arg1[%c0, %c0_0] : memref<136x4800xf32, #tpu.memory_space<vmem>>, vector<136x4800xf32>
    %c0_1 = arith.constant 0 : index
    %c0_2 = arith.constant 0 : index
    %1 = vector.load %arg2[%c0_1, %c0_2] : memref<4800x128xf32, #tpu.memory_space<vmem>>, vector<4800x128xf32>
    %cst = arith.constant dense<0.000000e+00> : vector<136x128xf32>
    %2 = tpu.matmul %0, %1, %cst {dimension_numbers = #tpu.dot_dimension_numbers<[1], [0], [0], [1], [0, 0, 1, 1], [], []>} : vector<136x4800xf32>, vector<4800x128xf32>, vector<136x128xf32> -> vector<136x128xf32>
    %c0_3 = arith.constant 0 : index
    %c0_4 = arith.constant 0 : index
    %3 = vector.load %arg3[%c0_3, %c0_4] : memref<1x128xf32, #tpu.memory_space<vmem>>, vector<1x128xf32>
    %4 = vector.broadcast %3 : vector<1x128xf32> to vector<136x128xf32>
    %5 = arith.addf %2, %4 : vector<136x128xf32>
    %c0_5 = arith.constant 0 : index
    %c0_6 = arith.constant 0 : index
    %6 = vector.load %arg4[%c0_5, %c0_6] : memref<136x128xf32, #tpu.memory_space<vmem>>, vector<136x128xf32>
    tpu.vector_store %arg4[%c0_5, %c0_6], %5 {strides = array<i32>} : memref<136x128xf32, #tpu.memory_space<vmem>>, vector<136x128xf32>,
    return
  }
  func.func @transform_0(%arg0: i32) -> (i32, i32) {
    %c0_i32 = arith.constant 0 : i32
    %c0_i32_0 = arith.constant 0 : i32
    return %arg0, %c0_i32 : i32, i32
  }
  func.func @transform_1(%arg0: i32) -> (i32, i32) {
    %c0_i32 = arith.constant 0 : i32
    %c0_i32_0 = arith.constant 0 : i32
    %c0_i32_1 = arith.constant 0 : i32
    return %c0_i32, %c0_i32_0 : i32, i32
  }
  func.func @transform_2(%arg0: i32) -> (i32, i32) {
    %c0_i32 = arith.constant 0 : i32
    %c0_i32_0 = arith.constant 0 : i32
    %c0_i32_1 = arith.constant 0 : i32
    return %c0_i32, %c0_i32_0 : i32, i32
  }
  func.func @transform_3(%arg0: i32) -> (i32, i32) {
    %c0_i32 = arith.constant 0 : i32
    %c0_i32_0 = arith.constant 0 : i32
    return %arg0, %c0_i32 : i32, i32
  }
}

</mosaic_0001>

<llo_original>
// kernel: tile.6
$region0: #{tile.6}
  #allocation0 [shape = 's32[1]{0}', space=sflag, size = 0x4, scoped, tag = 'scoped memory for tile.6']
  %s0 = inlined_call_operand.vmem [shape: f32[8], index: 0, kind: input, shape index: {}]
  %s1 = inlined_call_operand.vmem [shape: f32[16,8], index: 1, kind: output, shape index: {}]
  // Predicated region
  $region2: #{tile.6} parent=0 // pred_check
    _
  $region3: #{tile.6} parent=0 // pred_check_branch
    %3 = sbr.rel (0) target = $region5
  $region4: #{tile.6} parent=0 // pred_region
    _
  $region5: #{tile.6} parent=0 // pred_fallthru
    _
  %v4 = vld [vmem:[%s0] ss:$0 sm:$0xff]
  %5 = vst [vmem:[%s1] sm:$0xff] %v4
  %s6 = scalar_lea.vmem %s1, 8
  %7 = vst [vmem:[%s6] sm:$0xff] %v4

// kernel: tile.7
$region0: #{tile.7}
  %s0 = inlined_call_operand.vmem [shape: f32[16,8], index: 0, kind: input, shape index: {}]
  %s1 = inlined_call_operand.vmem [shape: f32[1,128], index: 1, kind: output, shape index: {}]
  $region1: #{tile.7} parent=0
    #allocation0 [shape = 'u8[4096]{0}', space=vmem, size = 0x1000, scoped, tag = 'scoped mem for output reshape']
    %v2 = vld [vmem:[%s0] sm:$0x1]
    %vm3 = vcmask 64512
    %4 = vst.msk [vmem:[#allocation0] sm:$0x1] %vm3, %v2
    %s5 = scalar_lea.vmem %s0, 15
    %v6 = vld [vmem:[%s5] sm:$0x1]
    %7 = vrot.lane.b32.xlu0 %v6, 120
    %v8 = vpop.permute.xlu0 %7
    %vm9 = vcmask 1048512
    %10 = vst.msk [vmem:[#allocation0] sm:$0x1] %vm9, %v8
    %s11 = scalar_lea.vmem %s0, 14
    %v12 = vld [vmem:[%s11] sm:$0x1]
    %13 = vrot.lane.b32.xlu0 %v12, 112
    %v14 = vpop.permute.xlu0 %13
    %vm15 = vcmask 982912
    %16 = vst.msk [vmem:[#allocation0] sm:$0x1] %vm15, %v14
    %s17 = scalar_lea.vmem %s0, 13
    %v18 = vld [vmem:[%s17] sm:$0x1]
    %19 = vrot.lane.b32.xlu0 %v18, 104
    %v20 = vpop.permute.xlu0 %19
    %vm21 = vcmask 917312
    %22 = vst.msk [vmem:[#allocation0] sm:$0x1] %vm21, %v20
    %s23 = scalar_lea.vmem %s0, 12
    %v24 = vld [vmem:[%s23] sm:$0x1]
    %25 = vrot.lane.b32.xlu0 %v24, 96
    %v26 = vpop.permute.xlu0 %25
    %vm27 = vcmask 851712
    %28 = vst.msk [vmem:[#allocation0] sm:$0x1] %vm27, %v26
    %s29 = scalar_lea.vmem %s0, 11
    %v30 = vld [vmem:[%s29] sm:$0x1]
    %31 = vrot.lane.b32.xlu0 %v30, 88
    %v32 = vpop.permute.xlu0 %31
    %vm33 = vcmask 786112
    %34 = vst.msk [vmem:[#allocation0] sm:$0x1] %vm33, %v32
    %s35 = scalar_lea.vmem %s0, 10
    %v36 = vld [vmem:[%s35] sm:$0x1]
    %37 = vrot.lane.b32.xlu0 %v36, 80
    %v38 = vpop.permute.xlu0 %37
    %vm39 = vcmask 720512
    %40 = vst.msk [vmem:[#allocation0] sm:$0x1] %vm39, %v38
    %s41 = scalar_lea.vmem %s0, 9
    %v42 = vld [vmem:[%s41] sm:$0x1]
    %43 = vrot.lane.b32.xlu0 %v42, 72
    %v44 = vpop.permute.xlu0 %43
    %vm45 = vcmask 654912
    %46 = vst.msk [vmem:[#allocation0] sm:$0x1] %vm45, %v44
    %s47 = scalar_lea.vmem %s0, 8
    %v48 = vld [vmem:[%s47] sm:$0x1]
    %49 = vrot.lane.b32.xlu0 %v48, 64
    %v50 = vpop.permute.xlu0 %49
    %vm51 = vcmask 589312
    %52 = vst.msk [vmem:[#allocation0] sm:$0x1] %vm51, %v50
    %s53 = scalar_lea.vmem %s0, 7
    %v54 = vld [vmem:[%s53] sm:$0x1]
    %55 = vrot.lane.b32.xlu0 %v54, 56
    %v56 = vpop.permute.xlu0 %55
    %vm57 = vcmask 523712
    %58 = vst.msk [vmem:[#allocation0] sm:$0x1] %vm57, %v56
    %s59 = scalar_lea.vmem %s0, 6
    %v60 = vld [vmem:[%s59] sm:$0x1]
    %61 = vrot.lane.b32.xlu0 %v60, 48
    %v62 = vpop.permute.xlu0 %61
    %vm63 = vcmask 458112
    %64 = vst.msk [vmem:[#allocation0] sm:$0x1] %vm63, %v62
    %s65 = scalar_lea.vmem %s0, 5
    %v66 = vld [vmem:[%s65] sm:$0x1]
    %67 = vrot.lane.b32.xlu0 %v66, 40
    %v68 = vpop.permute.xlu0 %67
    %vm69 = vcmask 392512
    %70 = vst.msk [vmem:[#allocation0] sm:$0x1] %vm69, %v68
    %s71 = scalar_lea.vmem %s0, 4
    %v72 = vld [vmem:[%s71] sm:$0x1]
    %73 = vrot.lane.b32.xlu0 %v72, 32
    %v74 = vpop.permute.xlu0 %73
    %vm75 = vcmask 326912
    %76 = vst.msk [vmem:[#allocation0] sm:$0x1] %vm75, %v74
    %s77 = scalar_lea.vmem %s0, 3
    %v78 = vld [vmem:[%s77] sm:$0x1]
    %79 = vrot.lane.b32.xlu0 %v78, 24
    %v80 = vpop.permute.xlu0 %79
    %vm81 = vcmask 261312
    %82 = vst.msk [vmem:[#allocation0] sm:$0x1] %vm81, %v80
    %s83 = scalar_lea.vmem %s0, 2
    %v84 = vld [vmem:[%s83] sm:$0x1]
    %85 = vrot.lane.b32.xlu0 %v84, 16
    %v86 = vpop.permute.xlu0 %85
    %vm87 = vcmask 195712
    %88 = vst.msk [vmem:[#allocation0] sm:$0x1] %vm87, %v86
    %s89 = scalar_lea.vmem %s0, 1
    %v90 = vld [vmem:[%s89] sm:$0x1]
    %91 = vrot.lane.b32.xlu0 %v90, 8
    %v92 = vpop.permute.xlu0 %91
    %vm93 = vcmask 130112
    %94 = vst.msk [vmem:[#allocation0] sm:$0x1] %vm93, %v92
    %s96 = sshllo.u32 0, 1
    %v98 = vld [vmem:[#allocation0] sm:%s96]
    %s99 = sshllo.u32 0, 1
    %100 = vst [vmem:[%s1] sm:%s99] %v98

// kernel: _lambda_.1
$region0: #{_lambda_.1}
  #allocation0 [shape = 'u32[]', space=smem, size = 0x4, offset = 0x4, fixed_abs, tag = 'smem constant byte address 0x4 - core index']
  #allocation1 [shape = 'u32[144,128]{1,0:T(1,128)}', space=vmem, size = 0x12000, scoped, tag = 'internal scratch']
  %s0 = inlined_call_operand.vmem [shape: f32[260,4800], index: 0, kind: input, shape index: {}]
  %s1 = inlined_call_operand.vmem [shape: f32[4800,128], index: 1, kind: input, shape index: {}]
  %s2 = inlined_call_operand.vmem [shape: f32[1,128], index: 2, kind: input, shape index: {}]
  %s3 = inlined_call_operand.vmem [shape: f32[260,128], index: 3, kind: output, shape index: {}]
  %s4 = sld [smem:[#allocation0]]
  $region93: #{_lambda_.1} parent=0
    _
  %s6 = ssub.s32 1, %s4
  %s7 = scalar_select 0, %s6, %s4
  $region1: #{_lambda_.1} parent=0
    #allocation2 [shape = 'u8[139264]{0}', space=vmem, size = 0x22000, scoped, tag = 'output window, operand 0']
    loop: start=0, step=1, limit=4
    $region2: #{_lambda_.1} parent=1 // loop_pre_header
      _
    $region3: #{_lambda_.1} parent=1 // loop_header
      %s9 = sphi 0, %s13
      %p10 = scmp.ge.s32.totalorder %s9, 4
      %s19 = sphi 0, %s21
      %s22 = sphi 0, %s19
      %s23 = sphi 0, %s22
      %s39 = sphi 0, %s23
      %s43 = sphi 0, %s43
      %s45 = sphi 0, %s43
      %s46 = sphi 0, %s45
      %s60 = sphi 0, %s46
      %s64 = sphi 0, %s64
      %s66 = sphi 0, %s64
      %s67 = sphi 0, %s66
      %s81 = sphi 0, %s67
      %s87 = sphi 0, %s89
      %s90 = sphi 0, %s87
      %s91 = sphi 0, %s90
      %s107 = sphi 0, %s91
    $region4: #{_lambda_.1} parent=1 // loop_header_branch
      %12 = sbr.rel (%p10) target = $region8
    $region5: #{_lambda_.1} parent=1 // loop_body
      %s14 = ssub.s32 %s9, 1
      %s15 = ssub.s32 %s9, 2
      %s16 = sadd.s32 %s9, 1
      %s17 = ssub.s32 %s9, %s16
      %p18 = scmp.eq.s32.totalorder %s17, 0
      %s20 = sadd.s32 %s19, 1
      %s21 = scalar_select %p18, %s19, %s20
      %p24 = pneg %p18
      %p25 = scmp.eq.s32.totalorder %s9, 1
      %p26 = por %p24, %p25
      %p27 = scmp.ne.s32.totalorder %s19, %s22
      %p28 = scmp.eq.s32.totalorder %s9, 0
      %p29 = por %p27, %p28
      %p30 = scmp.ne.s32.totalorder %s19, %s22
      %p31 = scmp.eq.s32.totalorder %s14, 1
      %p32 = por %p30, %p31
      %p33 = scmp.ne.s32.totalorder %s22, %s23
      %p34 = scmp.eq.s32.totalorder %s14, 0
      %p35 = por %p33, %p34
      %p36 = scmp.ne.s32.totalorder %s22, %s23
      %p37 = scmp.eq.s32.totalorder %s15, 1
      %p38 = por %p36, %p37
      %p40 = scmp.ne.s32.totalorder %s23, %s39
      %p41 = scmp.eq.s32.totalorder %s15, 0
      %p42 = por %p40, %p41
      %s44 = sadd.s32 %s43, 1
      %p47 = scmp.eq.s32.totalorder %s9, 1
      %p48 = scmp.ne.s32.totalorder %s43, %s45
      %p49 = scmp.eq.s32.totalorder %s9, 0
      %p50 = por %p48, %p49
      %p51 = scmp.ne.s32.totalorder %s43, %s45
      %p52 = scmp.eq.s32.totalorder %s14, 1
      %p53 = por %p51, %p52
      %p54 = scmp.ne.s32.totalorder %s45, %s46
      %p55 = scmp.eq.s32.totalorder %s14, 0
      %p56 = por %p54, %p55
      %p57 = scmp.ne.s32.totalorder %s45, %s46
      %p58 = scmp.eq.s32.totalorder %s15, 1
      %p59 = por %p57, %p58
      %p61 = scmp.ne.s32.totalorder %s46, %s60
      %p62 = scmp.eq.s32.totalorder %s15, 0
      %p63 = por %p61, %p62
      %s65 = sadd.s32 %s64, 1
      %p68 = scmp.eq.s32.totalorder %s9, 1
      %p69 = scmp.ne.s32.totalorder %s64, %s66
      %p70 = scmp.eq.s32.totalorder %s9, 0
      %p71 = por %p69, %p70
      %p72 = scmp.ne.s32.totalorder %s64, %s66
      %p73 = scmp.eq.s32.totalorder %s14, 1
      %p74 = por %p72, %p73
      %p75 = scmp.ne.s32.totalorder %s66, %s67
      %p76 = scmp.eq.s32.totalorder %s14, 0
      %p77 = por %p75, %p76
      %p78 = scmp.ne.s32.totalorder %s66, %s67
      %p79 = scmp.eq.s32.totalorder %s15, 1
      %p80 = por %p78, %p79
      %p82 = scmp.ne.s32.totalorder %s67, %s81
      %p83 = scmp.eq.s32.totalorder %s15, 0
      %p84 = por %p82, %p83
      %s85 = ssub.s32 %s9, %s16
      %p86 = scmp.eq.s32.totalorder %s85, 0
      %s88 = sadd.s32 %s87, 1
      %s89 = scalar_select %p86, %s87, %s88
      %p92 = pneg %p86
      %p93 = scmp.eq.s32.totalorder %s9, 1
      %p94 = por %p92, %p93
      %p95 = scmp.ne.s32.totalorder %s87, %s90
      %p96 = scmp.eq.s32.totalorder %s9, 0
      %p97 = por %p95, %p96
      %p98 = scmp.ne.s32.totalorder %s87, %s90
      %p99 = scmp.eq.s32.totalorder %s14, 1
      %p100 = por %p98, %p99
      %p101 = scmp.ne.s32.totalorder %s90, %s91
      %p102 = scmp.eq.s32.totalorder %s14, 0
      %p103 = por %p101, %p102
      %p104 = scmp.ne.s32.totalorder %s90, %s91
      %p105 = scmp.eq.s32.totalorder %s15, 1
      %p106 = por %p104, %p105
      %p108 = scmp.ne.s32.totalorder %s91, %s107
      %p109 = scmp.eq.s32.totalorder %s15, 0
      %p110 = por %p108, %p109
      %p111 = scmp.le.s32.totalorder 1, %s9
      %p112 = scmp.lt.s32.totalorder %s9, 3
      %p113 = pnand %p111, %p112
      %p114 = pneg %p113
      // Predicated region
      $region9: #{_lambda_.1} parent=5 // pred_check
        _
      $region10: #{_lambda_.1} parent=5 // pred_check_branch
        %116 = sbr.rel (%p113) target = $region12
      $region11: #{_lambda_.1} parent=5 // pred_region
        %s117 = ssub.s32 %s9, 1
        // Predicated region
        $region13: #{_lambda_.1} parent=11 // pred_check
          %p118 = pneg %p56
        $region14: #{_lambda_.1} parent=11 // pred_check_branch
          %120 = sbr.rel (%p118) target = $region16
        $region15: #{_lambda_.1} parent=11 // pred_region
          _
        $region16: #{_lambda_.1} parent=11 // pred_fallthru
          _
        // Predicated region
        $region17: #{_lambda_.1} parent=11 // pred_check
          %p121 = pneg %p77
        $region18: #{_lambda_.1} parent=11 // pred_check_branch
          %123 = sbr.rel (%p121) target = $region20
        $region19: #{_lambda_.1} parent=11 // pred_region
          _
        $region20: #{_lambda_.1} parent=11 // pred_fallthru
          _
      $region12: #{_lambda_.1} parent=5 // pred_fallthru
        _
      %p124 = scmp.lt.s32.totalorder %s9, 2
      // Predicated region
      $region21: #{_lambda_.1} parent=5 // pred_check
        %p125 = pneg %p124
      $region22: #{_lambda_.1} parent=5 // pred_check_branch
        %127 = sbr.rel (%p125) target = $region24
      $region23: #{_lambda_.1} parent=5 // pred_region
        // Predicated region
        $region25: #{_lambda_.1} parent=23 // pred_check
          %p128 = pneg %p29
        $region26: #{_lambda_.1} parent=23 // pred_check_branch
          %130 = sbr.rel (%p128) target = $region28
        $region27: #{_lambda_.1} parent=23 // pred_region
          %s131 = smul.u32 17, %s9
          %s132 = ssub.s32 33, %s131
          %p133 = scmp.lt.s32.totalorder %s132, 17
          %s134 = scalar_select %p133, %s132, 17
          %s135 = smul.u32 128, %s134
          %s136 = smul.u32 %s135, 38
          %p137 = scmp.lt.s32.totalorder %s131, 32
          %s138 = scalar_select %p137, %s131, 32
          %s139 = smul.addr %s138, 38
          %s140 = smul.addr %s139, 8
          %s141 = scalar_lea.vmem %s0, %s140
          %s142 = smul.u32 17, %s9
          %s143 = ssub.s32 33, %s142
          %p144 = scmp.lt.s32.totalorder %s143, 17
          %s145 = scalar_select %p144, %s143, 17
          %s146 = smul.u32 128, %s145
          %s147 = smul.u32 %s146, 38
        $region28: #{_lambda_.1} parent=23 // pred_fallthru
          _
      $region24: #{_lambda_.1} parent=5 // pred_fallthru
        _
      %p148 = scmp.le.s32.totalorder 1, %s9
      %p149 = scmp.lt.s32.totalorder %s9, 3
      %p150 = pnand %p148, %p149
      %p151 = pneg %p150
      // Predicated region
      $region29: #{_lambda_.1} parent=5 // pred_check
        _
      $region30: #{_lambda_.1} parent=5 // pred_check_branch
        %153 = sbr.rel (%p150) target = $region32
      $region31: #{_lambda_.1} parent=5 // pred_region
        %s154 = ssub.s32 %s9, 1
        %s155 = smul.u32 17, %s14
        %s156 = ssub.s32 33, %s155
        %p157 = scmp.lt.s32.totalorder %s156, 17
        %s158 = scalar_select %p157, %s156, 17
        %s159 = smul.u32 128, %s158
        %s160 = smul.u32 %s159, 38
        %p161 = scmp.lt.s32.totalorder %s155, 32
        %s162 = scalar_select %p161, %s155, 32
        %s163 = smul.addr %s162, 38
        %s164 = smul.addr %s163, 8
        %s165 = scalar_lea.vmem %s0, %s164
        %p166 = pneg %p35
        %p167 = pneg %p32
        %p168 = pneg %p56
        %p169 = pneg %p53
        %p170 = pneg %p77
        %p171 = pneg %p74
        %p172 = pneg %p103
        %p173 = pneg %p100
        %s174 = sand.u32 %s90, 1
        %s175 = sand.u32 %s90, 1
        %s176 = smul.addr %s175, 136
        %s177 = scalar_lea.vmem [#allocation2], %s176
        %s178 = smul.u32 17, %s14
        %s179 = ssub.s32 33, %s178
        %p180 = scmp.lt.s32.totalorder %s179, 17
        %s181 = scalar_select %p180, %s179, 17
        %s182 = smul.u32 128, %s181
        %s183 = smul.u32 %s182, 38
        %p184 = scmp.lt.s32.totalorder %s178, 32
        %s185 = scalar_select %p184, %s178, 32
        %s186 = smul.addr %s185, 38
        %s187 = smul.addr %s186, 8
        %s188 = scalar_lea.vmem %s0, %s187
        %s189 = smul.u32 17, %s14
        %s190 = ssub.s32 33, %s189
        %p191 = scmp.lt.s32.totalorder %s190, 17
        %s192 = scalar_select %p191, %s190, 17
        %s193 = smul.u32 128, %s192
        %s194 = smul.u32 %s193, 38
        %s195 = smul.u32 17, %s14
        %s196 = ssub.s32 33, %s195
        %p197 = scmp.lt.s32.totalorder %s196, 17
        %s198 = scalar_select %p197, %s196, 17
        %s199 = smul.u32 128, %s198
        %v200 = vld [vmem:[%s188] sm:$0xff]
        %v201 = vld [vmem:[%s188 + $0x8] sm:$0xff]
        %v202 = vld [vmem:[%s188 + $0x10] sm:$0xff]
        %v203 = vld [vmem:[%s188 + $0x18] sm:$0xff]
        %v204 = vld [vmem:[%s188 + $0x20] sm:$0xff]
        %v205 = vld [vmem:[%s188 + $0x28] sm:$0xff]
        %v206 = vld [vmem:[%s188 + $0x30] sm:$0xff]
        %v207 = vld [vmem:[%s188 + $0x38] sm:$0xff]
        %v208 = vld [vmem:[%s188 + $0x40] sm:$0xff]
        %v209 = vld [vmem:[%s188 + $0x48] sm:$0xff]
        %v210 = vld [vmem:[%s188 + $0x50] sm:$0xff]
        %v211 = vld [vmem:[%s188 + $0x58] sm:$0xff]
        %v212 = vld [vmem:[%s188 + $0x60] sm:$0xff]
        %v213 = vld [vmem:[%s188 + $0x68] sm:$0xff]
        %v214 = vld [vmem:[%s188 + $0x70] sm:$0xff]
        %v215 = vld [vmem:[%s188 + $0x78] sm:$0xff]
        %v216 = vld [vmem:[%s188 + $0x80] sm:$0xff]
        %v217 = vld [vmem:[%s188 + $0x88] sm:$0xff]
        %v218 = vld [vmem:[%s188 + $0x90] sm:$0xff]
        %v219 = vld [vmem:[%s188 + $0x98] sm:$0xff]
        %v220 = vld [vmem:[%s188 + $0xa0] sm:$0xff]
        %v221 = vld [vmem:[%s188 + $0xa8] sm:$0xff]
        %v222 = vld [vmem:[%s188 + $0xb0] sm:$0xff]
        %v223 = vld [vmem:[%s188 + $0xb8] sm:$0xff]
        %v224 = vld [vmem:[%s188 + $0xc0] sm:$0xff]
        %v225 = vld [vmem:[%s188 + $0xc8] sm:$0xff]
        %v226 = vld [vmem:[%s188 + $0xd0] sm:$0xff]
        %v227 = vld [vmem:[%s188 + $0xd8] sm:$0xff]
        %v228 = vld [vmem:[%s188 + $0xe0] sm:$0xff]
        %v229 = vld [vmem:[%s188 + $0xe8] sm:$0xff]
        %v230 = vld [vmem:[%s188 + $0xf0] sm:$0xff]
        %v231 = vld [vmem:[%s188 + $0xf8] sm:$0xff]
        %v232 = vld [vmem:[%s188 + $0x100] sm:$0xff]
        %v233 = vld [vmem:[%s188 + $0x108] sm:$0xff]
        %v234 = vld [vmem:[%s188 + $0x110] sm:$0xff]
        %v235 = vld [vmem:[%s188 + $0x118] sm:$0xff]
        %v236 = vld [vmem:[%s188 + $0x120] sm:$0xff]
        %v237 = vld [vmem:[%s188 + $0x128] sm:$0xff]
        %v238 = vld [vmem:[%s188 + $0x130] sm:$0xff]
        %v239 = vld [vmem:[%s188 + $0x138] sm:$0xff]
        %v240 = vld [vmem:[%s188 + $0x140] sm:$0xff]
        %v241 = vld [vmem:[%s188 + $0x148] sm:$0xff]
        %v242 = vld [vmem:[%s188 + $0x150] sm:$0xff]
        %v243 = vld [vmem:[%s188 + $0x158] sm:$0xff]
        %v244 = vld [vmem:[%s188 + $0x160] sm:$0xff]
        %v245 = vld [vmem:[%s188 + $0x168] sm:$0xff]
        %v246 = vld [vmem:[%s188 + $0x170] sm:$0xff]
        %v247 = vld [vmem:[%s188 + $0x178] sm:$0xff]
        %v248 = vld [vmem:[%s188 + $0x180] sm:$0xff]
        %v249 = vld [vmem:[%s188 + $0x188] sm:$0xff]
        %v250 = vld [vmem:[%s188 + $0x190] sm:$0xff]
        %v251 = vld [vmem:[%s188 + $0x198] sm:$0xff]
        %v252 = vld [vmem:[%s188 + $0x1a0] sm:$0xff]
        %v253 = vld [vmem:[%s188 + $0x1a8] sm:$0xff]
        %v254 = vld [vmem:[%s188 + $0x1b0] sm:$0xff]
        %v255 = vld [vmem:[%s188 + $0x1b8] sm:$0xff]
        %v256 = vld [vmem:[%s188 + $0x1c0] sm:$0xff]
        %v257 = vld [vmem:[%s188 + $0x1c8] sm:$0xff]
        %v258 = vld [vmem:[%s188 + $0x1d0] sm:$0xff]
        %v259 = vld [vmem:[%s188 + $0x1d8] sm:$0xff]
        %v260 = vld [vmem:[%s188 + $0x1e0] sm:$0xff]
        %v261 = vld [vmem:[%s188 + $0x1e8] sm:$0xff]
        %v262 = vld [vmem:[%s188 + $0x1f0] sm:$0xff]
        %v263 = vld [vmem:[%s188 + $0x1f8] sm:$0xff]
        %v264 = vld [vmem:[%s188 + $0x200] sm:$0xff]
        %v265 = vld [vmem:[%s188 + $0x208] sm:$0xff]
        %v266 = vld [vmem:[%s188 + $0x210] sm:$0xff]
        %v267 = vld [vmem:[%s188 + $0x218] sm:$0xff]
        %v268 = vld [vmem:[%s188 + $0x220] sm:$0xff]
        %v269 = vld [vmem:[%s188 + $0x228] sm:$0xff]
        %v270 = vld [vmem:[%s188 + $0x230] sm:$0xff]
        %v271 = vld [vmem:[%s188 + $0x238] sm:$0xff]
        %v272 = vld [vmem:[%s188 + $0x240] sm:$0xff]
        %v273 = vld [vmem:[%s188 + $0x248] sm:$0xff]
        %v274 = vld [vmem:[%s188 + $0x250] sm:$0xff]
        %v275 = vld [vmem:[%s188 + $0x258] sm:$0xff]
        %v276 = vld [vmem:[%s188 + $0x260] sm:$0xff]
        %v277 = vld [vmem:[%s188 + $0x268] sm:$0xff]
        %v278 = vld [vmem:[%s188 + $0x270] sm:$0xff]
        %v279 = vld [vmem:[%s188 + $0x278] sm:$0xff]
        %v280 = vld [vmem:[%s188 + $0x280] sm:$0xff]
        %v281 = vld [vmem:[%s188 + $0x288] sm:$0xff]
        %v282 = vld [vmem:[%s188 + $0x290] sm:$0xff]
        %v283 = vld [vmem:[%s188 + $0x298] sm:$0xff]
        %v284 = vld [vmem:[%s188 + $0x2a0] sm:$0xff]
        %v285 = vld [vmem:[%s188 + $0x2a8] sm:$0xff]
        %v286 = vld [vmem:[%s188 + $0x2b0] sm:$0xff]
        %v287 = vld [vmem:[%s188 + $0x2b8] sm:$0xff]
        %v288 = vld [vmem:[%s188 + $0x2c0] sm:$0xff]
        %v289 = vld [vmem:[%s188 + $0x2c8] sm:$0xff]
        %v290 = vld [vmem:[%s188 + $0x2d0] sm:$0xff]
        %v291 = vld [vmem:[%s188 + $0x2d8] sm:$0xff]
        %v292 = vld [vmem:[%s188 + $0x2e0] sm:$0xff]
        %v293 = vld [vmem:[%s188 + $0x2e8] sm:$0xff]
        %v294 = vld [vmem:[%s188 + $0x2f0] sm:$0xff]
        %v295 = vld [vmem:[%s188 + $0x2f8] sm:$0xff]
        %v296 = vld [vmem:[%s188 + $0x300] sm:$0xff]
        %v297 = vld [vmem:[%s188 + $0x308] sm:$0xff]
        %v298 = vld [vmem:[%s188 + $0x310] sm:$0xff]
        %v299 = vld [vmem:[%s188 + $0x318] sm:$0xff]
        %v300 = vld [vmem:[%s188 + $0x320] sm:$0xff]
        %v301 = vld [vmem:[%s188 + $0x328] sm:$0xff]
        %v302 = vld [vmem:[%s188 + $0x330] sm:$0xff]
        %v303 = vld [vmem:[%s188 + $0x338] sm:$0xff]
        %v304 = vld [vmem:[%s188 + $0x340] sm:$0xff]
        %v305 = vld [vmem:[%s188 + $0x348] sm:$0xff]
        %v306 = vld [vmem:[%s188 + $0x350] sm:$0xff]
        %v307 = vld [vmem:[%s188 + $0x358] sm:$0xff]
        %v308 = vld [vmem:[%s188 + $0x360] sm:$0xff]
        %v309 = vld [vmem:[%s188 + $0x368] sm:$0xff]
        %v310 = vld [vmem:[%s188 + $0x370] sm:$0xff]
        %v311 = vld [vmem:[%s188 + $0x378] sm:$0xff]
        %v312 = vld [vmem:[%s188 + $0x380] sm:$0xff]
        %v313 = vld [vmem:[%s188 + $0x388] sm:$0xff]
        %v314 = vld [vmem:[%s188 + $0x390] sm:$0xff]
        %v315 = vld [vmem:[%s188 + $0x398] sm:$0xff]
        %v316 = vld [vmem:[%s188 + $0x3a0] sm:$0xff]
        %v317 = vld [vmem:[%s188 + $0x3a8] sm:$0xff]
        %v318 = vld [vmem:[%s188 + $0x3b0] sm:$0xff]
        %v319 = vld [vmem:[%s188 + $0x3b8] sm:$0xff]
        %v320 = vld [vmem:[%s188 + $0x3c0] sm:$0xff]
        %v321 = vld [vmem:[%s188 + $0x3c8] sm:$0xff]
        %v322 = vld [vmem:[%s188 + $0x3d0] sm:$0xff]
        %v323 = vld [vmem:[%s188 + $0x3d8] sm:$0xff]
        %v324 = vld [vmem:[%s188 + $0x3e0] sm:$0xff]
        %v325 = vld [vmem:[%s188 + $0x3e8] sm:$0xff]
        %v326 = vld [vmem:[%s188 + $0x3f0] sm:$0xff]
        %v327 = vld [vmem:[%s188 + $0x3f8] sm:$0xff]
        %v328 = vld [vmem:[%s188 + $0x400] sm:$0xff]
        %v329 = vld [vmem:[%s188 + $0x408] sm:$0xff]
        %v330 = vld [vmem:[%s188 + $0x410] sm:$0xff]
        %v331 = vld [vmem:[%s188 + $0x418] sm:$0xff]
        %v332 = vld [vmem:[%s188 + $0x420] sm:$0xff]
        %v333 = vld [vmem:[%s188 + $0x428] sm:$0xff]
        %v334 = vld [vmem:[%s188 + $0x430] sm:$0xff]
        %v335 = vld [vmem:[%s188 + $0x438] sm:$0xff]
        %v336 = vld [vmem:[%s188 + $0x440] sm:$0xff]
        %v337 = vld [vmem:[%s188 + $0x448] sm:$0xff]
        %v338 = vld [vmem:[%s188 + $0x450] sm:$0xff]
        %v339 = vld [vmem:[%s188 + $0x458] sm:$0xff]
        %v340 = vld [vmem:[%s188 + $0x460] sm:$0xff]
        %v341 = vld [vmem:[%s188 + $0x468] sm:$0xff]
        %v342 = vld [vmem:[%s188 + $0x470] sm:$0xff]
        %v343 = vld [vmem:[%s188 + $0x478] sm:$0xff]
        %v344 = vld [vmem:[%s188 + $0x480] sm:$0xff]
        %v345 = vld [vmem:[%s188 + $0x488] sm:$0xff]
        %v346 = vld [vmem:[%s188 + $0x490] sm:$0xff]
        %v347 = vld [vmem:[%s188 + $0x498] sm:$0xff]
        %v348 = vld [vmem:[%s188 + $0x4a0] sm:$0xff]
        %v349 = vld [vmem:[%s188 + $0x4a8] sm:$0xff]
        %v350 = vld [vmem:[%s188 + $0x4b0] sm:$0xff]
        %v351 = vld [vmem:[%s188 + $0x4b8] sm:$0xff]
        %v352 = vld [vmem:[%s188 + $0x4c0] sm:$0xff]
        %v353 = vld [vmem:[%s188 + $0x4c8] sm:$0xff]
        %v354 = vld [vmem:[%s188 + $0x4d0] sm:$0xff]
        %v355 = vld [vmem:[%s188 + $0x4d8] sm:$0xff]
        %v356 = vld [vmem:[%s188 + $0x4e0] sm:$0xff]
        %v357 = vld [vmem:[%s188 + $0x4e8] sm:$0xff]
        %v358 = vld [vmem:[%s188 + $0x4f0] sm:$0xff]
        %v359 = vld [vmem:[%s188 + $0x4f8] sm:$0xff]
        %v360 = vld [vmem:[%s188 + $0x500] sm:$0xff]
        %v361 = vld [vmem:[%s188 + $0x508] sm:$0xff]
        %v362 = vld [vmem:[%s188 + $0x510] sm:$0xff]
        %v363 = vld [vmem:[%s188 + $0x518] sm:$0xff]
        %v364 = vld [vmem:[%s188 + $0x520] sm:$0xff]
        %v365 = vld [vmem:[%s188 + $0x528] sm:$0xff]
        %v366 = vld [vmem:[%s188 + $0x530] sm:$0xff]
        %v367 = vld [vmem:[%s188 + $0x538] sm:$0xff]
        %v368 = vld [vmem:[%s188 + $0x540] sm:$0xff]
        %v369 = vld [vmem:[%s188 + $0x548] sm:$0xff]
        %v370 = vld [vmem:[%s188 + $0x550] sm:$0xff]
        %v371 = vld [vmem:[%s188 + $0x558] sm:$0xff]
        %v372 = vld [vmem:[%s188 + $0x560] sm:$0xff]
        %v373 = vld [vmem:[%s188 + $0x568] sm:$0xff]
        %v374 = vld [vmem:[%s188 + $0x570] sm:$0xff]
        %v375 = vld [vmem:[%s188 + $0x578] sm:$0xff]
        %v376 = vld [vmem:[%s188 + $0x580] sm:$0xff]
        %v377 = vld [vmem:[%s188 + $0x588] sm:$0xff]
        %v378 = vld [vmem:[%s188 + $0x590] sm:$0xff]
        %v379 = vld [vmem:[%s188 + $0x598] sm:$0xff]
        %v380 = vld [vmem:[%s188 + $0x5a0] sm:$0xff]
        %v381 = vld [vmem:[%s188 + $0x5a8] sm:$0xff]
        %v382 = vld [vmem:[%s188 + $0x5b0] sm:$0xff]
        %v383 = vld [vmem:[%s188 + $0x5b8] sm:$0xff]
        %v384 = vld [vmem:[%s188 + $0x5c0] sm:$0xff]
        %v385 = vld [vmem:[%s188 + $0x5c8] sm:$0xff]
        %v386 = vld [vmem:[%s188 + $0x5d0] sm:$0xff]
        %v387 = vld [vmem:[%s188 + $0x5d8] sm:$0xff]
        %v388 = vld [vmem:[%s188 + $0x5e0] sm:$0xff]
        %v389 = vld [vmem:[%s188 + $0x5e8] sm:$0xff]
        %v390 = vld [vmem:[%s188 + $0x5f0] sm:$0xff]
        %v391 = vld [vmem:[%s188 + $0x5f8] sm:$0xff]
        %v392 = vld [vmem:[%s188 + $0x600] sm:$0xff]
        %v393 = vld [vmem:[%s188 + $0x608] sm:$0xff]
        %v394 = vld [vmem:[%s188 + $0x610] sm:$0xff]
        %v395 = vld [vmem:[%s188 + $0x618] sm:$0xff]
        %v396 = vld [vmem:[%s188 + $0x620] sm:$0xff]
        %v397 = vld [vmem:[%s188 + $0x628] sm:$0xff]
        %v398 = vld [vmem:[%s188 + $0x630] sm:$0xff]
        %v399 = vld [vmem:[%s188 + $0x638] sm:$0xff]
        %v400 = vld [vmem:[%s188 + $0x640] sm:$0xff]
        %v401 = vld [vmem:[%s188 + $0x648] sm:$0xff]
        %v402 = vld [vmem:[%s188 + $0x650] sm:$0xff]
        %v403 = vld [vmem:[%s188 + $0x658] sm:$0xff]
        %v404 = vld [vmem:[%s188 + $0x660] sm:$0xff]
        %v405 = vld [vmem:[%s188 + $0x668] sm:$0xff]
        %v406 = vld [vmem:[%s188 + $0x670] sm:$0xff]
        %v407 = vld [vmem:[%s188 + $0x678] sm:$0xff]
        %v408 = vld [vmem:[%s188 + $0x680] sm:$0xff]
        %v409 = vld [vmem:[%s188 + $0x688] sm:$0xff]
        %v410 = vld [vmem:[%s188 + $0x690] sm:$0xff]
        %v411 = vld [vmem:[%s188 + $0x698] sm:$0xff]
        %v412 = vld [vmem:[%s188 + $0x6a0] sm:$0xff]
        %v413 = vld [vmem:[%s188 + $0x6a8] sm:$0xff]
        %v414 = vld [vmem:[%s188 + $0x6b0] sm:$0xff]
        %v415 = vld [vmem:[%s188 + $0x6b8] sm:$0xff]
        %v416 = vld [vmem:[%s188 + $0x6c0] sm:$0xff]
        %v417 = vld [vmem:[%s188 + $0x6c8] sm:$0xff]
        %v418 = vld [vmem:[%s188 + $0x6d0] sm:$0xff]
        %v419 = vld [vmem:[%s188 + $0x6d8] sm:$0xff]
        %v420 = vld [vmem:[%s188 + $0x6e0] sm:$0xff]
        %v421 = vld [vmem:[%s188 + $0x6e8] sm:$0xff]
        %v422 = vld [vmem:[%s188 + $0x6f0] sm:$0xff]
        %v423 = vld [vmem:[%s188 + $0x6f8] sm:$0xff]
        %v424 = vld [vmem:[%s188 + $0x700] sm:$0xff]
        %v425 = vld [vmem:[%s188 + $0x708] sm:$0xff]
        %v426 = vld [vmem:[%s188 + $0x710] sm:$0xff]
        %v427 = vld [vmem:[%s188 + $0x718] sm:$0xff]
        %v428 = vld [vmem:[%s188 + $0x720] sm:$0xff]
        %v429 = vld [vmem:[%s188 + $0x728] sm:$0xff]
        %v430 = vld [vmem:[%s188 + $0x730] sm:$0xff]
        %v431 = vld [vmem:[%s188 + $0x738] sm:$0xff]
        %v432 = vld [vmem:[%s188 + $0x740] sm:$0xff]
        %v433 = vld [vmem:[%s188 + $0x748] sm:$0xff]
        %v434 = vld [vmem:[%s188 + $0x750] sm:$0xff]
        %v435 = vld [vmem:[%s188 + $0x758] sm:$0xff]
        %v436 = vld [vmem:[%s188 + $0x760] sm:$0xff]
        %v437 = vld [vmem:[%s188 + $0x768] sm:$0xff]
        %v438 = vld [vmem:[%s188 + $0x770] sm:$0xff]
        %v439 = vld [vmem:[%s188 + $0x778] sm:$0xff]
        %v440 = vld [vmem:[%s188 + $0x780] sm:$0xff]
        %v441 = vld [vmem:[%s188 + $0x788] sm:$0xff]
        %v442 = vld [vmem:[%s188 + $0x790] sm:$0xff]
        %v443 = vld [vmem:[%s188 + $0x798] sm:$0xff]
        %v444 = vld [vmem:[%s188 + $0x7a0] sm:$0xff]
        %v445 = vld [vmem:[%s188 + $0x7a8] sm:$0xff]
        %v446 = vld [vmem:[%s188 + $0x7b0] sm:$0xff]
        %v447 = vld [vmem:[%s188 + $0x7b8] sm:$0xff]
        %v448 = vld [vmem:[%s188 + $0x7c0] sm:$0xff]
        %v449 = vld [vmem:[%s188 + $0x7c8] sm:$0xff]
        %v450 = vld [vmem:[%s188 + $0x7d0] sm:$0xff]
        %v451 = vld [vmem:[%s188 + $0x7d8] sm:$0xff]
        %v452 = vld [vmem:[%s188 + $0x7e0] sm:$0xff]
        %v453 = vld [vmem:[%s188 + $0x7e8] sm:$0xff]
        %v454 = vld [vmem:[%s188 + $0x7f0] sm:$0xff]
        %v455 = vld [vmem:[%s188 + $0x7f8] sm:$0xff]
        %v456 = vld [vmem:[%s188 + $0x800] sm:$0xff]
        %v457 = vld [vmem:[%s188 + $0x808] sm:$0xff]
        %v458 = vld [vmem:[%s188 + $0x810] sm:$0xff]
        %v459 = vld [vmem:[%s188 + $0x818] sm:$0xff]
        %v460 = vld [vmem:[%s188 + $0x820] sm:$0xff]
        %v461 = vld [vmem:[%s188 + $0x828] sm:$0xff]
        %v462 = vld [vmem:[%s188 + $0x830] sm:$0xff]
        %v463 = vld [vmem:[%s188 + $0x838] sm:$0xff]
        %v464 = vld [vmem:[%s188 + $0x840] sm:$0xff]
        %v465 = vld [vmem:[%s188 + $0x848] sm:$0xff]
        %v466 = vld [vmem:[%s188 + $0x850] sm:$0xff]
        %v467 = vld [vmem:[%s188 + $0x858] sm:$0xff]
        %v468 = vld [vmem:[%s188 + $0x860] sm:$0xff]
        %v469 = vld [vmem:[%s188 + $0x868] sm:$0xff]
        %v470 = vld [vmem:[%s188 + $0x870] sm:$0xff]
        %v471 = vld [vmem:[%s188 + $0x878] sm:$0xff]
        %v472 = vld [vmem:[%s188 + $0x880] sm:$0xff]
        %v473 = vld [vmem:[%s188 + $0x888] sm:$0xff]
        %v474 = vld [vmem:[%s188 + $0x890] sm:$0xff]
        %v475 = vld [vmem:[%s188 + $0x898] sm:$0xff]
        %v476 = vld [vmem:[%s188 + $0x8a0] sm:$0xff]
        %v477 = vld [vmem:[%s188 + $0x8a8] sm:$0xff]
        %v478 = vld [vmem:[%s188 + $0x8b0] sm:$0xff]
        %v479 = vld [vmem:[%s188 + $0x8b8] sm:$0xff]
        %v480 = vld [vmem:[%s188 + $0x8c0] sm:$0xff]
        %v481 = vld [vmem:[%s188 + $0x8c8] sm:$0xff]
        %v482 = vld [vmem:[%s188 + $0x8d0] sm:$0xff]
        %v483 = vld [vmem:[%s188 + $0x8d8] sm:$0xff]
        %v484 = vld [vmem:[%s188 + $0x8e0] sm:$0xff]
        %v485 = vld [vmem:[%s188 + $0x8e8] sm:$0xff]
        %v486 = vld [vmem:[%s188 + $0x8f0] sm:$0xff]
        %v487 = vld [vmem:[%s188 + $0x8f8] sm:$0xff]
        %v488 = vld [vmem:[%s188 + $0x900] sm:$0xff]
        %v489 = vld [vmem:[%s188 + $0x908] sm:$0xff]
        %v490 = vld [vmem:[%s188 + $0x910] sm:$0xff]
        %v491 = vld [vmem:[%s188 + $0x918] sm:$0xff]
        %v492 = vld [vmem:[%s188 + $0x920] sm:$0xff]
        %v493 = vld [vmem:[%s188 + $0x928] sm:$0xff]
        %v494 = vld [vmem:[%s188 + $0x930] sm:$0xff]
        %v495 = vld [vmem:[%s188 + $0x938] sm:$0xff]
        %v496 = vld [vmem:[%s188 + $0x940] sm:$0xff]
        %v497 = vld [vmem:[%s188 + $0x948] sm:$0xff]
        %v498 = vld [vmem:[%s188 + $0x950] sm:$0xff]
        %v499 = vld [vmem:[%s188 + $0x958] sm:$0xff]
        %v500 = vld [vmem:[%s188 + $0x960] sm:$0xff]
        %v501 = vld [vmem:[%s188 + $0x968] sm:$0xff]
        %v502 = vld [vmem:[%s188 + $0x970] sm:$0xff]
        %v503 = vld [vmem:[%s188 + $0x978] sm:$0xff]
        %v504 = vld [vmem:[%s188 + $0x980] sm:$0xff]
        %v505 = vld [vmem:[%s188 + $0x988] sm:$0xff]
        %v506 = vld [vmem:[%s188 + $0x990] sm:$0xff]
        %v507 = vld [vmem:[%s188 + $0x998] sm:$0xff]
        %v508 = vld [vmem:[%s188 + $0x9a0] sm:$0xff]
        %v509 = vld [vmem:[%s188 + $0x9a8] sm:$0xff]
        %v510 = vld [vmem:[%s188 + $0x9b0] sm:$0xff]
        %v511 = vld [vmem:[%s188 + $0x9b8] sm:$0xff]
        %v512 = vld [vmem:[%s188 + $0x9c0] sm:$0xff]
        %v513 = vld [vmem:[%s188 + $0x9c8] sm:$0xff]
        %v514 = vld [vmem:[%s188 + $0x9d0] sm:$0xff]
        %v515 = vld [vmem:[%s188 + $0x9d8] sm:$0xff]
        %v516 = vld [vmem:[%s188 + $0x9e0] sm:$0xff]
        %v517 = vld [vmem:[%s188 + $0x9e8] sm:$0xff]
        %v518 = vld [vmem:[%s188 + $0x9f0] sm:$0xff]
        %v519 = vld [vmem:[%s188 + $0x9f8] sm:$0xff]
        %v520 = vld [vmem:[%s188 + $0xa00] sm:$0xff]
        %v521 = vld [vmem:[%s188 + $0xa08] sm:$0xff]
        %v522 = vld [vmem:[%s188 + $0xa10] sm:$0xff]
        %v523 = vld [vmem:[%s188 + $0xa18] sm:$0xff]
        %v524 = vld [vmem:[%s188 + $0xa20] sm:$0xff]
        %v525 = vld [vmem:[%s188 + $0xa28] sm:$0xff]
        %v526 = vld [vmem:[%s188 + $0xa30] sm:$0xff]
        %v527 = vld [vmem:[%s188 + $0xa38] sm:$0xff]
        %v528 = vld [vmem:[%s188 + $0xa40] sm:$0xff]
        %v529 = vld [vmem:[%s188 + $0xa48] sm:$0xff]
        %v530 = vld [vmem:[%s188 + $0xa50] sm:$0xff]
        %v531 = vld [vmem:[%s188 + $0xa58] sm:$0xff]
        %v532 = vld [vmem:[%s188 + $0xa60] sm:$0xff]
        %v533 = vld [vmem:[%s188 + $0xa68] sm:$0xff]
        %v534 = vld [vmem:[%s188 + $0xa70] sm:$0xff]
        %v535 = vld [vmem:[%s188 + $0xa78] sm:$0xff]
        %v536 = vld [vmem:[%s188 + $0xa80] sm:$0xff]
        %v537 = vld [vmem:[%s188 + $0xa88] sm:$0xff]
        %v538 = vld [vmem:[%s188 + $0xa90] sm:$0xff]
        %v539 = vld [vmem:[%s188 + $0xa98] sm:$0xff]
        %v540 = vld [vmem:[%s188 + $0xaa0] sm:$0xff]
        %v541 = vld [vmem:[%s188 + $0xaa8] sm:$0xff]
        %v542 = vld [vmem:[%s188 + $0xab0] sm:$0xff]
        %v543 = vld [vmem:[%s188 + $0xab8] sm:$0xff]
        %v544 = vld [vmem:[%s188 + $0xac0] sm:$0xff]
        %v545 = vld [vmem:[%s188 + $0xac8] sm:$0xff]
        %v546 = vld [vmem:[%s188 + $0xad0] sm:$0xff]
        %v547 = vld [vmem:[%s188 + $0xad8] sm:$0xff]
        %v548 = vld [vmem:[%s188 + $0xae0] sm:$0xff]
        %v549 = vld [vmem:[%s188 + $0xae8] sm:$0xff]
        %v550 = vld [vmem:[%s188 + $0xaf0] sm:$0xff]
        %v551 = vld [vmem:[%s188 + $0xaf8] sm:$0xff]
        %v552 = vld [vmem:[%s188 + $0xb00] sm:$0xff]
        %v553 = vld [vmem:[%s188 + $0xb08] sm:$0xff]
        %v554 = vld [vmem:[%s188 + $0xb10] sm:$0xff]
        %v555 = vld [vmem:[%s188 + $0xb18] sm:$0xff]
        %v556 = vld [vmem:[%s188 + $0xb20] sm:$0xff]
        %v557 = vld [vmem:[%s188 + $0xb28] sm:$0xff]
        %v558 = vld [vmem:[%s188 + $0xb30] sm:$0xff]
        %v559 = vld [vmem:[%s188 + $0xb38] sm:$0xff]
        %v560 = vld [vmem:[%s188 + $0xb40] sm:$0xff]
        %v561 = vld [vmem:[%s188 + $0xb48] sm:$0xff]
        %v562 = vld [vmem:[%s188 + $0xb50] sm:$0xff]
        %v563 = vld [vmem:[%s188 + $0xb58] sm:$0xff]
        %v564 = vld [vmem:[%s188 + $0xb60] sm:$0xff]
        %v565 = vld [vmem:[%s188 + $0xb68] sm:$0xff]
        %v566 = vld [vmem:[%s188 + $0xb70] sm:$0xff]
        %v567 = vld [vmem:[%s188 + $0xb78] sm:$0xff]
        %v568 = vld [vmem:[%s188 + $0xb80] sm:$0xff]
        %v569 = vld [vmem:[%s188 + $0xb88] sm:$0xff]
        %v570 = vld [vmem:[%s188 + $0xb90] sm:$0xff]
        %v571 = vld [vmem:[%s188 + $0xb98] sm:$0xff]
        %v572 = vld [vmem:[%s188 + $0xba0] sm:$0xff]
        %v573 = vld [vmem:[%s188 + $0xba8] sm:$0xff]
        %v574 = vld [vmem:[%s188 + $0xbb0] sm:$0xff]
        %v575 = vld [vmem:[%s188 + $0xbb8] sm:$0xff]
        %v576 = vld [vmem:[%s188 + $0xbc0] sm:$0xff]
        %v577 = vld [vmem:[%s188 + $0xbc8] sm:$0xff]
        %v578 = vld [vmem:[%s188 + $0xbd0] sm:$0xff]
        %v579 = vld [vmem:[%s188 + $0xbd8] sm:$0xff]
        %v580 = vld [vmem:[%s188 + $0xbe0] sm:$0xff]
        %v581 = vld [vmem:[%s188 + $0xbe8] sm:$0xff]
        %v582 = vld [vmem:[%s188 + $0xbf0] sm:$0xff]
        %v583 = vld [vmem:[%s188 + $0xbf8] sm:$0xff]
        %v584 = vld [vmem:[%s188 + $0xc00] sm:$0xff]
        %v585 = vld [vmem:[%s188 + $0xc08] sm:$0xff]
        %v586 = vld [vmem:[%s188 + $0xc10] sm:$0xff]
        %v587 = vld [vmem:[%s188 + $0xc18] sm:$0xff]
        %v588 = vld [vmem:[%s188 + $0xc20] sm:$0xff]
        %v589 = vld [vmem:[%s188 + $0xc28] sm:$0xff]
        %v590 = vld [vmem:[%s188 + $0xc30] sm:$0xff]
        %v591 = vld [vmem:[%s188 + $0xc38] sm:$0xff]
        %v592 = vld [vmem:[%s188 + $0xc40] sm:$0xff]
        %v593 = vld [vmem:[%s188 + $0xc48] sm:$0xff]
        %v594 = vld [vmem:[%s188 + $0xc50] sm:$0xff]
        %v595 = vld [vmem:[%s188 + $0xc58] sm:$0xff]
        %v596 = vld [vmem:[%s188 + $0xc60] sm:$0xff]
        %v597 = vld [vmem:[%s188 + $0xc68] sm:$0xff]
        %v598 = vld [vmem:[%s188 + $0xc70] sm:$0xff]
        %v599 = vld [vmem:[%s188 + $0xc78] sm:$0xff]
        %v600 = vld [vmem:[%s188 + $0xc80] sm:$0xff]
        %v601 = vld [vmem:[%s188 + $0xc88] sm:$0xff]
        %v602 = vld [vmem:[%s188 + $0xc90] sm:$0xff]
        %v603 = vld [vmem:[%s188 + $0xc98] sm:$0xff]
        %v604 = vld [vmem:[%s188 + $0xca0] sm:$0xff]
        %v605 = vld [vmem:[%s188 + $0xca8] sm:$0xff]
        %v606 = vld [vmem:[%s188 + $0xcb0] sm:$0xff]
        %v607 = vld [vmem:[%s188 + $0xcb8] sm:$0xff]
        %v608 = vld [vmem:[%s188 + $0xcc0] sm:$0xff]
        %v609 = vld [vmem:[%s188 + $0xcc8] sm:$0xff]
        %v610 = vld [vmem:[%s188 + $0xcd0] sm:$0xff]
        %v611 = vld [vmem:[%s188 + $0xcd8] sm:$0xff]
        %v612 = vld [vmem:[%s188 + $0xce0] sm:$0xff]
        %v613 = vld [vmem:[%s188 + $0xce8] sm:$0xff]
        %v614 = vld [vmem:[%s188 + $0xcf0] sm:$0xff]
        %v615 = vld [vmem:[%s188 + $0xcf8] sm:$0xff]
        %v616 = vld [vmem:[%s188 + $0xd00] sm:$0xff]
        %v617 = vld [vmem:[%s188 + $0xd08] sm:$0xff]
        %v618 = vld [vmem:[%s188 + $0xd10] sm:$0xff]
        %v619 = vld [vmem:[%s188 + $0xd18] sm:$0xff]
        %v620 = vld [vmem:[%s188 + $0xd20] sm:$0xff]
        %v621 = vld [vmem:[%s188 + $0xd28] sm:$0xff]
        %v622 = vld [vmem:[%s188 + $0xd30] sm:$0xff]
        %v623 = vld [vmem:[%s188 + $0xd38] sm:$0xff]
        %v624 = vld [vmem:[%s188 + $0xd40] sm:$0xff]
        %v625 = vld [vmem:[%s188 + $0xd48] sm:$0xff]
        %v626 = vld [vmem:[%s188 + $0xd50] sm:$0xff]
        %v627 = vld [vmem:[%s188 + $0xd58] sm:$0xff]
        %v628 = vld [vmem:[%s188 + $0xd60] sm:$0xff]
        %v629 = vld [vmem:[%s188 + $0xd68] sm:$0xff]
        %v630 = vld [vmem:[%s188 + $0xd70] sm:$0xff]
        %v631 = vld [vmem:[%s188 + $0xd78] sm:$0xff]
        %v632 = vld [vmem:[%s188 + $0xd80] sm:$0xff]
        %v633 = vld [vmem:[%s188 + $0xd88] sm:$0xff]
        %v634 = vld [vmem:[%s188 + $0xd90] sm:$0xff]
        %v635 = vld [vmem:[%s188 + $0xd98] sm:$0xff]
        %v636 = vld [vmem:[%s188 + $0xda0] sm:$0xff]
        %v637 = vld [vmem:[%s188 + $0xda8] sm:$0xff]
        %v638 = vld [vmem:[%s188 + $0xdb0] sm:$0xff]
        %v639 = vld [vmem:[%s188 + $0xdb8] sm:$0xff]
        %v640 = vld [vmem:[%s188 + $0xdc0] sm:$0xff]
        %v641 = vld [vmem:[%s188 + $0xdc8] sm:$0xff]
        %v642 = vld [vmem:[%s188 + $0xdd0] sm:$0xff]
        %v643 = vld [vmem:[%s188 + $0xdd8] sm:$0xff]
        %v644 = vld [vmem:[%s188 + $0xde0] sm:$0xff]
        %v645 = vld [vmem:[%s188 + $0xde8] sm:$0xff]
        %v646 = vld [vmem:[%s188 + $0xdf0] sm:$0xff]
        %v647 = vld [vmem:[%s188 + $0xdf8] sm:$0xff]
        %v648 = vld [vmem:[%s188 + $0xe00] sm:$0xff]
        %v649 = vld [vmem:[%s188 + $0xe08] sm:$0xff]
        %v650 = vld [vmem:[%s188 + $0xe10] sm:$0xff]
        %v651 = vld [vmem:[%s188 + $0xe18] sm:$0xff]
        %v652 = vld [vmem:[%s188 + $0xe20] sm:$0xff]
        %v653 = vld [vmem:[%s188 + $0xe28] sm:$0xff]
        %v654 = vld [vmem:[%s188 + $0xe30] sm:$0xff]
        %v655 = vld [vmem:[%s188 + $0xe38] sm:$0xff]
        %v656 = vld [vmem:[%s188 + $0xe40] sm:$0xff]
        %v657 = vld [vmem:[%s188 + $0xe48] sm:$0xff]
        %v658 = vld [vmem:[%s188 + $0xe50] sm:$0xff]
        %v659 = vld [vmem:[%s188 + $0xe58] sm:$0xff]
        %v660 = vld [vmem:[%s188 + $0xe60] sm:$0xff]
        %v661 = vld [vmem:[%s188 + $0xe68] sm:$0xff]
        %v662 = vld [vmem:[%s188 + $0xe70] sm:$0xff]
        %v663 = vld [vmem:[%s188 + $0xe78] sm:$0xff]
        %v664 = vld [vmem:[%s188 + $0xe80] sm:$0xff]
        %v665 = vld [vmem:[%s188 + $0xe88] sm:$0xff]
        %v666 = vld [vmem:[%s188 + $0xe90] sm:$0xff]
        %v667 = vld [vmem:[%s188 + $0xe98] sm:$0xff]
        %v668 = vld [vmem:[%s188 + $0xea0] sm:$0xff]
        %v669 = vld [vmem:[%s188 + $0xea8] sm:$0xff]
        %v670 = vld [vmem:[%s188 + $0xeb0] sm:$0xff]
        %v671 = vld [vmem:[%s188 + $0xeb8] sm:$0xff]
        %v672 = vld [vmem:[%s188 + $0xec0] sm:$0xff]
        %v673 = vld [vmem:[%s188 + $0xec8] sm:$0xff]
        %v674 = vld [vmem:[%s188 + $0xed0] sm:$0xff]
        %v675 = vld [vmem:[%s188 + $0xed8] sm:$0xff]
        %v676 = vld [vmem:[%s188 + $0xee0] sm:$0xff]
        %v677 = vld [vmem:[%s188 + $0xee8] sm:$0xff]
        %v678 = vld [vmem:[%s188 + $0xef0] sm:$0xff]
        %v679 = vld [vmem:[%s188 + $0xef8] sm:$0xff]
        %v680 = vld [vmem:[%s188 + $0xf00] sm:$0xff]
        %v681 = vld [vmem:[%s188 + $0xf08] sm:$0xff]
        %v682 = vld [vmem:[%s188 + $0xf10] sm:$0xff]
        %v683 = vld [vmem:[%s188 + $0xf18] sm:$0xff]
        %v684 = vld [vmem:[%s188 + $0xf20] sm:$0xff]
        %v685 = vld [vmem:[%s188 + $0xf28] sm:$0xff]
        %v686 = vld [vmem:[%s188 + $0xf30] sm:$0xff]
        %v687 = vld [vmem:[%s188 + $0xf38] sm:$0xff]
        %v688 = vld [vmem:[%s188 + $0xf40] sm:$0xff]
        %v689 = vld [vmem:[%s188 + $0xf48] sm:$0xff]
        %v690 = vld [vmem:[%s188 + $0xf50] sm:$0xff]
        %v691 = vld [vmem:[%s188 + $0xf58] sm:$0xff]
        %v692 = vld [vmem:[%s188 + $0xf60] sm:$0xff]
        %v693 = vld [vmem:[%s188 + $0xf68] sm:$0xff]
        %v694 = vld [vmem:[%s188 + $0xf70] sm:$0xff]
        %v695 = vld [vmem:[%s188 + $0xf78] sm:$0xff]
        %v696 = vld [vmem:[%s188 + $0xf80] sm:$0xff]
        %v697 = vld [vmem:[%s188 + $0xf88] sm:$0xff]
        %v698 = vld [vmem:[%s188 + $0xf90] sm:$0xff]
        %v699 = vld [vmem:[%s188 + $0xf98] sm:$0xff]
        %v700 = vld [vmem:[%s188 + $0xfa0] sm:$0xff]
        %v701 = vld [vmem:[%s188 + $0xfa8] sm:$0xff]
        %v702 = vld [vmem:[%s188 + $0xfb0] sm:$0xff]
        %v703 = vld [vmem:[%s188 + $0xfb8] sm:$0xff]
        %v704 = vld [vmem:[%s188 + $0xfc0] sm:$0xff]
        %v705 = vld [vmem:[%s188 + $0xfc8] sm:$0xff]
        %v706 = vld [vmem:[%s188 + $0xfd0] sm:$0xff]
        %v707 = vld [vmem:[%s188 + $0xfd8] sm:$0xff]
        %v708 = vld [vmem:[%s188 + $0xfe0] sm:$0xff]
        %v709 = vld [vmem:[%s188 + $0xfe8] sm:$0xff]
        %v710 = vld [vmem:[%s188 + $0xff0] sm:$0xff]
        %v711 = vld [vmem:[%s188 + $0xff8] sm:$0xff]
        %v712 = vld [vmem:[%s188 + $0x1000] sm:$0xff]
        %v713 = vld [vmem:[%s188 + $0x1008] sm:$0xff]
        %v714 = vld [vmem:[%s188 + $0x1010] sm:$0xff]
        %v715 = vld [vmem:[%s188 + $0x1018] sm:$0xff]
        %v716 = vld [vmem:[%s188 + $0x1020] sm:$0xff]
        %v717 = vld [vmem:[%s188 + $0x1028] sm:$0xff]
        %v718 = vld [vmem:[%s188 + $0x1030] sm:$0xff]
        %v719 = vld [vmem:[%s188 + $0x1038] sm:$0xff]
        %v720 = vld [vmem:[%s188 + $0x1040] sm:$0xff]
        %v721 = vld [vmem:[%s188 + $0x1048] sm:$0xff]
        %v722 = vld [vmem:[%s188 + $0x1050] sm:$0xff]
        %v723 = vld [vmem:[%s188 + $0x1058] sm:$0xff]
        %v724 = vld [vmem:[%s188 + $0x1060] sm:$0xff]
        %v725 = vld [vmem:[%s188 + $0x1068] sm:$0xff]
        %v726 = vld [vmem:[%s188 + $0x1070] sm:$0xff]
        %v727 = vld [vmem:[%s188 + $0x1078] sm:$0xff]
        %v728 = vld [vmem:[%s188 + $0x1080] sm:$0xff]
        %v729 = vld [vmem:[%s188 + $0x1088] sm:$0xff]
        %v730 = vld [vmem:[%s188 + $0x1090] sm:$0xff]
        %v731 = vld [vmem:[%s188 + $0x1098] sm:$0xff]
        %v732 = vld [vmem:[%s188 + $0x10a0] sm:$0xff]
        %v733 = vld [vmem:[%s188 + $0x10a8] sm:$0xff]
        %v734 = vld [vmem:[%s188 + $0x10b0] sm:$0xff]
        %v735 = vld [vmem:[%s188 + $0x10b8] sm:$0xff]
        %v736 = vld [vmem:[%s188 + $0x10c0] sm:$0xff]
        %v737 = vld [vmem:[%s188 + $0x10c8] sm:$0xff]
        %v738 = vld [vmem:[%s188 + $0x10d0] sm:$0xff]
        %v739 = vld [vmem:[%s188 + $0x10d8] sm:$0xff]
        %v740 = vld [vmem:[%s188 + $0x10e0] sm:$0xff]
        %v741 = vld [vmem:[%s188 + $0x10e8] sm:$0xff]
        %v742 = vld [vmem:[%s188 + $0x10f0] sm:$0xff]
        %v743 = vld [vmem:[%s188 + $0x10f8] sm:$0xff]
        %v744 = vld [vmem:[%s188 + $0x1100] sm:$0xff]
        %v745 = vld [vmem:[%s188 + $0x1108] sm:$0xff]
        %v746 = vld [vmem:[%s188 + $0x1110] sm:$0xff]
        %v747 = vld [vmem:[%s188 + $0x1118] sm:$0xff]
        %v748 = vld [vmem:[%s188 + $0x1120] sm:$0xff]
        %v749 = vld [vmem:[%s188 + $0x1128] sm:$0xff]
        %v750 = vld [vmem:[%s188 + $0x1130] sm:$0xff]
        %v751 = vld [vmem:[%s188 + $0x1138] sm:$0xff]
        %v752 = vld [vmem:[%s188 + $0x1140] sm:$0xff]
        %v753 = vld [vmem:[%s188 + $0x1148] sm:$0xff]
        %v754 = vld [vmem:[%s188 + $0x1150] sm:$0xff]
        %v755 = vld [vmem:[%s188 + $0x1158] sm:$0xff]
        %v756 = vld [vmem:[%s188 + $0x1160] sm:$0xff]
        %v757 = vld [vmem:[%s188 + $0x1168] sm:$0xff]
        %v758 = vld [vmem:[%s188 + $0x1170] sm:$0xff]
        %v759 = vld [vmem:[%s188 + $0x1178] sm:$0xff]
        %v760 = vld [vmem:[%s188 + $0x1180] sm:$0xff]
        %v761 = vld [vmem:[%s188 + $0x1188] sm:$0xff]
        %v762 = vld [vmem:[%s188 + $0x1190] sm:$0xff]
        %v763 = vld [vmem:[%s188 + $0x1198] sm:$0xff]
        %v764 = vld [vmem:[%s188 + $0x11a0] sm:$0xff]
        %v765 = vld [vmem:[%s188 + $0x11a8] sm:$0xff]
        %v766 = vld [vmem:[%s188 + $0x11b0] sm:$0xff]
        %v767 = vld [vmem:[%s188 + $0x11b8] sm:$0xff]
        %v768 = vld [vmem:[%s188 + $0x11c0] sm:$0xff]
        %v769 = vld [vmem:[%s188 + $0x11c8] sm:$0xff]
        %v770 = vld [vmem:[%s188 + $0x11d0] sm:$0xff]
        %v771 = vld [vmem:[%s188 + $0x11d8] sm:$0xff]
        %v772 = vld [vmem:[%s188 + $0x11e0] sm:$0xff]
        %v773 = vld [vmem:[%s188 + $0x11e8] sm:$0xff]
        %v774 = vld [vmem:[%s188 + $0x11f0] sm:$0xff]
        %v775 = vld [vmem:[%s188 + $0x11f8] sm:$0xff]
        %v776 = vld [vmem:[%s188 + $0x1200] sm:$0xff]
        %v777 = vld [vmem:[%s188 + $0x1208] sm:$0xff]
        %v778 = vld [vmem:[%s188 + $0x1210] sm:$0xff]
        %v779 = vld [vmem:[%s188 + $0x1218] sm:$0xff]
        %v780 = vld [vmem:[%s188 + $0x1220] sm:$0xff]
        %v781 = vld [vmem:[%s188 + $0x1228] sm:$0xff]
        %v782 = vld [vmem:[%s188 + $0x1230] sm:$0xff]
        %v783 = vld [vmem:[%s188 + $0x1238] sm:$0xff]
        %v784 = vld [vmem:[%s188 + $0x1240] sm:$0xff]
        %v785 = vld [vmem:[%s188 + $0x1248] sm:$0xff]
        %v786 = vld [vmem:[%s188 + $0x1250] sm:$0xff]
        %v787 = vld [vmem:[%s188 + $0x1258] sm:$0xff]
        %v788 = vld [vmem:[%s188 + $0x1260] sm:$0xff]
        %v789 = vld [vmem:[%s188 + $0x1268] sm:$0xff]
        %v790 = vld [vmem:[%s188 + $0x1270] sm:$0xff]
        %v791 = vld [vmem:[%s188 + $0x1278] sm:$0xff]
        %v792 = vld [vmem:[%s188 + $0x1280] sm:$0xff]
        %v793 = vld [vmem:[%s188 + $0x1288] sm:$0xff]
        %v794 = vld [vmem:[%s188 + $0x1290] sm:$0xff]
        %v795 = vld [vmem:[%s188 + $0x1298] sm:$0xff]
        %v796 = vld [vmem:[%s188 + $0x12a0] sm:$0xff]
        %v797 = vld [vmem:[%s188 + $0x12a8] sm:$0xff]
        %v798 = vld [vmem:[%s188 + $0x12b0] sm:$0xff]
        %v799 = vld [vmem:[%s188 + $0x12b8] sm:$0xff]
        %v800 = vld [vmem:[%s188 + $0x12c0] sm:$0xff]
        %v801 = vld [vmem:[%s188 + $0x12c8] sm:$0xff]
        %v802 = vld [vmem:[%s188 + $0x12d0] sm:$0xff]
        %v803 = vld [vmem:[%s188 + $0x12d8] sm:$0xff]
        %v804 = vld [vmem:[%s188 + $0x12e0] sm:$0xff]
        %v805 = vld [vmem:[%s188 + $0x12e8] sm:$0xff]
        %v806 = vld [vmem:[%s188 + $0x12f0] sm:$0xff]
        %v807 = vld [vmem:[%s188 + $0x12f8] sm:$0xff]
        %v808 = vld [vmem:[%s188 + $0x1300] sm:$0xff]
        %v809 = vld [vmem:[%s188 + $0x1308] sm:$0xff]
        %v810 = vld [vmem:[%s188 + $0x1310] sm:$0xff]
        %v811 = vld [vmem:[%s188 + $0x1318] sm:$0xff]
        %v812 = vld [vmem:[%s188 + $0x1320] sm:$0xff]
        %v813 = vld [vmem:[%s188 + $0x1328] sm:$0xff]
        %v814 = vld [vmem:[%s188 + $0x1330] sm:$0xff]
        %v815 = vld [vmem:[%s188 + $0x1338] sm:$0xff]
        %v816 = vld [vmem:[%s188 + $0x1340] sm:$0xff]
        %v817 = vld [vmem:[%s188 + $0x1348] sm:$0xff]
        %v818 = vld [vmem:[%s188 + $0x1350] sm:$0xff]
        %v819 = vld [vmem:[%s188 + $0x1358] sm:$0xff]
        %v820 = vld [vmem:[%s188 + $0x1360] sm:$0xff]
        %v821 = vld [vmem:[%s188 + $0x1368] sm:$0xff]
        %v822 = vld [vmem:[%s188 + $0x1370] sm:$0xff]
        %v823 = vld [vmem:[%s188 + $0x1378] sm:$0xff]
        %v824 = vld [vmem:[%s188 + $0x1380] sm:$0xff]
        %v825 = vld [vmem:[%s188 + $0x1388] sm:$0xff]
        %v826 = vld [vmem:[%s188 + $0x1390] sm:$0xff]
        %v827 = vld [vmem:[%s188 + $0x1398] sm:$0xff]
        %v828 = vld [vmem:[%s188 + $0x13a0] sm:$0xff]
        %v829 = vld [vmem:[%s188 + $0x13a8] sm:$0xff]
        %v830 = vld [vmem:[%s188 + $0x13b0] sm:$0xff]
        %v831 = vld [vmem:[%s188 + $0x13b8] sm:$0xff]
        %v832 = vld [vmem:[%s188 + $0x13c0] sm:$0xff]
        %v833 = vld [vmem:[%s188 + $0x13c8] sm:$0xff]
        %v834 = vld [vmem:[%s188 + $0x13d0] sm:$0xff]
        %v835 = vld [vmem:[%s188 + $0x13d8] sm:$0xff]
        %v836 = vld [vmem:[%s188 + $0x13e0] sm:$0xff]
        %v837 = vld [vmem:[%s188 + $0x13e8] sm:$0xff]
        %v838 = vld [vmem:[%s188 + $0x13f0] sm:$0xff]
        %v839 = vld [vmem:[%s188 + $0x13f8] sm:$0xff]
        %v840 = vld [vmem:[%s188 + $0x1400] sm:$0xff]
        %v841 = vld [vmem:[%s188 + $0x1408] sm:$0xff]
        %v842 = vld [vmem:[%s188 + $0x1410] sm:$0xff]
        %v843 = vld [vmem:[%s188 + $0x1418] sm:$0xff]
        %v844 = vld [vmem:[%s188 + $0x1420] sm:$0xff]
        %v845 = vld [vmem:[%s188 + $0x1428] sm:$0xff]
        %v846 = vld [vmem:[%s1] sm:$0xff]
        %v847 = vld [vmem:[%s1 + $0x8] sm:$0xff]
        %v848 = vld [vmem:[%s1 + $0x10] sm:$0xff]
        %v849 = vld [vmem:[%s1 + $0x18] sm:$0xff]
        %v850 = vld [vmem:[%s1 + $0x20] sm:$0xff]
        %v851 = vld [vmem:[%s1 + $0x28] sm:$0xff]
        %v852 = vld [vmem:[%s1 + $0x30] sm:$0xff]
        %v853 = vld [vmem:[%s1 + $0x38] sm:$0xff]
        %v854 = vld [vmem:[%s1 + $0x40] sm:$0xff]
        %v855 = vld [vmem:[%s1 + $0x48] sm:$0xff]
        %v856 = vld [vmem:[%s1 + $0x50] sm:$0xff]
        %v857 = vld [vmem:[%s1 + $0x58] sm:$0xff]
        %v858 = vld [vmem:[%s1 + $0x60] sm:$0xff]
        %v859 = vld [vmem:[%s1 + $0x68] sm:$0xff]
        %v860 = vld [vmem:[%s1 + $0x70] sm:$0xff]
        %v861 = vld [vmem:[%s1 + $0x78] sm:$0xff]
        %v862 = vld [vmem:[%s1 + $0x80] sm:$0xff]
        %v863 = vld [vmem:[%s1 + $0x88] sm:$0xff]
        %v864 = vld [vmem:[%s1 + $0x90] sm:$0xff]
        %v865 = vld [vmem:[%s1 + $0x98] sm:$0xff]
        %v866 = vld [vmem:[%s1 + $0xa0] sm:$0xff]
        %v867 = vld [vmem:[%s1 + $0xa8] sm:$0xff]
        %v868 = vld [vmem:[%s1 + $0xb0] sm:$0xff]
        %v869 = vld [vmem:[%s1 + $0xb8] sm:$0xff]
        %v870 = vld [vmem:[%s1 + $0xc0] sm:$0xff]
        %v871 = vld [vmem:[%s1 + $0xc8] sm:$0xff]
        %v872 = vld [vmem:[%s1 + $0xd0] sm:$0xff]
        %v873 = vld [vmem:[%s1 + $0xd8] sm:$0xff]
        %v874 = vld [vmem:[%s1 + $0xe0] sm:$0xff]
        %v875 = vld [vmem:[%s1 + $0xe8] sm:$0xff]
        %v876 = vld [vmem:[%s1 + $0xf0] sm:$0xff]
        %v877 = vld [vmem:[%s1 + $0xf8] sm:$0xff]
        %v878 = vld [vmem:[%s1 + $0x100] sm:$0xff]
        %v879 = vld [vmem:[%s1 + $0x108] sm:$0xff]
        %v880 = vld [vmem:[%s1 + $0x110] sm:$0xff]
        %v881 = vld [vmem:[%s1 + $0x118] sm:$0xff]
        %v882 = vld [vmem:[%s1 + $0x120] sm:$0xff]
        %v883 = vld [vmem:[%s1 + $0x128] sm:$0xff]
        %v884 = vld [vmem:[%s1 + $0x130] sm:$0xff]
        %v885 = vld [vmem:[%s1 + $0x138] sm:$0xff]
        %v886 = vld [vmem:[%s1 + $0x140] sm:$0xff]
        %v887 = vld [vmem:[%s1 + $0x148] sm:$0xff]
        %v888 = vld [vmem:[%s1 + $0x150] sm:$0xff]
        %v889 = vld [vmem:[%s1 + $0x158] sm:$0xff]
        %v890 = vld [vmem:[%s1 + $0x160] sm:$0xff]
        %v891 = vld [vmem:[%s1 + $0x168] sm:$0xff]
        %v892 = vld [vmem:[%s1 + $0x170] sm:$0xff]
        %v893 = vld [vmem:[%s1 + $0x178] sm:$0xff]
        %v894 = vld [vmem:[%s1 + $0x180] sm:$0xff]
        %v895 = vld [vmem:[%s1 + $0x188] sm:$0xff]
        %v896 = vld [vmem:[%s1 + $0x190] sm:$0xff]
        %v897 = vld [vmem:[%s1 + $0x198] sm:$0xff]
        %v898 = vld [vmem:[%s1 + $0x1a0] sm:$0xff]
        %v899 = vld [vmem:[%s1 + $0x1a8] sm:$0xff]
        %v900 = vld [vmem:[%s1 + $0x1b0] sm:$0xff]
        %v901 = vld [vmem:[%s1 + $0x1b8] sm:$0xff]
        %v902 = vld [vmem:[%s1 + $0x1c0] sm:$0xff]
        %v903 = vld [vmem:[%s1 + $0x1c8] sm:$0xff]
        %v904 = vld [vmem:[%s1 + $0x1d0] sm:$0xff]
        %v905 = vld [vmem:[%s1 + $0x1d8] sm:$0xff]
        %v906 = vld [vmem:[%s1 + $0x1e0] sm:$0xff]
        %v907 = vld [vmem:[%s1 + $0x1e8] sm:$0xff]
        %v908 = vld [vmem:[%s1 + $0x1f0] sm:$0xff]
        %v909 = vld [vmem:[%s1 + $0x1f8] sm:$0xff]
        %v910 = vld [vmem:[%s1 + $0x200] sm:$0xff]
        %v911 = vld [vmem:[%s1 + $0x208] sm:$0xff]
        %v912 = vld [vmem:[%s1 + $0x210] sm:$0xff]
        %v913 = vld [vmem:[%s1 + $0x218] sm:$0xff]
        %v914 = vld [vmem:[%s1 + $0x220] sm:$0xff]
        %v915 = vld [vmem:[%s1 + $0x228] sm:$0xff]
        %v916 = vld [vmem:[%s1 + $0x230] sm:$0xff]
        %v917 = vld [vmem:[%s1 + $0x238] sm:$0xff]
        %v918 = vld [vmem:[%s1 + $0x240] sm:$0xff]
        %v919 = vld [vmem:[%s1 + $0x248] sm:$0xff]
        %v920 = vld [vmem:[%s1 + $0x250] sm:$0xff]
        %v921 = vld [vmem:[%s1 + $0x258] sm:$0xff]
        %v922 = vld [vmem:[%s1 + $0x260] sm:$0xff]
        %v923 = vld [vmem:[%s1 + $0x268] sm:$0xff]
        %v924 = vld [vmem:[%s1 + $0x270] sm:$0xff]
        %v925 = vld [vmem:[%s1 + $0x278] sm:$0xff]
        %v926 = vld [vmem:[%s1 + $0x280] sm:$0xff]
        %v927 = vld [vmem:[%s1 + $0x288] sm:$0xff]
        %v928 = vld [vmem:[%s1 + $0x290] sm:$0xff]
        %v929 = vld [vmem:[%s1 + $0x298] sm:$0xff]
        %v930 = vld [vmem:[%s1 + $0x2a0] sm:$0xff]
        %v931 = vld [vmem:[%s1 + $0x2a8] sm:$0xff]
        %v932 = vld [vmem:[%s1 + $0x2b0] sm:$0xff]
        %v933 = vld [vmem:[%s1 + $0x2b8] sm:$0xff]
        %v934 = vld [vmem:[%s1 + $0x2c0] sm:$0xff]
        %v935 = vld [vmem:[%s1 + $0x2c8] sm:$0xff]
        %v936 = vld [vmem:[%s1 + $0x2d0] sm:$0xff]
        %v937 = vld [vmem:[%s1 + $0x2d8] sm:$0xff]
        %v938 = vld [vmem:[%s1 + $0x2e0] sm:$0xff]
        %v939 = vld [vmem:[%s1 + $0x2e8] sm:$0xff]
        %v940 = vld [vmem:[%s1 + $0x2f0] sm:$0xff]
        %v941 = vld [vmem:[%s1 + $0x2f8] sm:$0xff]
        %v942 = vld [vmem:[%s1 + $0x300] sm:$0xff]
        %v943 = vld [vmem:[%s1 + $0x308] sm:$0xff]
        %v944 = vld [vmem:[%s1 + $0x310] sm:$0xff]
        %v945 = vld [vmem:[%s1 + $0x318] sm:$0xff]
        %v946 = vld [vmem:[%s1 + $0x320] sm:$0xff]
        %v947 = vld [vmem:[%s1 + $0x328] sm:$0xff]
        %v948 = vld [vmem:[%s1 + $0x330] sm:$0xff]
        %v949 = vld [vmem:[%s1 + $0x338] sm:$0xff]
        %v950 = vld [vmem:[%s1 + $0x340] sm:$0xff]
        %v951 = vld [vmem:[%s1 + $0x348] sm:$0xff]
        %v952 = vld [vmem:[%s1 + $0x350] sm:$0xff]
        %v953 = vld [vmem:[%s1 + $0x358] sm:$0xff]
        %v954 = vld [vmem:[%s1 + $0x360] sm:$0xff]
        %v955 = vld [vmem:[%s1 + $0x368] sm:$0xff]
        %v956 = vld [vmem:[%s1 + $0x370] sm:$0xff]
        %v957 = vld [vmem:[%s1 + $0x378] sm:$0xff]
        %v958 = vld [vmem:[%s1 + $0x380] sm:$0xff]
        %v959 = vld [vmem:[%s1 + $0x388] sm:$0xff]
        %v960 = vld [vmem:[%s1 + $0x390] sm:$0xff]
        %v961 = vld [vmem:[%s1 + $0x398] sm:$0xff]
        %v962 = vld [vmem:[%s1 + $0x3a0] sm:$0xff]
        %v963 = vld [vmem:[%s1 + $0x3a8] sm:$0xff]
        %v964 = vld [vmem:[%s1 + $0x3b0] sm:$0xff]
        %v965 = vld [vmem:[%s1 + $0x3b8] sm:$0xff]
        %v966 = vld [vmem:[%s1 + $0x3c0] sm:$0xff]
        %v967 = vld [vmem:[%s1 + $0x3c8] sm:$0xff]
        %v968 = vld [vmem:[%s1 + $0x3d0] sm:$0xff]
        %v969 = vld [vmem:[%s1 + $0x3d8] sm:$0xff]
        %v970 = vld [vmem:[%s1 + $0x3e0] sm:$0xff]
        %v971 = vld [vmem:[%s1 + $0x3e8] sm:$0xff]
        %v972 = vld [vmem:[%s1 + $0x3f0] sm:$0xff]
        %v973 = vld [vmem:[%s1 + $0x3f8] sm:$0xff]
        %v974 = vld [vmem:[%s1 + $0x400] sm:$0xff]
        %v975 = vld [vmem:[%s1 + $0x408] sm:$0xff]
        %v976 = vld [vmem:[%s1 + $0x410] sm:$0xff]
        %v977 = vld [vmem:[%s1 + $0x418] sm:$0xff]
        %v978 = vld [vmem:[%s1 + $0x420] sm:$0xff]
        %v979 = vld [vmem:[%s1 + $0x428] sm:$0xff]
        %v980 = vld [vmem:[%s1 + $0x430] sm:$0xff]
        %v981 = vld [vmem:[%s1 + $0x438] sm:$0xff]
        %v982 = vld [vmem:[%s1 + $0x440] sm:$0xff]
        %v983 = vld [vmem:[%s1 + $0x448] sm:$0xff]
        %v984 = vld [vmem:[%s1 + $0x450] sm:$0xff]
        %v985 = vld [vmem:[%s1 + $0x458] sm:$0xff]
        %v986 = vld [vmem:[%s1 + $0x460] sm:$0xff]
        %v987 = vld [vmem:[%s1 + $0x468] sm:$0xff]
        %v988 = vld [vmem:[%s1 + $0x470] sm:$0xff]
        %v989 = vld [vmem:[%s1 + $0x478] sm:$0xff]
        %v990 = vld [vmem:[%s1 + $0x480] sm:$0xff]
        %v991 = vld [vmem:[%s1 + $0x488] sm:$0xff]
        %v992 = vld [vmem:[%s1 + $0x490] sm:$0xff]
        %v993 = vld [vmem:[%s1 + $0x498] sm:$0xff]
        %v994 = vld [vmem:[%s1 + $0x4a0] sm:$0xff]
        %v995 = vld [vmem:[%s1 + $0x4a8] sm:$0xff]
        %v996 = vld [vmem:[%s1 + $0x4b0] sm:$0xff]
        %v997 = vld [vmem:[%s1 + $0x4b8] sm:$0xff]
        %v998 = vld [vmem:[%s1 + $0x4c0] sm:$0xff]
        %v999 = vld [vmem:[%s1 + $0x4c8] sm:$0xff]
        %v1000 = vld [vmem:[%s1 + $0x4d0] sm:$0xff]
        %v1001 = vld [vmem:[%s1 + $0x4d8] sm:$0xff]
        %v1002 = vld [vmem:[%s1 + $0x4e0] sm:$0xff]
        %v1003 = vld [vmem:[%s1 + $0x4e8] sm:$0xff]
        %v1004 = vld [vmem:[%s1 + $0x4f0] sm:$0xff]
        %v1005 = vld [vmem:[%s1 + $0x4f8] sm:$0xff]
        %v1006 = vld [vmem:[%s1 + $0x500] sm:$0xff]
        %v1007 = vld [vmem:[%s1 + $0x508] sm:$0xff]
        %v1008 = vld [vmem:[%s1 + $0x510] sm:$0xff]
        %v1009 = vld [vmem:[%s1 + $0x518] sm:$0xff]
        %v1010 = vld [vmem:[%s1 + $0x520] sm:$0xff]
        %v1011 = vld [vmem:[%s1 + $0x528] sm:$0xff]
        %v1012 = vld [vmem:[%s1 + $0x530] sm:$0xff]
        %v1013 = vld [vmem:[%s1 + $0x538] sm:$0xff]
        %v1014 = vld [vmem:[%s1 + $0x540] sm:$0xff]
        %v1015 = vld [vmem:[%s1 + $0x548] sm:$0xff]
        %v1016 = vld [vmem:[%s1 + $0x550] sm:$0xff]
        %v1017 = vld [vmem:[%s1 + $0x558] sm:$0xff]
        %v1018 = vld [vmem:[%s1 + $0x560] sm:$0xff]
        %v1019 = vld [vmem:[%s1 + $0x568] sm:$0xff]
        %v1020 = vld [vmem:[%s1 + $0x570] sm:$0xff]
        %v1021 = vld [vmem:[%s1 + $0x578] sm:$0xff]
        %v1022 = vld [vmem:[%s1 + $0x580] sm:$0xff]
        %v1023 = vld [vmem:[%s1 + $0x588] sm:$0xff]
        %v1024 = vld [vmem:[%s1 + $0x590] sm:$0xff]
        %v1025 = vld [vmem:[%s1 + $0x598] sm:$0xff]
        %v1026 = vld [vmem:[%s1 + $0x5a0] sm:$0xff]
        %v1027 = vld [vmem:[%s1 + $0x5a8] sm:$0xff]
        %v1028 = vld [vmem:[%s1 + $0x5b0] sm:$0xff]
        %v1029 = vld [vmem:[%s1 + $0x5b8] sm:$0xff]
        %v1030 = vld [vmem:[%s1 + $0x5c0] sm:$0xff]
        %v1031 = vld [vmem:[%s1 + $0x5c8] sm:$0xff]
        %v1032 = vld [vmem:[%s1 + $0x5d0] sm:$0xff]
        %v1033 = vld [vmem:[%s1 + $0x5d8] sm:$0xff]
        %v1034 = vld [vmem:[%s1 + $0x5e0] sm:$0xff]
        %v1035 = vld [vmem:[%s1 + $0x5e8] sm:$0xff]
        %v1036 = vld [vmem:[%s1 + $0x5f0] sm:$0xff]
        %v1037 = vld [vmem:[%s1 + $0x5f8] sm:$0xff]
        %v1038 = vld [vmem:[%s1 + $0x600] sm:$0xff]
        %v1039 = vld [vmem:[%s1 + $0x608] sm:$0xff]
        %v1040 = vld [vmem:[%s1 + $0x610] sm:$0xff]
        %v1041 = vld [vmem:[%s1 + $0x618] sm:$0xff]
        %v1042 = vld [vmem:[%s1 + $0x620] sm:$0xff]
        %v1043 = vld [vmem:[%s1 + $0x628] sm:$0xff]
        %v1044 = vld [vmem:[%s1 + $0x630] sm:$0xff]
        %v1045 = vld [vmem:[%s1 + $0x638] sm:$0xff]
        %v1046 = vld [vmem:[%s1 + $0x640] sm:$0xff]
        %v1047 = vld [vmem:[%s1 + $0x648] sm:$0xff]
        %v1048 = vld [vmem:[%s1 + $0x650] sm:$0xff]
        %v1049 = vld [vmem:[%s1 + $0x658] sm:$0xff]
        %v1050 = vld [vmem:[%s1 + $0x660] sm:$0xff]
        %v1051 = vld [vmem:[%s1 + $0x668] sm:$0xff]
        %v1052 = vld [vmem:[%s1 + $0x670] sm:$0xff]
        %v1053 = vld [vmem:[%s1 + $0x678] sm:$0xff]
        %v1054 = vld [vmem:[%s1 + $0x680] sm:$0xff]
        %v1055 = vld [vmem:[%s1 + $0x688] sm:$0xff]
        %v1056 = vld [vmem:[%s1 + $0x690] sm:$0xff]
        %v1057 = vld [vmem:[%s1 + $0x698] sm:$0xff]
        %v1058 = vld [vmem:[%s1 + $0x6a0] sm:$0xff]
        %v1059 = vld [vmem:[%s1 + $0x6a8] sm:$0xff]
        %v1060 = vld [vmem:[%s1 + $0x6b0] sm:$0xff]
        %v1061 = vld [vmem:[%s1 + $0x6b8] sm:$0xff]
        %v1062 = vld [vmem:[%s1 + $0x6c0] sm:$0xff]
        %v1063 = vld [vmem:[%s1 + $0x6c8] sm:$0xff]
        %v1064 = vld [vmem:[%s1 + $0x6d0] sm:$0xff]
        %v1065 = vld [vmem:[%s1 + $0x6d8] sm:$0xff]
        %v1066 = vld [vmem:[%s1 + $0x6e0] sm:$0xff]
        %v1067 = vld [vmem:[%s1 + $0x6e8] sm:$0xff]
        %v1068 = vld [vmem:[%s1 + $0x6f0] sm:$0xff]
        %v1069 = vld [vmem:[%s1 + $0x6f8] sm:$0xff]
        %v1070 = vld [vmem:[%s1 + $0x700] sm:$0xff]
        %v1071 = vld [vmem:[%s1 + $0x708] sm:$0xff]
        %v1072 = vld [vmem:[%s1 + $0x710] sm:$0xff]
        %v1073 = vld [vmem:[%s1 + $0x718] sm:$0xff]
        %v1074 = vld [vmem:[%s1 + $0x720] sm:$0xff]
        %v1075 = vld [vmem:[%s1 + $0x728] sm:$0xff]
        %v1076 = vld [vmem:[%s1 + $0x730] sm:$0xff]
        %v1077 = vld [vmem:[%s1 + $0x738] sm:$0xff]
        %v1078 = vld [vmem:[%s1 + $0x740] sm:$0xff]
        %v1079 = vld [vmem:[%s1 + $0x748] sm:$0xff]
        %v1080 = vld [vmem:[%s1 + $0x750] sm:$0xff]
        %v1081 = vld [vmem:[%s1 + $0x758] sm:$0xff]
        %v1082 = vld [vmem:[%s1 + $0x760] sm:$0xff]
        %v1083 = vld [vmem:[%s1 + $0x768] sm:$0xff]
        %v1084 = vld [vmem:[%s1 + $0x770] sm:$0xff]
        %v1085 = vld [vmem:[%s1 + $0x778] sm:$0xff]
        %v1086 = vld [vmem:[%s1 + $0x780] sm:$0xff]
        %v1087 = vld [vmem:[%s1 + $0x788] sm:$0xff]
        %v1088 = vld [vmem:[%s1 + $0x790] sm:$0xff]
        %v1089 = vld [vmem:[%s1 + $0x798] sm:$0xff]
        %v1090 = vld [vmem:[%s1 + $0x7a0] sm:$0xff]
        %v1091 = vld [vmem:[%s1 + $0x7a8] sm:$0xff]
        %v1092 = vld [vmem:[%s1 + $0x7b0] sm:$0xff]
        %v1093 = vld [vmem:[%s1 + $0x7b8] sm:$0xff]
        %v1094 = vld [vmem:[%s1 + $0x7c0] sm:$0xff]
        %v1095 = vld [vmem:[%s1 + $0x7c8] sm:$0xff]
        %v1096 = vld [vmem:[%s1 + $0x7d0] sm:$0xff]
        %v1097 = vld [vmem:[%s1 + $0x7d8] sm:$0xff]
        %v1098 = vld [vmem:[%s1 + $0x7e0] sm:$0xff]
        %v1099 = vld [vmem:[%s1 + $0x7e8] sm:$0xff]
        %v1100 = vld [vmem:[%s1 + $0x7f0] sm:$0xff]
        %v1101 = vld [vmem:[%s1 + $0x7f8] sm:$0xff]
        %v1102 = vld [vmem:[%s1 + $0x800] sm:$0xff]
        %v1103 = vld [vmem:[%s1 + $0x808] sm:$0xff]
        %v1104 = vld [vmem:[%s1 + $0x810] sm:$0xff]
        %v1105 = vld [vmem:[%s1 + $0x818] sm:$0xff]
        %v1106 = vld [vmem:[%s1 + $0x820] sm:$0xff]
        %v1107 = vld [vmem:[%s1 + $0x828] sm:$0xff]
        %v1108 = vld [vmem:[%s1 + $0x830] sm:$0xff]
        %v1109 = vld [vmem:[%s1 + $0x838] sm:$0xff]
        %v1110 = vld [vmem:[%s1 + $0x840] sm:$0xff]
        %v1111 = vld [vmem:[%s1 + $0x848] sm:$0xff]
        %v1112 = vld [vmem:[%s1 + $0x850] sm:$0xff]
        %v1113 = vld [vmem:[%s1 + $0x858] sm:$0xff]
        %v1114 = vld [vmem:[%s1 + $0x860] sm:$0xff]
        %v1115 = vld [vmem:[%s1 + $0x868] sm:$0xff]
        %v1116 = vld [vmem:[%s1 + $0x870] sm:$0xff]
        %v1117 = vld [vmem:[%s1 + $0x878] sm:$0xff]
        %v1118 = vld [vmem:[%s1 + $0x880] sm:$0xff]
        %v1119 = vld [vmem:[%s1 + $0x888] sm:$0xff]
        %v1120 = vld [vmem:[%s1 + $0x890] sm:$0xff]
        %v1121 = vld [vmem:[%s1 + $0x898] sm:$0xff]
        %v1122 = vld [vmem:[%s1 + $0x8a0] sm:$0xff]
        %v1123 = vld [vmem:[%s1 + $0x8a8] sm:$0xff]
        %v1124 = vld [vmem:[%s1 + $0x8b0] sm:$0xff]
        %v1125 = vld [vmem:[%s1 + $0x8b8] sm:$0xff]
        %v1126 = vld [vmem:[%s1 + $0x8c0] sm:$0xff]
        %v1127 = vld [vmem:[%s1 + $0x8c8] sm:$0xff]
        %v1128 = vld [vmem:[%s1 + $0x8d0] sm:$0xff]
        %v1129 = vld [vmem:[%s1 + $0x8d8] sm:$0xff]
        %v1130 = vld [vmem:[%s1 + $0x8e0] sm:$0xff]
        %v1131 = vld [vmem:[%s1 + $0x8e8] sm:$0xff]
        %v1132 = vld [vmem:[%s1 + $0x8f0] sm:$0xff]
        %v1133 = vld [vmem:[%s1 + $0x8f8] sm:$0xff]
        %v1134 = vld [vmem:[%s1 + $0x900] sm:$0xff]
        %v1135 = vld [vmem:[%s1 + $0x908] sm:$0xff]
        %v1136 = vld [vmem:[%s1 + $0x910] sm:$0xff]
        %v1137 = vld [vmem:[%s1 + $0x918] sm:$0xff]
        %v1138 = vld [vmem:[%s1 + $0x920] sm:$0xff]
        %v1139 = vld [vmem:[%s1 + $0x928] sm:$0xff]
        %v1140 = vld [vmem:[%s1 + $0x930] sm:$0xff]
        %v1141 = vld [vmem:[%s1 + $0x938] sm:$0xff]
        %v1142 = vld [vmem:[%s1 + $0x940] sm:$0xff]
        %v1143 = vld [vmem:[%s1 + $0x948] sm:$0xff]
        %v1144 = vld [vmem:[%s1 + $0x950] sm:$0xff]
        %v1145 = vld [vmem:[%s1 + $0x958] sm:$0xff]
        %v1146 = vld [vmem:[%s1 + $0x960] sm:$0xff]
        %v1147 = vld [vmem:[%s1 + $0x968] sm:$0xff]
        %v1148 = vld [vmem:[%s1 + $0x970] sm:$0xff]
        %v1149 = vld [vmem:[%s1 + $0x978] sm:$0xff]
        %v1150 = vld [vmem:[%s1 + $0x980] sm:$0xff]
        %v1151 = vld [vmem:[%s1 + $0x988] sm:$0xff]
        %v1152 = vld [vmem:[%s1 + $0x990] sm:$0xff]
        %v1153 = vld [vmem:[%s1 + $0x998] sm:$0xff]
        %v1154 = vld [vmem:[%s1 + $0x9a0] sm:$0xff]
        %v1155 = vld [vmem:[%s1 + $0x9a8] sm:$0xff]
        %v1156 = vld [vmem:[%s1 + $0x9b0] sm:$0xff]
        %v1157 = vld [vmem:[%s1 + $0x9b8] sm:$0xff]
        %v1158 = vld [vmem:[%s1 + $0x9c0] sm:$0xff]
        %v1159 = vld [vmem:[%s1 + $0x9c8] sm:$0xff]
        %v1160 = vld [vmem:[%s1 + $0x9d0] sm:$0xff]
        %v1161 = vld [vmem:[%s1 + $0x9d8] sm:$0xff]
        %v1162 = vld [vmem:[%s1 + $0x9e0] sm:$0xff]
        %v1163 = vld [vmem:[%s1 + $0x9e8] sm:$0xff]
        %v1164 = vld [vmem:[%s1 + $0x9f0] sm:$0xff]
        %v1165 = vld [vmem:[%s1 + $0x9f8] sm:$0xff]
        %v1166 = vld [vmem:[%s1 + $0xa00] sm:$0xff]
        %v1167 = vld [vmem:[%s1 + $0xa08] sm:$0xff]
        %v1168 = vld [vmem:[%s1 + $0xa10] sm:$0xff]
        %v1169 = vld [vmem:[%s1 + $0xa18] sm:$0xff]
        %v1170 = vld [vmem:[%s1 + $0xa20] sm:$0xff]
        %v1171 = vld [vmem:[%s1 + $0xa28] sm:$0xff]
        %v1172 = vld [vmem:[%s1 + $0xa30] sm:$0xff]
        %v1173 = vld [vmem:[%s1 + $0xa38] sm:$0xff]
        %v1174 = vld [vmem:[%s1 + $0xa40] sm:$0xff]
        %v1175 = vld [vmem:[%s1 + $0xa48] sm:$0xff]
        %v1176 = vld [vmem:[%s1 + $0xa50] sm:$0xff]
        %v1177 = vld [vmem:[%s1 + $0xa58] sm:$0xff]
        %v1178 = vld [vmem:[%s1 + $0xa60] sm:$0xff]
        %v1179 = vld [vmem:[%s1 + $0xa68] sm:$0xff]
        %v1180 = vld [vmem:[%s1 + $0xa70] sm:$0xff]
        %v1181 = vld [vmem:[%s1 + $0xa78] sm:$0xff]
        %v1182 = vld [vmem:[%s1 + $0xa80] sm:$0xff]
        %v1183 = vld [vmem:[%s1 + $0xa88] sm:$0xff]
        %v1184 = vld [vmem:[%s1 + $0xa90] sm:$0xff]
        %v1185 = vld [vmem:[%s1 + $0xa98] sm:$0xff]
        %v1186 = vld [vmem:[%s1 + $0xaa0] sm:$0xff]
        %v1187 = vld [vmem:[%s1 + $0xaa8] sm:$0xff]
        %v1188 = vld [vmem:[%s1 + $0xab0] sm:$0xff]
        %v1189 = vld [vmem:[%s1 + $0xab8] sm:$0xff]
        %v1190 = vld [vmem:[%s1 + $0xac0] sm:$0xff]
        %v1191 = vld [vmem:[%s1 + $0xac8] sm:$0xff]
        %v1192 = vld [vmem:[%s1 + $0xad0] sm:$0xff]
        %v1193 = vld [vmem:[%s1 + $0xad8] sm:$0xff]
        %v1194 = vld [vmem:[%s1 + $0xae0] sm:$0xff]
        %v1195 = vld [vmem:[%s1 + $0xae8] sm:$0xff]
        %v1196 = vld [vmem:[%s1 + $0xaf0] sm:$0xff]
        %v1197 = vld [vmem:[%s1 + $0xaf8] sm:$0xff]
        %v1198 = vld [vmem:[%s1 + $0xb00] sm:$0xff]
        %v1199 = vld [vmem:[%s1 + $0xb08] sm:$0xff]
        %v1200 = vld [vmem:[%s1 + $0xb10] sm:$0xff]
        %v1201 = vld [vmem:[%s1 + $0xb18] sm:$0xff]
        %v1202 = vld [vmem:[%s1 + $0xb20] sm:$0xff]
        %v1203 = vld [vmem:[%s1 + $0xb28] sm:$0xff]
        %v1204 = vld [vmem:[%s1 + $0xb30] sm:$0xff]
        %v1205 = vld [vmem:[%s1 + $0xb38] sm:$0xff]
        %v1206 = vld [vmem:[%s1 + $0xb40] sm:$0xff]
        %v1207 = vld [vmem:[%s1 + $0xb48] sm:$0xff]
        %v1208 = vld [vmem:[%s1 + $0xb50] sm:$0xff]
        %v1209 = vld [vmem:[%s1 + $0xb58] sm:$0xff]
        %v1210 = vld [vmem:[%s1 + $0xb60] sm:$0xff]
        %v1211 = vld [vmem:[%s1 + $0xb68] sm:$0xff]
        %v1212 = vld [vmem:[%s1 + $0xb70] sm:$0xff]
        %v1213 = vld [vmem:[%s1 + $0xb78] sm:$0xff]
        %v1214 = vld [vmem:[%s1 + $0xb80] sm:$0xff]
        %v1215 = vld [vmem:[%s1 + $0xb88] sm:$0xff]
        %v1216 = vld [vmem:[%s1 + $0xb90] sm:$0xff]
        %v1217 = vld [vmem:[%s1 + $0xb98] sm:$0xff]
        %v1218 = vld [vmem:[%s1 + $0xba0] sm:$0xff]
        %v1219 = vld [vmem:[%s1 + $0xba8] sm:$0xff]
        %v1220 = vld [vmem:[%s1 + $0xbb0] sm:$0xff]
        %v1221 = vld [vmem:[%s1 + $0xbb8] sm:$0xff]
        %v1222 = vld [vmem:[%s1 + $0xbc0] sm:$0xff]
        %v1223 = vld [vmem:[%s1 + $0xbc8] sm:$0xff]
        %v1224 = vld [vmem:[%s1 + $0xbd0] sm:$0xff]
        %v1225 = vld [vmem:[%s1 + $0xbd8] sm:$0xff]
        %v1226 = vld [vmem:[%s1 + $0xbe0] sm:$0xff]
        %v1227 = vld [vmem:[%s1 + $0xbe8] sm:$0xff]
        %v1228 = vld [vmem:[%s1 + $0xbf0] sm:$0xff]
        %v1229 = vld [vmem:[%s1 + $0xbf8] sm:$0xff]
        %v1230 = vld [vmem:[%s1 + $0xc00] sm:$0xff]
        %v1231 = vld [vmem:[%s1 + $0xc08] sm:$0xff]
        %v1232 = vld [vmem:[%s1 + $0xc10] sm:$0xff]
        %v1233 = vld [vmem:[%s1 + $0xc18] sm:$0xff]
        %v1234 = vld [vmem:[%s1 + $0xc20] sm:$0xff]
        %v1235 = vld [vmem:[%s1 + $0xc28] sm:$0xff]
        %v1236 = vld [vmem:[%s1 + $0xc30] sm:$0xff]
        %v1237 = vld [vmem:[%s1 + $0xc38] sm:$0xff]
        %v1238 = vld [vmem:[%s1 + $0xc40] sm:$0xff]
        %v1239 = vld [vmem:[%s1 + $0xc48] sm:$0xff]
        %v1240 = vld [vmem:[%s1 + $0xc50] sm:$0xff]
        %v1241 = vld [vmem:[%s1 + $0xc58] sm:$0xff]
        %v1242 = vld [vmem:[%s1 + $0xc60] sm:$0xff]
        %v1243 = vld [vmem:[%s1 + $0xc68] sm:$0xff]
        %v1244 = vld [vmem:[%s1 + $0xc70] sm:$0xff]
        %v1245 = vld [vmem:[%s1 + $0xc78] sm:$0xff]
        %v1246 = vld [vmem:[%s1 + $0xc80] sm:$0xff]
        %v1247 = vld [vmem:[%s1 + $0xc88] sm:$0xff]
        %v1248 = vld [vmem:[%s1 + $0xc90] sm:$0xff]
        %v1249 = vld [vmem:[%s1 + $0xc98] sm:$0xff]
        %v1250 = vld [vmem:[%s1 + $0xca0] sm:$0xff]
        %v1251 = vld [vmem:[%s1 + $0xca8] sm:$0xff]
        %v1252 = vld [vmem:[%s1 + $0xcb0] sm:$0xff]
        %v1253 = vld [vmem:[%s1 + $0xcb8] sm:$0xff]
        %v1254 = vld [vmem:[%s1 + $0xcc0] sm:$0xff]
        %v1255 = vld [vmem:[%s1 + $0xcc8] sm:$0xff]
        %v1256 = vld [vmem:[%s1 + $0xcd0] sm:$0xff]
        %v1257 = vld [vmem:[%s1 + $0xcd8] sm:$0xff]
        %v1258 = vld [vmem:[%s1 + $0xce0] sm:$0xff]
        %v1259 = vld [vmem:[%s1 + $0xce8] sm:$0xff]
        %v1260 = vld [vmem:[%s1 + $0xcf0] sm:$0xff]
        %v1261 = vld [vmem:[%s1 + $0xcf8] sm:$0xff]
        %v1262 = vld [vmem:[%s1 + $0xd00] sm:$0xff]
        %v1263 = vld [vmem:[%s1 + $0xd08] sm:$0xff]
        %v1264 = vld [vmem:[%s1 + $0xd10] sm:$0xff]
        %v1265 = vld [vmem:[%s1 + $0xd18] sm:$0xff]
        %v1266 = vld [vmem:[%s1 + $0xd20] sm:$0xff]
        %v1267 = vld [vmem:[%s1 + $0xd28] sm:$0xff]
        %v1268 = vld [vmem:[%s1 + $0xd30] sm:$0xff]
        %v1269 = vld [vmem:[%s1 + $0xd38] sm:$0xff]
        %v1270 = vld [vmem:[%s1 + $0xd40] sm:$0xff]
        %v1271 = vld [vmem:[%s1 + $0xd48] sm:$0xff]
        %v1272 = vld [vmem:[%s1 + $0xd50] sm:$0xff]
        %v1273 = vld [vmem:[%s1 + $0xd58] sm:$0xff]
        %v1274 = vld [vmem:[%s1 + $0xd60] sm:$0xff]
        %v1275 = vld [vmem:[%s1 + $0xd68] sm:$0xff]
        %v1276 = vld [vmem:[%s1 + $0xd70] sm:$0xff]
        %v1277 = vld [vmem:[%s1 + $0xd78] sm:$0xff]
        %v1278 = vld [vmem:[%s1 + $0xd80] sm:$0xff]
        %v1279 = vld [vmem:[%s1 + $0xd88] sm:$0xff]
        %v1280 = vld [vmem:[%s1 + $0xd90] sm:$0xff]
        %v1281 = vld [vmem:[%s1 + $0xd98] sm:$0xff]
        %v1282 = vld [vmem:[%s1 + $0xda0] sm:$0xff]
        %v1283 = vld [vmem:[%s1 + $0xda8] sm:$0xff]
        %v1284 = vld [vmem:[%s1 + $0xdb0] sm:$0xff]
        %v1285 = vld [vmem:[%s1 + $0xdb8] sm:$0xff]
        %v1286 = vld [vmem:[%s1 + $0xdc0] sm:$0xff]
        %v1287 = vld [vmem:[%s1 + $0xdc8] sm:$0xff]
        %v1288 = vld [vmem:[%s1 + $0xdd0] sm:$0xff]
        %v1289 = vld [vmem:[%s1 + $0xdd8] sm:$0xff]
        %v1290 = vld [vmem:[%s1 + $0xde0] sm:$0xff]
        %v1291 = vld [vmem:[%s1 + $0xde8] sm:$0xff]
        %v1292 = vld [vmem:[%s1 + $0xdf0] sm:$0xff]
        %v1293 = vld [vmem:[%s1 + $0xdf8] sm:$0xff]
        %v1294 = vld [vmem:[%s1 + $0xe00] sm:$0xff]
        %v1295 = vld [vmem:[%s1 + $0xe08] sm:$0xff]
        %v1296 = vld [vmem:[%s1 + $0xe10] sm:$0xff]
        %v1297 = vld [vmem:[%s1 + $0xe18] sm:$0xff]
        %v1298 = vld [vmem:[%s1 + $0xe20] sm:$0xff]
        %v1299 = vld [vmem:[%s1 + $0xe28] sm:$0xff]
        %v1300 = vld [vmem:[%s1 + $0xe30] sm:$0xff]
        %v1301 = vld [vmem:[%s1 + $0xe38] sm:$0xff]
        %v1302 = vld [vmem:[%s1 + $0xe40] sm:$0xff]
        %v1303 = vld [vmem:[%s1 + $0xe48] sm:$0xff]
        %v1304 = vld [vmem:[%s1 + $0xe50] sm:$0xff]
        %v1305 = vld [vmem:[%s1 + $0xe58] sm:$0xff]
        %v1306 = vld [vmem:[%s1 + $0xe60] sm:$0xff]
        %v1307 = vld [vmem:[%s1 + $0xe68] sm:$0xff]
        %v1308 = vld [vmem:[%s1 + $0xe70] sm:$0xff]
        %v1309 = vld [vmem:[%s1 + $0xe78] sm:$0xff]
        %v1310 = vld [vmem:[%s1 + $0xe80] sm:$0xff]
        %v1311 = vld [vmem:[%s1 + $0xe88] sm:$0xff]
        %v1312 = vld [vmem:[%s1 + $0xe90] sm:$0xff]
        %v1313 = vld [vmem:[%s1 + $0xe98] sm:$0xff]
        %v1314 = vld [vmem:[%s1 + $0xea0] sm:$0xff]
        %v1315 = vld [vmem:[%s1 + $0xea8] sm:$0xff]
        %v1316 = vld [vmem:[%s1 + $0xeb0] sm:$0xff]
        %v1317 = vld [vmem:[%s1 + $0xeb8] sm:$0xff]
        %v1318 = vld [vmem:[%s1 + $0xec0] sm:$0xff]
        %v1319 = vld [vmem:[%s1 + $0xec8] sm:$0xff]
        %v1320 = vld [vmem:[%s1 + $0xed0] sm:$0xff]
        %v1321 = vld [vmem:[%s1 + $0xed8] sm:$0xff]
        %v1322 = vld [vmem:[%s1 + $0xee0] sm:$0xff]
        %v1323 = vld [vmem:[%s1 + $0xee8] sm:$0xff]
        %v1324 = vld [vmem:[%s1 + $0xef0] sm:$0xff]
        %v1325 = vld [vmem:[%s1 + $0xef8] sm:$0xff]
        %v1326 = vld [vmem:[%s1 + $0xf00] sm:$0xff]
        %v1327 = vld [vmem:[%s1 + $0xf08] sm:$0xff]
        %v1328 = vld [vmem:[%s1 + $0xf10] sm:$0xff]
        %v1329 = vld [vmem:[%s1 + $0xf18] sm:$0xff]
        %v1330 = vld [vmem:[%s1 + $0xf20] sm:$0xff]
        %v1331 = vld [vmem:[%s1 + $0xf28] sm:$0xff]
        %v1332 = vld [vmem:[%s1 + $0xf30] sm:$0xff]
        %v1333 = vld [vmem:[%s1 + $0xf38] sm:$0xff]
        %v1334 = vld [vmem:[%s1 + $0xf40] sm:$0xff]
        %v1335 = vld [vmem:[%s1 + $0xf48] sm:$0xff]
        %v1336 = vld [vmem:[%s1 + $0xf50] sm:$0xff]
        %v1337 = vld [vmem:[%s1 + $0xf58] sm:$0xff]
        %v1338 = vld [vmem:[%s1 + $0xf60] sm:$0xff]
        %v1339 = vld [vmem:[%s1 + $0xf68] sm:$0xff]
        %v1340 = vld [vmem:[%s1 + $0xf70] sm:$0xff]
        %v1341 = vld [vmem:[%s1 + $0xf78] sm:$0xff]
        %v1342 = vld [vmem:[%s1 + $0xf80] sm:$0xff]
        %v1343 = vld [vmem:[%s1 + $0xf88] sm:$0xff]
        %v1344 = vld [vmem:[%s1 + $0xf90] sm:$0xff]
        %v1345 = vld [vmem:[%s1 + $0xf98] sm:$0xff]
        %v1346 = vld [vmem:[%s1 + $0xfa0] sm:$0xff]
        %v1347 = vld [vmem:[%s1 + $0xfa8] sm:$0xff]
        %v1348 = vld [vmem:[%s1 + $0xfb0] sm:$0xff]
        %v1349 = vld [vmem:[%s1 + $0xfb8] sm:$0xff]
        %v1350 = vld [vmem:[%s1 + $0xfc0] sm:$0xff]
        %v1351 = vld [vmem:[%s1 + $0xfc8] sm:$0xff]
        %v1352 = vld [vmem:[%s1 + $0xfd0] sm:$0xff]
        %v1353 = vld [vmem:[%s1 + $0xfd8] sm:$0xff]
        %v1354 = vld [vmem:[%s1 + $0xfe0] sm:$0xff]
        %v1355 = vld [vmem:[%s1 + $0xfe8] sm:$0xff]
        %v1356 = vld [vmem:[%s1 + $0xff0] sm:$0xff]
        %v1357 = vld [vmem:[%s1 + $0xff8] sm:$0xff]
        %v1358 = vld [vmem:[%s1 + $0x1000] sm:$0xff]
        %v1359 = vld [vmem:[%s1 + $0x1008] sm:$0xff]
        %v1360 = vld [vmem:[%s1 + $0x1010] sm:$0xff]
        %v1361 = vld [vmem:[%s1 + $0x1018] sm:$0xff]
        %v1362 = vld [vmem:[%s1 + $0x1020] sm:$0xff]
        %v1363 = vld [vmem:[%s1 + $0x1028] sm:$0xff]
        %v1364 = vld [vmem:[%s1 + $0x1030] sm:$0xff]
        %v1365 = vld [vmem:[%s1 + $0x1038] sm:$0xff]
        %v1366 = vld [vmem:[%s1 + $0x1040] sm:$0xff]
        %v1367 = vld [vmem:[%s1 + $0x1048] sm:$0xff]
        %v1368 = vld [vmem:[%s1 + $0x1050] sm:$0xff]
        %v1369 = vld [vmem:[%s1 + $0x1058] sm:$0xff]
        %v1370 = vld [vmem:[%s1 + $0x1060] sm:$0xff]
        %v1371 = vld [vmem:[%s1 + $0x1068] sm:$0xff]
        %v1372 = vld [vmem:[%s1 + $0x1070] sm:$0xff]
        %v1373 = vld [vmem:[%s1 + $0x1078] sm:$0xff]
        %v1374 = vld [vmem:[%s1 + $0x1080] sm:$0xff]
        %v1375 = vld [vmem:[%s1 + $0x1088] sm:$0xff]
        %v1376 = vld [vmem:[%s1 + $0x1090] sm:$0xff]
        %v1377 = vld [vmem:[%s1 + $0x1098] sm:$0xff]
        %v1378 = vld [vmem:[%s1 + $0x10a0] sm:$0xff]
        %v1379 = vld [vmem:[%s1 + $0x10a8] sm:$0xff]
        %v1380 = vld [vmem:[%s1 + $0x10b0] sm:$0xff]
        %v1381 = vld [vmem:[%s1 + $0x10b8] sm:$0xff]
        %v1382 = vld [vmem:[%s1 + $0x10c0] sm:$0xff]
        %v1383 = vld [vmem:[%s1 + $0x10c8] sm:$0xff]
        %v1384 = vld [vmem:[%s1 + $0x10d0] sm:$0xff]
        %v1385 = vld [vmem:[%s1 + $0x10d8] sm:$0xff]
        %v1386 = vld [vmem:[%s1 + $0x10e0] sm:$0xff]
        %v1387 = vld [vmem:[%s1 + $0x10e8] sm:$0xff]
        %v1388 = vld [vmem:[%s1 + $0x10f0] sm:$0xff]
        %v1389 = vld [vmem:[%s1 + $0x10f8] sm:$0xff]
        %v1390 = vld [vmem:[%s1 + $0x1100] sm:$0xff]
        %v1391 = vld [vmem:[%s1 + $0x1108] sm:$0xff]
        %v1392 = vld [vmem:[%s1 + $0x1110] sm:$0xff]
        %v1393 = vld [vmem:[%s1 + $0x1118] sm:$0xff]
        %v1394 = vld [vmem:[%s1 + $0x1120] sm:$0xff]
        %v1395 = vld [vmem:[%s1 + $0x1128] sm:$0xff]
        %v1396 = vld [vmem:[%s1 + $0x1130] sm:$0xff]
        %v1397 = vld [vmem:[%s1 + $0x1138] sm:$0xff]
        %v1398 = vld [vmem:[%s1 + $0x1140] sm:$0xff]
        %v1399 = vld [vmem:[%s1 + $0x1148] sm:$0xff]
        %v1400 = vld [vmem:[%s1 + $0x1150] sm:$0xff]
        %v1401 = vld [vmem:[%s1 + $0x1158] sm:$0xff]
        %v1402 = vld [vmem:[%s1 + $0x1160] sm:$0xff]
        %v1403 = vld [vmem:[%s1 + $0x1168] sm:$0xff]
        %v1404 = vld [vmem:[%s1 + $0x1170] sm:$0xff]
        %v1405 = vld [vmem:[%s1 + $0x1178] sm:$0xff]
        %v1406 = vld [vmem:[%s1 + $0x1180] sm:$0xff]
        %v1407 = vld [vmem:[%s1 + $0x1188] sm:$0xff]
        %v1408 = vld [vmem:[%s1 + $0x1190] sm:$0xff]
        %v1409 = vld [vmem:[%s1 + $0x1198] sm:$0xff]
        %v1410 = vld [vmem:[%s1 + $0x11a0] sm:$0xff]
        %v1411 = vld [vmem:[%s1 + $0x11a8] sm:$0xff]
        %v1412 = vld [vmem:[%s1 + $0x11b0] sm:$0xff]
        %v1413 = vld [vmem:[%s1 + $0x11b8] sm:$0xff]
        %v1414 = vld [vmem:[%s1 + $0x11c0] sm:$0xff]
        %v1415 = vld [vmem:[%s1 + $0x11c8] sm:$0xff]
        %v1416 = vld [vmem:[%s1 + $0x11d0] sm:$0xff]
        %v1417 = vld [vmem:[%s1 + $0x11d8] sm:$0xff]
        %v1418 = vld [vmem:[%s1 + $0x11e0] sm:$0xff]
        %v1419 = vld [vmem:[%s1 + $0x11e8] sm:$0xff]
        %v1420 = vld [vmem:[%s1 + $0x11f0] sm:$0xff]
        %v1421 = vld [vmem:[%s1 + $0x11f8] sm:$0xff]
        %v1422 = vld [vmem:[%s1 + $0x1200] sm:$0xff]
        %v1423 = vld [vmem:[%s1 + $0x1208] sm:$0xff]
        %v1424 = vld [vmem:[%s1 + $0x1210] sm:$0xff]
        %v1425 = vld [vmem:[%s1 + $0x1218] sm:$0xff]
        %v1426 = vld [vmem:[%s1 + $0x1220] sm:$0xff]
        %v1427 = vld [vmem:[%s1 + $0x1228] sm:$0xff]
        %v1428 = vld [vmem:[%s1 + $0x1230] sm:$0xff]
        %v1429 = vld [vmem:[%s1 + $0x1238] sm:$0xff]
        %v1430 = vld [vmem:[%s1 + $0x1240] sm:$0xff]
        %v1431 = vld [vmem:[%s1 + $0x1248] sm:$0xff]
        %v1432 = vld [vmem:[%s1 + $0x1250] sm:$0xff]
        %v1433 = vld [vmem:[%s1 + $0x1258] sm:$0xff]
        %v1434 = vld [vmem:[%s1 + $0x1260] sm:$0xff]
        %v1435 = vld [vmem:[%s1 + $0x1268] sm:$0xff]
        %v1436 = vld [vmem:[%s1 + $0x1270] sm:$0xff]
        %v1437 = vld [vmem:[%s1 + $0x1278] sm:$0xff]
        %v1438 = vld [vmem:[%s1 + $0x1280] sm:$0xff]
        %v1439 = vld [vmem:[%s1 + $0x1288] sm:$0xff]
        %v1440 = vld [vmem:[%s1 + $0x1290] sm:$0xff]
        %v1441 = vld [vmem:[%s1 + $0x1298] sm:$0xff]
        %v1442 = vld [vmem:[%s1 + $0x12a0] sm:$0xff]
        %v1443 = vld [vmem:[%s1 + $0x12a8] sm:$0xff]
        %v1444 = vld [vmem:[%s1 + $0x12b0] sm:$0xff]
        %v1445 = vld [vmem:[%s1 + $0x12b8] sm:$0xff]
        %v1446 = vld [vmem:[%s2] sm:$0x1]
        %v1448 = vlaneseq
        %v1449 = vshrl.u32 %v1448, 7
        %v1450 = vsub.s32 0, %v1449
        %v1451 = vrot.slane %v1446, %v1450
        %vm1453 = vcmask 523264
        %v1455 = vsel %vm1453, %v237, 0
        %v1458 = vsel %vm1453, %v275, 0
        %v1461 = vsel %vm1453, %v313, 0
        %v1464 = vsel %vm1453, %v351, 0
        %v1467 = vsel %vm1453, %v389, 0
        %v1470 = vsel %vm1453, %v427, 0
        %v1473 = vsel %vm1453, %v465, 0
        %v1476 = vsel %vm1453, %v503, 0
        %v1479 = vsel %vm1453, %v541, 0
        %v1482 = vsel %vm1453, %v579, 0
        %v1485 = vsel %vm1453, %v617, 0
        %v1488 = vsel %vm1453, %v655, 0
        %v1491 = vsel %vm1453, %v693, 0
        %v1494 = vsel %vm1453, %v731, 0
        %v1497 = vsel %vm1453, %v769, 0
        %v1500 = vsel %vm1453, %v807, 0
        %v1503 = vsel %vm1453, %v845, 0
        %1505 = vmatprep.subr.mxu0 0.0
        %1506 = vmatpush1.msra.mxu0 %v846
        %1507 = vmatprep.subr.mxu0 0.0
        %1508 = vmatpush1.msra.mxu0 %v847
        %1509 = vmatprep.subr.mxu0 0.0
        %1510 = vmatpush1.msra.mxu0 %v848
        %1511 = vmatprep.subr.mxu0 0.0
        %1512 = vmatpush1.msra.mxu0 %v849
        %1513 = vmatprep.subr.mxu0 0.0
        %1514 = vmatpush1.msra.mxu0 %v850
        %1515 = vmatprep.subr.mxu0 0.0
        %1516 = vmatpush1.msra.mxu0 %v851
        %1517 = vmatprep.subr.mxu0 0.0
        %1518 = vmatpush1.msra.mxu0 %v852
        %1519 = vmatprep.subr.mxu0 0.0
        %1520 = vmatpush1.msra.mxu0 %v853
        %1521 = vmatprep.subr.mxu0 0.0
        %1522 = vmatpush1.msra.mxu0 %v854
        %1523 = vmatprep.subr.mxu0 0.0
        %1524 = vmatpush1.msra.mxu0 %v855
        %1525 = vmatprep.subr.mxu0 0.0
        %1526 = vmatpush1.msra.mxu0 %v856
        %1527 = vmatprep.subr.mxu0 0.0
        %1528 = vmatpush1.msra.mxu0 %v857
        %1529 = vmatprep.subr.mxu0 0.0
        %1530 = vmatpush1.msra.mxu0 %v858
        %1531 = vmatprep.subr.mxu0 0.0
        %1532 = vmatpush1.msra.mxu0 %v859
        %1533 = vmatprep.subr.mxu0 0.0
        %1534 = vmatpush1.msra.mxu0 %v860
        %1535 = vmatprep.subr.mxu0 0.0
        %1536 = vmatpush1.msra.mxu0 %v861
        %1537 = vmatprep.subr.mxu0 0.0
        %1538 = vmatpush1.msra.mxu0 %v862
        %1539 = vmatprep.subr.mxu0 0.0
        %1540 = vmatpush1.msra.mxu0 %v863
        %1541 = vmatprep.subr.mxu0 0.0
        %1542 = vmatpush1.msra.mxu0 %v864
        %1543 = vmatprep.subr.mxu0 0.0
        %1544 = vmatpush1.msra.mxu0 %v865
        %1545 = vmatprep.subr.mxu0 0.0
        %1546 = vmatpush1.msra.mxu0 %v866
        %1547 = vmatprep.subr.mxu0 0.0
        %1548 = vmatpush1.msra.mxu0 %v867
        %1549 = vmatprep.subr.mxu0 0.0
        %1550 = vmatpush1.msra.mxu0 %v868
        %1551 = vmatprep.subr.mxu0 0.0
        %1552 = vmatpush1.msra.mxu0 %v869
        %1553 = vmatprep.subr.mxu0 0.0
        %1554 = vmatpush1.msra.mxu0 %v870
        %1555 = vmatprep.subr.mxu0 0.0
        %1556 = vmatpush1.msra.mxu0 %v871
        %1557 = vmatprep.subr.mxu0 0.0
        %1558 = vmatpush1.msra.mxu0 %v872
        %1559 = vmatprep.subr.mxu0 0.0
        %1560 = vmatpush1.msra.mxu0 %v873
        %1561 = vmatprep.subr.mxu0 0.0
        %1562 = vmatpush1.msra.mxu0 %v874
        %1563 = vmatprep.subr.mxu0 0.0
        %1564 = vmatpush1.msra.mxu0 %v875
        %1565 = vmatprep.subr.mxu0 0.0
        %1566 = vmatpush1.msra.mxu0 %v876
        %1567 = vmatprep.subr.mxu0 0.0
        %1568 = vmatpush1.msra.mxu0 %v877
        %1569 = vmatprep.mubr.f32.mxu0 %v201
        %1570 = vmatmul.mubr.f32.gmra.mrb[0].mxu0 %v200
        %v1571 = vpop.f32.mrb[0].mxu0
        %v1572 = vadd.f32 %v1451, %v1571
        %v1573 = vpop.f32.mrb[0].mxu0
        %1574 = vmatprep.mubr.f32.mxu0 %v239
        %1575 = vmatmul.mubr.f32.gmra.mrb[0].mxu0 %v238
        %v1576 = vpop.f32.mrb[0].mxu0
        %v1577 = vadd.f32 %v1451, %v1576
        %v1578 = vpop.f32.mrb[0].mxu0
        %1579 = vmatprep.mubr.f32.mxu0 %v277
        %1580 = vmatmul.mubr.f32.gmra.mrb[0].mxu0 %v276
        %v1581 = vpop.f32.mrb[0].mxu0
        %v1582 = vadd.f32 %v1451, %v1581
        %v1583 = vpop.f32.mrb[0].mxu0
        %1584 = vmatprep.mubr.f32.mxu0 %v315
        %1585 = vmatmul.mubr.f32.gmra.mrb[0].mxu0 %v314
        %v1586 = vpop.f32.mrb[0].mxu0
        %v1587 = vadd.f32 %v1451, %v1586
        %v1588 = vpop.f32.mrb[0].mxu0
        %1589 = vmatprep.mubr.f32.mxu0 %v353
        %1590 = vmatmul.mubr.f32.gmra.mrb[0].mxu0 %v352
        %v1591 = vpop.f32.mrb[0].mxu0
        %v1592 = vadd.f32 %v1451, %v1591
        %v1593 = vpop.f32.mrb[0].mxu0
        %1594 = vmatprep.mubr.f32.mxu0 %v391
        %1595 = vmatmul.mubr.f32.gmra.mrb[0].mxu0 %v390
        %v1596 = vpop.f32.mrb[0].mxu0
        %v1597 = vadd.f32 %v1451, %v1596
        %v1598 = vpop.f32.mrb[0].mxu0
        %1599 = vmatprep.mubr.f32.mxu0 %v429
        %1600 = vmatmul.mubr.f32.gmra.mrb[0].mxu0 %v428
        %v1601 = vpop.f32.mrb[0].mxu0
        %v1602 = vadd.f32 %v1451, %v1601
        %v1603 = vpop.f32.mrb[0].mxu0
        %1604 = vmatprep.mubr.f32.mxu0 %v467
        %1605 = vmatmul.mubr.f32.gmra.mrb[0].mxu0 %v466
        %v1606 = vpop.f32.mrb[0].mxu0
        %v1607 = vadd.f32 %v1451, %v1606
        %v1608 = vpop.f32.mrb[0].mxu0
        %1609 = vmatprep.mubr.f32.mxu0 %v505
        %1610 = vmatmul.mubr.f32.gmra.mrb[0].mxu0 %v504
        %v1611 = vpop.f32.mrb[0].mxu0
        %v1612 = vadd.f32 %v1451, %v1611
        %v1613 = vpop.f32.mrb[0].mxu0
        %1614 = vmatprep.mubr.f32.mxu0 %v543
        %1615 = vmatmul.mubr.f32.gmra.mrb[0].mxu0 %v542
        %v1616 = vpop.f32.mrb[0].mxu0
        %v1617 = vadd.f32 %v1451, %v1616
        %v1618 = vpop.f32.mrb[0].mxu0
        %1619 = vmatprep.mubr.f32.mxu0 %v581
        %1620 = vmatmul.mubr.f32.gmra.mrb[0].mxu0 %v580
        %v1621 = vpop.f32.mrb[0].mxu0
        %v1622 = vadd.f32 %v1451, %v1621
        %v1623 = vpop.f32.mrb[0].mxu0
        %1624 = vmatprep.mubr.f32.mxu0 %v619
        %1625 = vmatmul.mubr.f32.gmra.mrb[0].mxu0 %v618
        %v1626 = vpop.f32.mrb[0].mxu0
        %v1627 = vadd.f32 %v1451, %v1626
        %v1628 = vpop.f32.mrb[0].mxu0
        %1629 = vmatprep.mubr.f32.mxu0 %v657
        %1630 = vmatmul.mubr.f32.gmra.mrb[0].mxu0 %v656
        %v1631 = vpop.f32.mrb[0].mxu0
        %v1632 = vadd.f32 %v1451, %v1631
        %v1633 = vpop.f32.mrb[0].mxu0
        %1634 = vmatprep.mubr.f32.mxu0 %v695
        %1635 = vmatmul.mubr.f32.gmra.mrb[0].mxu0 %v694
        %v1636 = vpop.f32.mrb[0].mxu0
        %v1637 = vadd.f32 %v1451, %v1636
        %v1638 = vpop.f32.mrb[0].mxu0
        %1639 = vmatprep.mubr.f32.mxu0 %v733
        %1640 = vmatmul.mubr.f32.gmra.mrb[0].mxu0 %v732
        %v1641 = vpop.f32.mrb[0].mxu0
        %v1642 = vadd.f32 %v1451, %v1641
        %v1643 = vpop.f32.mrb[0].mxu0
        %1644 = vmatprep.mubr.f32.mxu0 %v771
        %1645 = vmatmul.mubr.f32.gmra.mrb[0].mxu0 %v770
        %v1646 = vpop.f32.mrb[0].mxu0
        %v1647 = vadd.f32 %v1451, %v1646
        %v1648 = vpop.f32.mrb[0].mxu0
        %1649 = vmatprep.mubr.f32.mxu0 %v809
        %1650 = vmatmul.mubr.f32.gmra.mrb[0].mxu0 %v808
        %v1651 = vpop.f32.mrb[0].mxu0
        %v1652 = vadd.f32 %v1451, %v1651
        %v1653 = vpop.f32.mrb[0].mxu0
        %1654 = vdwg.mxu0
        %1655 = vmatprep.subr.mxu0 0.0
        %1656 = vmatpush1.msra.mxu0 %v878
        %1657 = vmatprep.subr.mxu0 0.0
        %1658 = vmatpush1.msra.mxu0 %v879
        %1659 = vmatprep.subr.mxu0 0.0
        %1660 = vmatpush1.msra.mxu0 %v880
        %1661 = vmatprep.subr.mxu0 0.0
        %1662 = vmatpush1.msra.mxu0 %v881
        %1663 = vmatprep.subr.mxu0 0.0
        %1664 = vmatpush1.msra.mxu0 %v882
        %1665 = vmatprep.subr.mxu0 0.0
        %1666 = vmatpush1.msra.mxu0 %v883
        %1667 = vmatprep.subr.mxu0 0.0
        %1668 = vmatpush1.msra.mxu0 %v884
        %1669 = vmatprep.subr.mxu0 0.0
        %1670 = vmatpush1.msra.mxu0 %v885
        %1671 = vmatprep.subr.mxu0 0.0
        %1672 = vmatpush1.msra.mxu0 %v886
        %1673 = vmatprep.subr.mxu0 0.0
        %1674 = vmatpush1.msra.mxu0 %v887
        %1675 = vmatprep.subr.mxu0 0.0
        %1676 = vmatpush1.msra.mxu0 %v888
        %1677 = vmatprep.subr.mxu0 0.0
        %1678 = vmatpush1.msra.mxu0 %v889
        %1679 = vmatprep.subr.mxu0 0.0
        %1680 = vmatpush1.msra.mxu0 %v890
        %1681 = vmatprep.subr.mxu0 0.0
        %1682 = vmatpush1.msra.mxu0 %v891
        %1683 = vmatprep.subr.mxu0 0.0
        %1684 = vmatpush1.msra.mxu0 %v892
        %1685 = vmatprep.subr.mxu0 0.0
        %1686 = vmatpush1.msra.mxu0 %v893
        %1687 = vmatprep.subr.mxu0 0.0
        %1688 = vmatpush1.msra.mxu0 %v894
        %1689 = vmatprep.subr.mxu0 0.0
        %1690 = vmatpush1.msra.mxu0 %v895
        %1691 = vmatprep.subr.mxu0 0.0
        %1692 = vmatpush1.msra.mxu0 %v896
        %1693 = vmatprep.subr.mxu0 0.0
        %1694 = vmatpush1.msra.mxu0 %v897
        %1695 = vmatprep.subr.mxu0 0.0
        %1696 = vmatpush1.msra.mxu0 %v898
        %1697 = vmatprep.subr.mxu0 0.0
        %1698 = vmatpush1.msra.mxu0 %v899
        %1699 = vmatprep.subr.mxu0 0.0
        %1700 = vmatpush1.msra.mxu0 %v900
        %1701 = vmatprep.subr.mxu0 0.0
        %1702 = vmatpush1.msra.mxu0 %v901
        %1703 = vmatprep.subr.mxu0 0.0
        %1704 = vmatpush1.msra.mxu0 %v902
        %1705 = vmatprep.subr.mxu0 0.0
        %1706 = vmatpush1.msra.mxu0 %v903
        %1707 = vmatprep.subr.mxu0 0.0
        %1708 = vmatpush1.msra.mxu0 %v904
        %1709 = vmatprep.subr.mxu0 0.0
        %1710 = vmatpush1.msra.mxu0 %v905
        %1711 = vmatprep.subr.mxu0 0.0
        %1712 = vmatpush1.msra.mxu0 %v906
        %1713 = vmatprep.subr.mxu0 0.0
        %1714 = vmatpush1.msra.mxu0 %v907
        %1715 = vmatprep.subr.mxu0 0.0
        %1716 = vmatpush1.msra.mxu0 %v908
        %1717 = vmatprep.subr.mxu0 0.0
        %1718 = vmatpush1.msra.mxu0 %v909
        %1719 = vmatprep.mubr.f32.mxu0 %v203
        %1720 = vmatmul.mubr.f32.gmra.mrb[0].mxu0 %v202
        %v1721 = vpop.f32.mrb[0].mxu0
        %v1722 = vadd.f32 %v1572, %v1721
        %v1723 = vpop.f32.mrb[0].mxu0
        %1724 = vmatprep.mubr.f32.mxu0 %v241
        %1725 = vmatmul.mubr.f32.gmra.mrb[0].mxu0 %v240
        %v1726 = vpop.f32.mrb[0].mxu0
        %v1727 = vadd.f32 %v1577, %v1726
        %v1728 = vpop.f32.mrb[0].mxu0
        %1729 = vmatprep.mubr.f32.mxu0 %v279
        %1730 = vmatmul.mubr.f32.gmra.mrb[0].mxu0 %v278
        %v1731 = vpop.f32.mrb[0].mxu0
        %v1732 = vadd.f32 %v1582, %v1731
        %v1733 = vpop.f32.mrb[0].mxu0
        %1734 = vmatprep.mubr.f32.mxu0 %v317
        %1735 = vmatmul.mubr.f32.gmra.mrb[0].mxu0 %v316
        %v1736 = vpop.f32.mrb[0].mxu0
        %v1737 = vadd.f32 %v1587, %v1736
        %v1738 = vpop.f32.mrb[0].mxu0
        %1739 = vmatprep.mubr.f32.mxu0 %v355
        %1740 = vmatmul.mubr.f32.gmra.mrb[0].mxu0 %v354
        %v1741 = vpop.f32.mrb[0].mxu0
        %v1742 = vadd.f32 %v1592, %v1741
        %v1743 = vpop.f32.mrb[0].mxu0
        %1744 = vmatprep.mubr.f32.mxu0 %v393
        %1745 = vmatmul.mubr.f32.gmra.mrb[0].mxu0 %v392
        %v1746 = vpop.f32.mrb[0].mxu0
        %v1747 = vadd.f32 %v1597, %v1746
        %v1748 = vpop.f32.mrb[0].mxu0
        %1749 = vmatprep.mubr.f32.mxu0 %v431
        %1750 = vmatmul.mubr.f32.gmra.mrb[0].mxu0 %v430
        %v1751 = vpop.f32.mrb[0].mxu0
        %v1752 = vadd.f32 %v1602, %v1751
        %v1753 = vpop.f32.mrb[0].mxu0
        %1754 = vmatprep.mubr.f32.mxu0 %v469
        %1755 = vmatmul.mubr.f32.gmra.mrb[0].mxu0 %v468
        %v1756 = vpop.f32.mrb[0].mxu0
        %v1757 = vadd.f32 %v1607, %v1756
        %v1758 = vpop.f32.mrb[0].mxu0
        %1759 = vmatprep.mubr.f32.mxu0 %v507
        %1760 = vmatmul.mubr.f32.gmra.mrb[0].mxu0 %v506
        %v1761 = vpop.f32.mrb[0].mxu0
        %v1762 = vadd.f32 %v1612, %v1761
        %v1763 = vpop.f32.mrb[0].mxu0
        %1764 = vmatprep.mubr.f32.mxu0 %v545
        %1765 = vmatmul.mubr.f32.gmra.mrb[0].mxu0 %v544
        %v1766 = vpop.f32.mrb[0].mxu0
        %v1767 = vadd.f32 %v1617, %v1766
        %v1768 = vpop.f32.mrb[0].mxu0
        %1769 = vmatprep.mubr.f32.mxu0 %v583
        %1770 = vmatmul.mubr.f32.gmra.mrb[0].mxu0 %v582
        %v1771 = vpop.f32.mrb[0].mxu0
        %v1772 = vadd.f32 %v1622, %v1771
        %v1773 = vpop.f32.mrb[0].mxu0
        %1774 = vmatprep.mubr.f32.mxu0 %v621
        %1775 = vmatmul.mubr.f32.gmra.mrb[0].mxu0 %v620
        %v1776 = vpop.f32.mrb[0].mxu0
        %v1777 = vadd.f32 %v1627, %v1776
        %v1778 = vpop.f32.mrb[0].mxu0
        %1779 = vmatprep.mubr.f32.mxu0 %v659
        %1780 = vmatmul.mubr.f32.gmra.mrb[0].mxu0 %v658
        %v1781 = vpop.f32.mrb[0].mxu0
        %v1782 = vadd.f32 %v1632, %v1781
        %v1783 = vpop.f32.mrb[0].mxu0
        %1784 = vmatprep.mubr.f32.mxu0 %v697
        %1785 = vmatmul.mubr.f32.gmra.mrb[0].mxu0 %v696
        %v1786 = vpop.f32.mrb[0].mxu0
        %v1787 = vadd.f32 %v1637, %v1786
        %v1788 = vpop.f32.mrb[0].mxu0
        %1789 = vmatprep.mubr.f32.mxu0 %v735
        %1790 = vmatmul.mubr.f32.gmra.mrb[0].mxu0 %v734
        %v1791 = vpop.f32.mrb[0].mxu0
        %v1792 = vadd.f32 %v1642, %v1791
        %v1793 = vpop.f32.mrb[0].mxu0
        %1794 = vmatprep.mubr.f32.mxu0 %v773
        %1795 = vmatmul.mubr.f32.gmra.mrb[0].mxu0 %v772
        %v1796 = vpop.f32.mrb[0].mxu0
        %v1797 = vadd.f32 %v1647, %v1796
        %v1798 = vpop.f32.mrb[0].mxu0
        %1799 = vmatprep.mubr.f32.mxu0 %v811
        %1800 = vmatmul.mubr.f32.gmra.mrb[0].mxu0 %v810
        %v1801 = vpop.f32.mrb[0].mxu0
        %v1802 = vadd.f32 %v1652, %v1801
        %v1803 = vpop.f32.mrb[0].mxu0
        %1804 = vdwg.mxu0
        %1805 = vmatprep.subr.mxu0 0.0
        %1806 = vmatpush1.msra.mxu0 %v910
        %1807 = vmatprep.subr.mxu0 0.0
        %1808 = vmatpush1.msra.mxu0 %v911
        %1809 = vmatprep.subr.mxu0 0.0
        %1810 = vmatpush1.msra.mxu0 %v912
        %1811 = vmatprep.subr.mxu0 0.0
        %1812 = vmatpush1.msra.mxu0 %v913
        %1813 = vmatprep.subr.mxu0 0.0
        %1814 = vmatpush1.msra.mxu0 %v914
        %1815 = vmatprep.subr.mxu0 0.0
        %1816 = vmatpush1.msra.mxu0 %v915
        %1817 = vmatprep.subr.mxu0 0.0
        %1818 = vmatpush1.msra.mxu0 %v916
        %1819 = vmatprep.subr.mxu0 0.0
        %1820 = vmatpush1.msra.mxu0 %v917
        %1821 = vmatprep.subr.mxu0 0.0
        %1822 = vmatpush1.msra.mxu0 %v918
        %1823 = vmatprep.subr.mxu0 0.0
        %1824 = vmatpush1.msra.mxu0 %v919
        %1825 = vmatprep.subr.mxu0 0.0
        %1826 = vmatpush1.msra.mxu0 %v920
        %1827 = vmatprep.subr.mxu0 0.0
        %1828 = vmatpush1.msra.mxu0 %v921
        %1829 = vmatprep.subr.mxu0 0.0
        %1830 = vmatpush1.msra.mxu0 %v922
        %1831 = vmatprep.subr.mxu0 0.0
        %1832 = vmatpush1.msra.mxu0 %v923
        %1833 = vmatprep.subr.mxu0 0.0
        %1834 = vmatpush1.msra.mxu0 %v924
        %1835 = vmatprep.subr.mxu0 0.0
        %1836 = vmatpush1.msra.mxu0 %v925
        %1837 = vmatprep.subr.mxu0 0.0
        %1838 = vmatpush1.msra.mxu0 %v926
        %1839 = vmatprep.subr.mxu0 0.0
        %1840 = vmatpush1.msra.mxu0 %v927
        %1841 = vmatprep.subr.mxu0 0.0
        %1842 = vmatpush1.msra.mxu0 %v928
        %1843 = vmatprep.subr.mxu0 0.0
        %1844 = vmatpush1.msra.mxu0 %v929
        %1845 = vmatprep.subr.mxu0 0.0
        %1846 = vmatpush1.msra.mxu0 %v930
        %1847 = vmatprep.subr.mxu0 0.0
        %1848 = vmatpush1.msra.mxu0 %v931
        %1849 = vmatprep.subr.mxu0 0.0
        %1850 = vmatpush1.msra.mxu0 %v932
        %1851 = vmatprep.subr.mxu0 0.0
        %1852 = vmatpush1.msra.mxu0 %v933
        %1853 = vmatprep.subr.mxu0 0.0
        %1854 = vmatpush1.msra.mxu0 %v934
        %1855 = vmatprep.subr.mxu0 0.0
        %1856 = vmatpush1.msra.mxu0 %v935
        %1857 = vmatprep.subr.mxu0 0.0
        %1858 = vmatpush1.msra.mxu0 %v936
        %1859 = vmatprep.subr.mxu0 0.0
        %1860 = vmatpush1.msra.mxu0 %v937
        %1861 = vmatprep.subr.mxu0 0.0
        %1862 = vmatpush1.msra.mxu0 %v938
        %1863 = vmatprep.subr.mxu0 0.0
        %1864 = vmatpush1.msra.mxu0 %v939
        %1865 = vmatprep.subr.mxu0 0.0
        %1866 = vmatpush1.msra.mxu0 %v940
        %1867 = vmatprep.subr.mxu0 0.0
        %1868 = vmatpush1.msra.mxu0 %v941
        %1869 = vmatprep.mubr.f32.mxu0 %v205
        %1870 = vmatmul.mubr.f32.gmra.mrb[0].mxu0 %v204
        %v1871 = vpop.f32.mrb[0].mxu0
        %v1872 = vadd.f32 %v1722, %v1871
        %v1873 = vpop.f32.mrb[0].mxu0
        %1874 = vmatprep.mubr.f32.mxu0 %v243
        %1875 = vmatmul.mubr.f32.gmra.mrb[0].mxu0 %v242
        %v1876 = vpop.f32.mrb[0].mxu0
        %v1877 = vadd.f32 %v1727, %v1876
        %v1878 = vpop.f32.mrb[0].mxu0
        %1879 = vmatprep.mubr.f32.mxu0 %v281
        %1880 = vmatmul.mubr.f32.gmra.mrb[0].mxu0 %v280
        %v1881 = vpop.f32.mrb[0].mxu0
        %v1882 = vadd.f32 %v1732, %v1881
        %v1883 = vpop.f32.mrb[0].mxu0
        %1884 = vmatprep.mubr.f32.mxu0 %v319
        %1885 = vmatmul.mubr.f32.gmra.mrb[0].mxu0 %v318
        %v1886 = vpop.f32.mrb[0].mxu0
        %v1887 = vadd.f32 %v1737, %v1886
        %v1888 = vpop.f32.mrb[0].mxu0
        %1889 = vmatprep.mubr.f32.mxu0 %v357
        %1890 = vmatmul.mubr.f32.gmra.mrb[0].mxu0 %v356
        %v1891 = vpop.f32.mrb[0].mxu0
        %v1892 = vadd.f32 %v1742, %v1891
        %v1893 = vpop.f32.mrb[0].mxu0
        %1894 = vmatprep.mubr.f32.mxu0 %v395
        %1895 = vmatmul.mubr.f32.gmra.mrb[0].mxu0 %v394
        %v1896 = vpop.f32.mrb[0].mxu0
        %v1897 = vadd.f32 %v1747, %v1896
        %v1898 = vpop.f32.mrb[0].mxu0
        %1899 = vmatprep.mubr.f32.mxu0 %v433
        %1900 = vmatmul.mubr.f32.gmra.mrb[0].mxu0 %v432
        %v1901 = vpop.f32.mrb[0].mxu0
        %v1902 = vadd.f32 %v1752, %v1901
        %v1903 = vpop.f32.mrb[0].mxu0
        %1904 = vmatprep.mubr.f32.mxu0 %v471
        %1905 = vmatmul.mubr.f32.gmra.mrb[0].mxu0 %v470
        %v1906 = vpop.f32.mrb[0].mxu0
        %v1907 = vadd.f32 %v1757, %v1906
        %v1908 = vpop.f32.mrb[0].mxu0
        %1909 = vmatprep.mubr.f32.mxu0 %v509
        %1910 = vmatmul.mubr.f32.gmra.mrb[0].mxu0 %v508
        %v1911 = vpop.f32.mrb[0].mxu0
        %v1912 = vadd.f32 %v1762, %v1911
        %v1913 = vpop.f32.mrb[0].mxu0
        %1914 = vmatprep.mubr.f32.mxu0 %v547
        %1915 = vmatmul.mubr.f32.gmra.mrb[0].mxu0 %v546
        %v1916 = vpop.f32.mrb[0].mxu0
        %v1917 = vadd.f32 %v1767, %v1916
        %v1918 = vpop.f32.mrb[0].mxu0
        %1919 = vmatprep.mubr.f32.mxu0 %v585
        %1920 = vmatmul.mubr.f32.gmra.mrb[0].mxu0 %v584
        %v1921 = vpop.f32.mrb[0].mxu0
        %v1922 = vadd.f32 %v1772, %v1921
        %v1923 = vpop.f32.mrb[0].mxu0
        %1924 = vmatprep.mubr.f32.mxu0 %v623
        %1925 = vmatmul.mubr.f32.gmra.mrb[0].mxu0 %v622
        %v1926 = vpop.f32.mrb[0].mxu0
        %v1927 = vadd.f32 %v1777, %v1926
        %v1928 = vpop.f32.mrb[0].mxu0
        %1929 = vmatprep.mubr.f32.mxu0 %v661
        %1930 = vmatmul.mubr.f32.gmra.mrb[0].mxu0 %v660
        %v1931 = vpop.f32.mrb[0].mxu0
        %v1932 = vadd.f32 %v1782, %v1931
        %v1933 = vpop.f32.mrb[0].mxu0
        %1934 = vmatprep.mubr.f32.mxu0 %v699
        %1935 = vmatmul.mubr.f32.gmra.mrb[0].mxu0 %v698
        %v1936 = vpop.f32.mrb[0].mxu0
        %v1937 = vadd.f32 %v1787, %v1936
        %v1938 = vpop.f32.mrb[0].mxu0
        %1939 = vmatprep.mubr.f32.mxu0 %v737
        %1940 = vmatmul.mubr.f32.gmra.mrb[0].mxu0 %v736
        %v1941 = vpop.f32.mrb[0].mxu0
        %v1942 = vadd.f32 %v1792, %v1941
        %v1943 = vpop.f32.mrb[0].mxu0
        %1944 = vmatprep.mubr.f32.mxu0 %v775
        %1945 = vmatmul.mubr.f32.gmra.mrb[0].mxu0 %v774
        %v1946 = vpop.f32.mrb[0].mxu0
        %v1947 = vadd.f32 %v1797, %v1946
        %v1948 = vpop.f32.mrb[0].mxu0
        %1949 = vmatprep.mubr.f32.mxu0 %v813
        %1950 = vmatmul.mubr.f32.gmra.mrb[0].mxu0 %v812
        %v1951 = vpop.f32.mrb[0].mxu0
        %v1952 = vadd.f32 %v1802, %v1951
        %v1953 = vpop.f32.mrb[0].mxu0
        %1954 = vdwg.mxu0
        %1955 = vmatprep.subr.mxu0 0.0
        %1956 = vmatpush1.msra.mxu0 %v942
        %1957 = vmatprep.subr.mxu0 0.0
        %1958 = vmatpush1.msra.mxu0 %v943
        %1959 = vmatprep.subr.mxu0 0.0
        %1960 = vmatpush1.msra.mxu0 %v944
        %1961 = vmatprep.subr.mxu0 0.0
        %1962 = vmatpush1.msra.mxu0 %v945
        %1963 = vmatprep.subr.mxu0 0.0
        %1964 = vmatpush1.msra.mxu0 %v946
        %1965 = vmatprep.subr.mxu0 0.0
        %1966 = vmatpush1.msra.mxu0 %v947
        %1967 = vmatprep.subr.mxu0 0.0
        %1968 = vmatpush1.msra.mxu0 %v948
        %1969 = vmatprep.subr.mxu0 0.0
        %1970 = vmatpush1.msra.mxu0 %v949
        %1971 = vmatprep.subr.mxu0 0.0
        %1972 = vmatpush1.msra.mxu0 %v950
        %1973 = vmatprep.subr.mxu0 0.0
        %1974 = vmatpush1.msra.mxu0 %v951
        %1975 = vmatprep.subr.mxu0 0.0
        %1976 = vmatpush1.msra.mxu0 %v952
        %1977 = vmatprep.subr.mxu0 0.0
        %1978 = vmatpush1.msra.mxu0 %v953
        %1979 = vmatprep.subr.mxu0 0.0
        %1980 = vmatpush1.msra.mxu0 %v954
        %1981 = vmatprep.subr.mxu0 0.0
        %1982 = vmatpush1.msra.mxu0 %v955
        %1983 = vmatprep.subr.mxu0 0.0
        %1984 = vmatpush1.msra.mxu0 %v956
        %1985 = vmatprep.subr.mxu0 0.0
        %1986 = vmatpush1.msra.mxu0 %v957
        %1987 = vmatprep.subr.mxu0 0.0
        %1988 = vmatpush1.msra.mxu0 %v958
        %1989 = vmatprep.subr.mxu0 0.0
        %1990 = vmatpush1.msra.mxu0 %v959
        %1991 = vmatprep.subr.mxu0 0.0
        %1992 = vmatpush1.msra.mxu0 %v960
        %1993 = vmatprep.subr.mxu0 0.0
        %1994 = vmatpush1.msra.mxu0 %v961
        %1995 = vmatprep.subr.mxu0 0.0
        %1996 = vmatpush1.msra.mxu0 %v962
        %1997 = vmatprep.subr.mxu0 0.0
        %1998 = vmatpush1.msra.mxu0 %v963
        %1999 = vmatprep.subr.mxu0 0.0
        %2000 = vmatpush1.msra.mxu0 %v964
        %2001 = vmatprep.subr.mxu0 0.0
        %2002 = vmatpush1.msra.mxu0 %v965
        %2003 = vmatprep.subr.mxu0 0.0
        %2004 = vmatpush1.msra.mxu0 %v966
        %2005 = vmatprep.subr.mxu0 0.0
        %2006 = vmatpush1.msra.mxu0 %v967
        %2007 = vmatprep.subr.mxu0 0.0
        %2008 = vmatpush1.msra.mxu0 %v968
        %2009 = vmatprep.subr.mxu0 0.0
        %2010 = vmatpush1.msra.mxu0 %v969
        %2011 = vmatprep.subr.mxu0 0.0
        %2012 = vmatpush1.msra.mxu0 %v970
        %2013 = vmatprep.subr.mxu0 0.0
        %2014 = vmatpush1.msra.mxu0 %v971
        %2015 = vmatprep.subr.mxu0 0.0
        %2016 = vmatpush1.msra.mxu0 %v972
        %2017 = vmatprep.subr.mxu0 0.0
        %2018 = vmatpush1.msra.mxu0 %v973
        %2019 = vmatprep.mubr.f32.mxu0 %v207
        %2020 = vmatmul.mubr.f32.gmra.mrb[0].mxu0 %v206
        %v2021 = vpop.f32.mrb[0].mxu0
        %v2022 = vadd.f32 %v1872, %v2021
        %v2023 = vpop.f32.mrb[0].mxu0
        %2024 = vmatprep.mubr.f32.mxu0 %v245
        %2025 = vmatmul.mubr.f32.gmra.mrb[0].mxu0 %v244
        %v2026 = vpop.f32.mrb[0].mxu0
        %v2027 = vadd.f32 %v1877, %v2026
        %v2028 = vpop.f32.mrb[0].mxu0
        %2029 = vmatprep.mubr.f32.mxu0 %v283
        %2030 = vmatmul.mubr.f32.gmra.mrb[0].mxu0 %v282
        %v2031 = vpop.f32.mrb[0].mxu0
        %v2032 = vadd.f32 %v1882, %v2031
        %v2033 = vpop.f32.mrb[0].mxu0
        %2034 = vmatprep.mubr.f32.mxu0 %v321
        %2035 = vmatmul.mubr.f32.gmra.mrb[0].mxu0 %v320
        %v2036 = vpop.f32.mrb[0].mxu0
        %v2037 = vadd.f32 %v1887, %v2036
        %v2038 = vpop.f32.mrb[0].mxu0
        %2039 = vmatprep.mubr.f32.mxu0 %v359
        %2040 = vmatmul.mubr.f32.gmra.mrb[0].mxu0 %v358
        %v2041 = vpop.f32.mrb[0].mxu0
        %v2042 = vadd.f32 %v1892, %v2041
        %v2043 = vpop.f32.mrb[0].mxu0
        %2044 = vmatprep.mubr.f32.mxu0 %v397
        %2045 = vmatmul.mubr.f32.gmra.mrb[0].mxu0 %v396
        %v2046 = vpop.f32.mrb[0].mxu0
        %v2047 = vadd.f32 %v1897, %v2046
        %v2048 = vpop.f32.mrb[0].mxu0
        %2049 = vmatprep.mubr.f32.mxu0 %v435
        %2050 = vmatmul.mubr.f32.gmra.mrb[0].mxu0 %v434
        %v2051 = vpop.f32.mrb[0].mxu0
        %v2052 = vadd.f32 %v1902, %v2051
        %v2053 = vpop.f32.mrb[0].mxu0
        %2054 = vmatprep.mubr.f32.mxu0 %v473
        %2055 = vmatmul.mubr.f32.gmra.mrb[0].mxu0 %v472
        %v2056 = vpop.f32.mrb[0].mxu0
        %v2057 = vadd.f32 %v1907, %v2056
        %v2058 = vpop.f32.mrb[0].mxu0
        %2059 = vmatprep.mubr.f32.mxu0 %v511
        %2060 = vmatmul.mubr.f32.gmra.mrb[0].mxu0 %v510
        %v2061 = vpop.f32.mrb[0].mxu0
        %v2062 = vadd.f32 %v1912, %v2061
        %v2063 = vpop.f32.mrb[0].mxu0
        %2064 = vmatprep.mubr.f32.mxu0 %v549
        %2065 = vmatmul.mubr.f32.gmra.mrb[0].mxu0 %v548
        %v2066 = vpop.f32.mrb[0].mxu0
        %v2067 = vadd.f32 %v1917, %v2066
        %v2068 = vpop.f32.mrb[0].mxu0
        %2069 = vmatprep.mubr.f32.mxu0 %v587
        %2070 = vmatmul.mubr.f32.gmra.mrb[0].mxu0 %v586
        %v2071 = vpop.f32.mrb[0].mxu0
        %v2072 = vadd.f32 %v1922, %v2071
        %v2073 = vpop.f32.mrb[0].mxu0
        %2074 = vmatprep.mubr.f32.mxu0 %v625
        %2075 = vmatmul.mubr.f32.gmra.mrb[0].mxu0 %v624
        %v2076 = vpop.f32.mrb[0].mxu0
        %v2077 = vadd.f32 %v1927, %v2076
        %v2078 = vpop.f32.mrb[0].mxu0
        %2079 = vmatprep.mubr.f32.mxu0 %v663
        %2080 = vmatmul.mubr.f32.gmra.mrb[0].mxu0 %v662
        %v2081 = vpop.f32.mrb[0].mxu0
        %v2082 = vadd.f32 %v1932, %v2081
        %v2083 = vpop.f32.mrb[0].mxu0
        %2084 = vmatprep.mubr.f32.mxu0 %v701
        %2085 = vmatmul.mubr.f32.gmra.mrb[0].mxu0 %v700
        %v2086 = vpop.f32.mrb[0].mxu0
        %v2087 = vadd.f32 %v1937, %v2086
        %v2088 = vpop.f32.mrb[0].mxu0
        %2089 = vmatprep.mubr.f32.mxu0 %v739
        %2090 = vmatmul.mubr.f32.gmra.mrb[0].mxu0 %v738
        %v2091 = vpop.f32.mrb[0].mxu0
        %v2092 = vadd.f32 %v1942, %v2091
        %v2093 = vpop.f32.mrb[0].mxu0
        %2094 = vmatprep.mubr.f32.mxu0 %v777
        %2095 = vmatmul.mubr.f32.gmra.mrb[0].mxu0 %v776
        %v2096 = vpop.f32.mrb[0].mxu0
        %v2097 = vadd.f32 %v1947, %v2096
        %v2098 = vpop.f32.mrb[0].mxu0
        %2099 = vmatprep.mubr.f32.mxu0 %v815
        %2100 = vmatmul.mubr.f32.gmra.mrb[0].mxu0 %v814
        %v2101 = vpop.f32.mrb[0].mxu0
        %v2102 = vadd.f32 %v1952, %v2101
        %v2103 = vpop.f32.mrb[0].mxu0
        %2104 = vdwg.mxu0
        %2105 = vmatprep.subr.mxu0 0.0
        %2106 = vmatpush1.msra.mxu0 %v974
        %2107 = vmatprep.subr.mxu0 0.0
        %2108 = vmatpush1.msra.mxu0 %v975
        %2109 = vmatprep.subr.mxu0 0.0
        %2110 = vmatpush1.msra.mxu0 %v976
        %2111 = vmatprep.subr.mxu0 0.0
        %2112 = vmatpush1.msra.mxu0 %v977
        %2113 = vmatprep.subr.mxu0 0.0
        %2114 = vmatpush1.msra.mxu0 %v978
        %2115 = vmatprep.subr.mxu0 0.0
        %2116 = vmatpush1.msra.mxu0 %v979
        %2117 = vmatprep.subr.mxu0 0.0
        %2118 = vmatpush1.msra.mxu0 %v980
        %2119 = vmatprep.subr.mxu0 0.0
        %2120 = vmatpush1.msra.mxu0 %v981
        %2121 = vmatprep.subr.mxu0 0.0
        %2122 = vmatpush1.msra.mxu0 %v982
        %2123 = vmatprep.subr.mxu0 0.0
        %2124 = vmatpush1.msra.mxu0 %v983
        %2125 = vmatprep.subr.mxu0 0.0
        %2126 = vmatpush1.msra.mxu0 %v984
        %2127 = vmatprep.subr.mxu0 0.0
        %2128 = vmatpush1.msra.mxu0 %v985
        %2129 = vmatprep.subr.mxu0 0.0
        %2130 = vmatpush1.msra.mxu0 %v986
        %2131 = vmatprep.subr.mxu0 0.0
        %2132 = vmatpush1.msra.mxu0 %v987
        %2133 = vmatprep.subr.mxu0 0.0
        %2134 = vmatpush1.msra.mxu0 %v988
        %2135 = vmatprep.subr.mxu0 0.0
        %2136 = vmatpush1.msra.mxu0 %v989
        %2137 = vmatprep.subr.mxu0 0.0
        %2138 = vmatpush1.msra.mxu0 %v990
        %2139 = vmatprep.subr.mxu0 0.0
        %2140 = vmatpush1.msra.mxu0 %v991
        %2141 = vmatprep.subr.mxu0 0.0
        %2142 = vmatpush1.msra.mxu0 %v992
        %2143 = vmatprep.subr.mxu0 0.0
        %2144 = vmatpush1.msra.mxu0 %v993
        %2145 = vmatprep.subr.mxu0 0.0
        %2146 = vmatpush1.msra.mxu0 %v994
        %2147 = vmatprep.subr.mxu0 0.0
        %2148 = vmatpush1.msra.mxu0 %v995
        %2149 = vmatprep.subr.mxu0 0.0
        %2150 = vmatpush1.msra.mxu0 %v996
        %2151 = vmatprep.subr.mxu0 0.0
        %2152 = vmatpush1.msra.mxu0 %v997
        %2153 = vmatprep.subr.mxu0 0.0
        %2154 = vmatpush1.msra.mxu0 %v998
        %2155 = vmatprep.subr.mxu0 0.0
        %2156 = vmatpush1.msra.mxu0 %v999
        %2157 = vmatprep.subr.mxu0 0.0
        %2158 = vmatpush1.msra.mxu0 %v1000
        %2159 = vmatprep.subr.mxu0 0.0
        %2160 = vmatpush1.msra.mxu0 %v1001
        %2161 = vmatprep.subr.mxu0 0.0
        %2162 = vmatpush1.msra.mxu0 %v1002
        %2163 = vmatprep.subr.mxu0 0.0
        %2164 = vmatpush1.msra.mxu0 %v1003
        %2165 = vmatprep.subr.mxu0 0.0
        %2166 = vmatpush1.msra.mxu0 %v1004
        %2167 = vmatprep.subr.mxu0 0.0
        %2168 = vmatpush1.msra.mxu0 %v1005
        %2169 = vmatprep.mubr.f32.mxu0 %v209
        %2170 = vmatmul.mubr.f32.gmra.mrb[0].mxu0 %v208
        %v2171 = vpop.f32.mrb[0].mxu0
        %v2172 = vadd.f32 %v2022, %v2171
        %v2173 = vpop.f32.mrb[0].mxu0
        %2174 = vmatprep.mubr.f32.mxu0 %v247
        %2175 = vmatmul.mubr.f32.gmra.mrb[0].mxu0 %v246
        %v2176 = vpop.f32.mrb[0].mxu0
        %v2177 = vadd.f32 %v2027, %v2176
        %v2178 = vpop.f32.mrb[0].mxu0
        %2179 = vmatprep.mubr.f32.mxu0 %v285
        %2180 = vmatmul.mubr.f32.gmra.mrb[0].mxu0 %v284
        %v2181 = vpop.f32.mrb[0].mxu0
        %v2182 = vadd.f32 %v2032, %v2181
        %v2183 = vpop.f32.mrb[0].mxu0
        %2184 = vmatprep.mubr.f32.mxu0 %v323
        %2185 = vmatmul.mubr.f32.gmra.mrb[0].mxu0 %v322
        %v2186 = vpop.f32.mrb[0].mxu0
        %v2187 = vadd.f32 %v2037, %v2186
        %v2188 = vpop.f32.mrb[0].mxu0
        %2189 = vmatprep.mubr.f32.mxu0 %v361
        %2190 = vmatmul.mubr.f32.gmra.mrb[0].mxu0 %v360
        %v2191 = vpop.f32.mrb[0].mxu0
        %v2192 = vadd.f32 %v2042, %v2191
        %v2193 = vpop.f32.mrb[0].mxu0
        %2194 = vmatprep.mubr.f32.mxu0 %v399
        %2195 = vmatmul.mubr.f32.gmra.mrb[0].mxu0 %v398
        %v2196 = vpop.f32.mrb[0].mxu0
        %v2197 = vadd.f32 %v2047, %v2196
        %v2198 = vpop.f32.mrb[0].mxu0
        %2199 = vmatprep.mubr.f32.mxu0 %v437
        %2200 = vmatmul.mubr.f32.gmra.mrb[0].mxu0 %v436
        %v2201 = vpop.f32.mrb[0].mxu0
        %v2202 = vadd.f32 %v2052, %v2201
        %v2203 = vpop.f32.mrb[0].mxu0
        %2204 = vmatprep.mubr.f32.mxu0 %v475
        %2205 = vmatmul.mubr.f32.gmra.mrb[0].mxu0 %v474
        %v2206 = vpop.f32.mrb[0].mxu0
        %v2207 = vadd.f32 %v2057, %v2206
        %v2208 = vpop.f32.mrb[0].mxu0
        %2209 = vmatprep.mubr.f32.mxu0 %v513
        %2210 = vmatmul.mubr.f32.gmra.mrb[0].mxu0 %v512
        %v2211 = vpop.f32.mrb[0].mxu0
        %v2212 = vadd.f32 %v2062, %v2211
        %v2213 = vpop.f32.mrb[0].mxu0
        %2214 = vmatprep.mubr.f32.mxu0 %v551
        %2215 = vmatmul.mubr.f32.gmra.mrb[0].mxu0 %v550
        %v2216 = vpop.f32.mrb[0].mxu0
        %v2217 = vadd.f32 %v2067, %v2216
        %v2218 = vpop.f32.mrb[0].mxu0
        %2219 = vmatprep.mubr.f32.mxu0 %v589
        %2220 = vmatmul.mubr.f32.gmra.mrb[0].mxu0 %v588
        %v2221 = vpop.f32.mrb[0].mxu0
        %v2222 = vadd.f32 %v2072, %v2221
        %v2223 = vpop.f32.mrb[0].mxu0
        %2224 = vmatprep.mubr.f32.mxu0 %v627
        %2225 = vmatmul.mubr.f32.gmra.mrb[0].mxu0 %v626
        %v2226 = vpop.f32.mrb[0].mxu0
        %v2227 = vadd.f32 %v2077, %v2226
        %v2228 = vpop.f32.mrb[0].mxu0
        %2229 = vmatprep.mubr.f32.mxu0 %v665
        %2230 = vmatmul.mubr.f32.gmra.mrb[0].mxu0 %v664
        %v2231 = vpop.f32.mrb[0].mxu0
        %v2232 = vadd.f32 %v2082, %v2231
        %v2233 = vpop.f32.mrb[0].mxu0
        %2234 = vmatprep.mubr.f32.mxu0 %v703
        %2235 = vmatmul.mubr.f32.gmra.mrb[0].mxu0 %v702
        %v2236 = vpop.f32.mrb[0].mxu0
        %v2237 = vadd.f32 %v2087, %v2236
        %v2238 = vpop.f32.mrb[0].mxu0
        %2239 = vmatprep.mubr.f32.mxu0 %v741
        %2240 = vmatmul.mubr.f32.gmra.mrb[0].mxu0 %v740
        %v2241 = vpop.f32.mrb[0].mxu0
        %v2242 = vadd.f32 %v2092, %v2241
        %v2243 = vpop.f32.mrb[0].mxu0
        %2244 = vmatprep.mubr.f32.mxu0 %v779
        %2245 = vmatmul.mubr.f32.gmra.mrb[0].mxu0 %v778
        %v2246 = vpop.f32.mrb[0].mxu0
        %v2247 = vadd.f32 %v2097, %v2246
        %v2248 = vpop.f32.mrb[0].mxu0
        %2249 = vmatprep.mubr.f32.mxu0 %v817
        %2250 = vmatmul.mubr.f32.gmra.mrb[0].mxu0 %v816
        %v2251 = vpop.f32.mrb[0].mxu0
        %v2252 = vadd.f32 %v2102, %v2251
        %v2253 = vpop.f32.mrb[0].mxu0
        %2254 = vdwg.mxu0
        %2255 = vmatprep.subr.mxu0 0.0
        %2256 = vmatpush1.msra.mxu0 %v1006
        %2257 = vmatprep.subr.mxu0 0.0
        %2258 = vmatpush1.msra.mxu0 %v1007
        %2259 = vmatprep.subr.mxu0 0.0
        %2260 = vmatpush1.msra.mxu0 %v1008
        %2261 = vmatprep.subr.mxu0 0.0
        %2262 = vmatpush1.msra.mxu0 %v1009
        %2263 = vmatprep.subr.mxu0 0.0
        %2264 = vmatpush1.msra.mxu0 %v1010
        %2265 = vmatprep.subr.mxu0 0.0
        %2266 = vmatpush1.msra.mxu0 %v1011
        %2267 = vmatprep.subr.mxu0 0.0
        %2268 = vmatpush1.msra.mxu0 %v1012
        %2269 = vmatprep.subr.mxu0 0.0
        %2270 = vmatpush1.msra.mxu0 %v1013
        %2271 = vmatprep.subr.mxu0 0.0
        %2272 = vmatpush1.msra.mxu0 %v1014
        %2273 = vmatprep.subr.mxu0 0.0
        %2274 = vmatpush1.msra.mxu0 %v1015
        %2275 = vmatprep.subr.mxu0 0.0
        %2276 = vmatpush1.msra.mxu0 %v1016
        %2277 = vmatprep.subr.mxu0 0.0
        %2278 = vmatpush1.msra.mxu0 %v1017
        %2279 = vmatprep.subr.mxu0 0.0
        %2280 = vmatpush1.msra.mxu0 %v1018
        %2281 = vmatprep.subr.mxu0 0.0
        %2282 = vmatpush1.msra.mxu0 %v1019
        %2283 = vmatprep.subr.mxu0 0.0
        %2284 = vmatpush1.msra.mxu0 %v1020
        %2285 = vmatprep.subr.mxu0 0.0
        %2286 = vmatpush1.msra.mxu0 %v1021
        %2287 = vmatprep.subr.mxu0 0.0
        %2288 = vmatpush1.msra.mxu0 %v1022
        %2289 = vmatprep.subr.mxu0 0.0
        %2290 = vmatpush1.msra.mxu0 %v1023
        %2291 = vmatprep.subr.mxu0 0.0
        %2292 = vmatpush1.msra.mxu0 %v1024
        %2293 = vmatprep.subr.mxu0 0.0
        %2294 = vmatpush1.msra.mxu0 %v1025
        %2295 = vmatprep.subr.mxu0 0.0
        %2296 = vmatpush1.msra.mxu0 %v1026
        %2297 = vmatprep.subr.mxu0 0.0
        %2298 = vmatpush1.msra.mxu0 %v1027
        %2299 = vmatprep.subr.mxu0 0.0
        %2300 = vmatpush1.msra.mxu0 %v1028
        %2301 = vmatprep.subr.mxu0 0.0
        %2302 = vmatpush1.msra.mxu0 %v1029
        %2303 = vmatprep.subr.mxu0 0.0
        %2304 = vmatpush1.msra.mxu0 %v1030
        %2305 = vmatprep.subr.mxu0 0.0
        %2306 = vmatpush1.msra.mxu0 %v1031
        %2307 = vmatprep.subr.mxu0 0.0
        %2308 = vmatpush1.msra.mxu0 %v1032
        %2309 = vmatprep.subr.mxu0 0.0
        %2310 = vmatpush1.msra.mxu0 %v1033
        %2311 = vmatprep.subr.mxu0 0.0
        %2312 = vmatpush1.msra.mxu0 %v1034
        %2313 = vmatprep.subr.mxu0 0.0
        %2314 = vmatpush1.msra.mxu0 %v1035
        %2315 = vmatprep.subr.mxu0 0.0
        %2316 = vmatpush1.msra.mxu0 %v1036
        %2317 = vmatprep.subr.mxu0 0.0
        %2318 = vmatpush1.msra.mxu0 %v1037
        %2319 = vmatprep.mubr.f32.mxu0 %v211
        %2320 = vmatmul.mubr.f32.gmra.mrb[0].mxu0 %v210
        %v2321 = vpop.f32.mrb[0].mxu0
        %v2322 = vadd.f32 %v2172, %v2321
        %v2323 = vpop.f32.mrb[0].mxu0
        %2324 = vmatprep.mubr.f32.mxu0 %v249
        %2325 = vmatmul.mubr.f32.gmra.mrb[0].mxu0 %v248
        %v2326 = vpop.f32.mrb[0].mxu0
        %v2327 = vadd.f32 %v2177, %v2326
        %v2328 = vpop.f32.mrb[0].mxu0
        %2329 = vmatprep.mubr.f32.mxu0 %v287
        %2330 = vmatmul.mubr.f32.gmra.mrb[0].mxu0 %v286
        %v2331 = vpop.f32.mrb[0].mxu0
        %v2332 = vadd.f32 %v2182, %v2331
        %v2333 = vpop.f32.mrb[0].mxu0
        %2334 = vmatprep.mubr.f32.mxu0 %v325
        %2335 = vmatmul.mubr.f32.gmra.mrb[0].mxu0 %v324
        %v2336 = vpop.f32.mrb[0].mxu0
        %v2337 = vadd.f32 %v2187, %v2336
        %v2338 = vpop.f32.mrb[0].mxu0
        %2339 = vmatprep.mubr.f32.mxu0 %v363
        %2340 = vmatmul.mubr.f32.gmra.mrb[0].mxu0 %v362
        %v2341 = vpop.f32.mrb[0].mxu0
        %v2342 = vadd.f32 %v2192, %v2341
        %v2343 = vpop.f32.mrb[0].mxu0
        %2344 = vmatprep.mubr.f32.mxu0 %v401
        %2345 = vmatmul.mubr.f32.gmra.mrb[0].mxu0 %v400
        %v2346 = vpop.f32.mrb[0].mxu0
        %v2347 = vadd.f32 %v2197, %v2346
        %v2348 = vpop.f32.mrb[0].mxu0
        %2349 = vmatprep.mubr.f32.mxu0 %v439
        %2350 = vmatmul.mubr.f32.gmra.mrb[0].mxu0 %v438
        %v2351 = vpop.f32.mrb[0].mxu0
        %v2352 = vadd.f32 %v2202, %v2351
        %v2353 = vpop.f32.mrb[0].mxu0
        %2354 = vmatprep.mubr.f32.mxu0 %v477
        %2355 = vmatmul.mubr.f32.gmra.mrb[0].mxu0 %v476
        %v2356 = vpop.f32.mrb[0].mxu0
        %v2357 = vadd.f32 %v2207, %v2356
        %v2358 = vpop.f32.mrb[0].mxu0
        %2359 = vmatprep.mubr.f32.mxu0 %v515
        %2360 = vmatmul.mubr.f32.gmra.mrb[0].mxu0 %v514
        %v2361 = vpop.f32.mrb[0].mxu0
        %v2362 = vadd.f32 %v2212, %v2361
        %v2363 = vpop.f32.mrb[0].mxu0
        %2364 = vmatprep.mubr.f32.mxu0 %v553
        %2365 = vmatmul.mubr.f32.gmra.mrb[0].mxu0 %v552
        %v2366 = vpop.f32.mrb[0].mxu0
        %v2367 = vadd.f32 %v2217, %v2366
        %v2368 = vpop.f32.mrb[0].mxu0
        %2369 = vmatprep.mubr.f32.mxu0 %v591
        %2370 = vmatmul.mubr.f32.gmra.mrb[0].mxu0 %v590
        %v2371 = vpop.f32.mrb[0].mxu0
        %v2372 = vadd.f32 %v2222, %v2371
        %v2373 = vpop.f32.mrb[0].mxu0
        %2374 = vmatprep.mubr.f32.mxu0 %v629
        %2375 = vmatmul.mubr.f32.gmra.mrb[0].mxu0 %v628
        %v2376 = vpop.f32.mrb[0].mxu0
        %v2377 = vadd.f32 %v2227, %v2376
        %v2378 = vpop.f32.mrb[0].mxu0
        %2379 = vmatprep.mubr.f32.mxu0 %v667
        %2380 = vmatmul.mubr.f32.gmra.mrb[0].mxu0 %v666
        %v2381 = vpop.f32.mrb[0].mxu0
        %v2382 = vadd.f32 %v2232, %v2381
        %v2383 = vpop.f32.mrb[0].mxu0
        %2384 = vmatprep.mubr.f32.mxu0 %v705
        %2385 = vmatmul.mubr.f32.gmra.mrb[0].mxu0 %v704
        %v2386 = vpop.f32.mrb[0].mxu0
        %v2387 = vadd.f32 %v2237, %v2386
        %v2388 = vpop.f32.mrb[0].mxu0
        %2389 = vmatprep.mubr.f32.mxu0 %v743
        %2390 = vmatmul.mubr.f32.gmra.mrb[0].mxu0 %v742
        %v2391 = vpop.f32.mrb[0].mxu0
        %v2392 = vadd.f32 %v2242, %v2391
        %v2393 = vpop.f32.mrb[0].mxu0
        %2394 = vmatprep.mubr.f32.mxu0 %v781
        %2395 = vmatmul.mubr.f32.gmra.mrb[0].mxu0 %v780
        %v2396 = vpop.f32.mrb[0].mxu0
        %v2397 = vadd.f32 %v2247, %v2396
        %v2398 = vpop.f32.mrb[0].mxu0
        %2399 = vmatprep.mubr.f32.mxu0 %v819
        %2400 = vmatmul.mubr.f32.gmra.mrb[0].mxu0 %v818
        %v2401 = vpop.f32.mrb[0].mxu0
        %v2402 = vadd.f32 %v2252, %v2401
        %v2403 = vpop.f32.mrb[0].mxu0
        %2404 = vdwg.mxu0
        %2405 = vmatprep.subr.mxu0 0.0
        %2406 = vmatpush1.msra.mxu0 %v1038
        %2407 = vmatprep.subr.mxu0 0.0
        %2408 = vmatpush1.msra.mxu0 %v1039
        %2409 = vmatprep.subr.mxu0 0.0
        %2410 = vmatpush1.msra.mxu0 %v1040
        %2411 = vmatprep.subr.mxu0 0.0
        %2412 = vmatpush1.msra.mxu0 %v1041
        %2413 = vmatprep.subr.mxu0 0.0
        %2414 = vmatpush1.msra.mxu0 %v1042
        %2415 = vmatprep.subr.mxu0 0.0
        %2416 = vmatpush1.msra.mxu0 %v1043
        %2417 = vmatprep.subr.mxu0 0.0
        %2418 = vmatpush1.msra.mxu0 %v1044
        %2419 = vmatprep.subr.mxu0 0.0
        %2420 = vmatpush1.msra.mxu0 %v1045
        %2421 = vmatprep.subr.mxu0 0.0
        %2422 = vmatpush1.msra.mxu0 %v1046
        %2423 = vmatprep.subr.mxu0 0.0
        %2424 = vmatpush1.msra.mxu0 %v1047
        %2425 = vmatprep.subr.mxu0 0.0
        %2426 = vmatpush1.msra.mxu0 %v1048
        %2427 = vmatprep.subr.mxu0 0.0
        %2428 = vmatpush1.msra.mxu0 %v1049
        %2429 = vmatprep.subr.mxu0 0.0
        %2430 = vmatpush1.msra.mxu0 %v1050
        %2431 = vmatprep.subr.mxu0 0.0
        %2432 = vmatpush1.msra.mxu0 %v1051
        %2433 = vmatprep.subr.mxu0 0.0
        %2434 = vmatpush1.msra.mxu0 %v1052
        %2435 = vmatprep.subr.mxu0 0.0
        %2436 = vmatpush1.msra.mxu0 %v1053
        %2437 = vmatprep.subr.mxu0 0.0
        %2438 = vmatpush1.msra.mxu0 %v1054
        %2439 = vmatprep.subr.mxu0 0.0
        %2440 = vmatpush1.msra.mxu0 %v1055
        %2441 = vmatprep.subr.mxu0 0.0
        %2442 = vmatpush1.msra.mxu0 %v1056
        %2443 = vmatprep.subr.mxu0 0.0
        %2444 = vmatpush1.msra.mxu0 %v1057
        %2445 = vmatprep.subr.mxu0 0.0
        %2446 = vmatpush1.msra.mxu0 %v1058
        %2447 = vmatprep.subr.mxu0 0.0
        %2448 = vmatpush1.msra.mxu0 %v1059
        %2449 = vmatprep.subr.mxu0 0.0
        %2450 = vmatpush1.msra.mxu0 %v1060
        %2451 = vmatprep.subr.mxu0 0.0
        %2452 = vmatpush1.msra.mxu0 %v1061
        %2453 = vmatprep.subr.mxu0 0.0
        %2454 = vmatpush1.msra.mxu0 %v1062
        %2455 = vmatprep.subr.mxu0 0.0
        %2456 = vmatpush1.msra.mxu0 %v1063
        %2457 = vmatprep.subr.mxu0 0.0
        %2458 = vmatpush1.msra.mxu0 %v1064
        %2459 = vmatprep.subr.mxu0 0.0
        %2460 = vmatpush1.msra.mxu0 %v1065
        %2461 = vmatprep.subr.mxu0 0.0
        %2462 = vmatpush1.msra.mxu0 %v1066
        %2463 = vmatprep.subr.mxu0 0.0
        %2464 = vmatpush1.msra.mxu0 %v1067
        %2465 = vmatprep.subr.mxu0 0.0
        %2466 = vmatpush1.msra.mxu0 %v1068
        %2467 = vmatprep.subr.mxu0 0.0
        %2468 = vmatpush1.msra.mxu0 %v1069
        %2469 = vmatprep.mubr.f32.mxu0 %v213
        %2470 = vmatmul.mubr.f32.gmra.mrb[0].mxu0 %v212
        %v2471 = vpop.f32.mrb[0].mxu0
        %v2472 = vadd.f32 %v2322, %v2471
        %v2473 = vpop.f32.mrb[0].mxu0
        %2474 = vmatprep.mubr.f32.mxu0 %v251
        %2475 = vmatmul.mubr.f32.gmra.mrb[0].mxu0 %v250
        %v2476 = vpop.f32.mrb[0].mxu0
        %v2477 = vadd.f32 %v2327, %v2476
        %v2478 = vpop.f32.mrb[0].mxu0
        %2479 = vmatprep.mubr.f32.mxu0 %v289
        %2480 = vmatmul.mubr.f32.gmra.mrb[0].mxu0 %v288
        %v2481 = vpop.f32.mrb[0].mxu0
        %v2482 = vadd.f32 %v2332, %v2481
        %v2483 = vpop.f32.mrb[0].mxu0
        %2484 = vmatprep.mubr.f32.mxu0 %v327
        %2485 = vmatmul.mubr.f32.gmra.mrb[0].mxu0 %v326
        %v2486 = vpop.f32.mrb[0].mxu0
        %v2487 = vadd.f32 %v2337, %v2486
        %v2488 = vpop.f32.mrb[0].mxu0
        %2489 = vmatprep.mubr.f32.mxu0 %v365
        %2490 = vmatmul.mubr.f32.gmra.mrb[0].mxu0 %v364
        %v2491 = vpop.f32.mrb[0].mxu0
        %v2492 = vadd.f32 %v2342, %v2491
        %v2493 = vpop.f32.mrb[0].mxu0
        %2494 = vmatprep.mubr.f32.mxu0 %v403
        %2495 = vmatmul.mubr.f32.gmra.mrb[0].mxu0 %v402
        %v2496 = vpop.f32.mrb[0].mxu0
        %v2497 = vadd.f32 %v2347, %v2496
        %v2498 = vpop.f32.mrb[0].mxu0
        %2499 = vmatprep.mubr.f32.mxu0 %v441
        %2500 = vmatmul.mubr.f32.gmra.mrb[0].mxu0 %v440
        %v2501 = vpop.f32.mrb[0].mxu0
        %v2502 = vadd.f32 %v2352, %v2501
        %v2503 = vpop.f32.mrb[0].mxu0
        %2504 = vmatprep.mubr.f32.mxu0 %v479
        %2505 = vmatmul.mubr.f32.gmra.mrb[0].mxu0 %v478
        %v2506 = vpop.f32.mrb[0].mxu0
        %v2507 = vadd.f32 %v2357, %v2506
        %v2508 = vpop.f32.mrb[0].mxu0
        %2509 = vmatprep.mubr.f32.mxu0 %v517
        %2510 = vmatmul.mubr.f32.gmra.mrb[0].mxu0 %v516
        %v2511 = vpop.f32.mrb[0].mxu0
        %v2512 = vadd.f32 %v2362, %v2511
        %v2513 = vpop.f32.mrb[0].mxu0
        %2514 = vmatprep.mubr.f32.mxu0 %v555
        %2515 = vmatmul.mubr.f32.gmra.mrb[0].mxu0 %v554
        %v2516 = vpop.f32.mrb[0].mxu0
        %v2517 = vadd.f32 %v2367, %v2516
        %v2518 = vpop.f32.mrb[0].mxu0
        %2519 = vmatprep.mubr.f32.mxu0 %v593
        %2520 = vmatmul.mubr.f32.gmra.mrb[0].mxu0 %v592
        %v2521 = vpop.f32.mrb[0].mxu0
        %v2522 = vadd.f32 %v2372, %v2521
        %v2523 = vpop.f32.mrb[0].mxu0
        %2524 = vmatprep.mubr.f32.mxu0 %v631
        %2525 = vmatmul.mubr.f32.gmra.mrb[0].mxu0 %v630
        %v2526 = vpop.f32.mrb[0].mxu0
        %v2527 = vadd.f32 %v2377, %v2526
        %v2528 = vpop.f32.mrb[0].mxu0
        %2529 = vmatprep.mubr.f32.mxu0 %v669
        %2530 = vmatmul.mubr.f32.gmra.mrb[0].mxu0 %v668
        %v2531 = vpop.f32.mrb[0].mxu0
        %v2532 = vadd.f32 %v2382, %v2531
        %v2533 = vpop.f32.mrb[0].mxu0
        %2534 = vmatprep.mubr.f32.mxu0 %v707
        %2535 = vmatmul.mubr.f32.gmra.mrb[0].mxu0 %v706
        %v2536 = vpop.f32.mrb[0].mxu0
        %v2537 = vadd.f32 %v2387, %v2536
        %v2538 = vpop.f32.mrb[0].mxu0
        %2539 = vmatprep.mubr.f32.mxu0 %v745
        %2540 = vmatmul.mubr.f32.gmra.mrb[0].mxu0 %v744
        %v2541 = vpop.f32.mrb[0].mxu0
        %v2542 = vadd.f32 %v2392, %v2541
        %v2543 = vpop.f32.mrb[0].mxu0
        %2544 = vmatprep.mubr.f32.mxu0 %v783
        %2545 = vmatmul.mubr.f32.gmra.mrb[0].mxu0 %v782
        %v2546 = vpop.f32.mrb[0].mxu0
        %v2547 = vadd.f32 %v2397, %v2546
        %v2548 = vpop.f32.mrb[0].mxu0
        %2549 = vmatprep.mubr.f32.mxu0 %v821
        %2550 = vmatmul.mubr.f32.gmra.mrb[0].mxu0 %v820
        %v2551 = vpop.f32.mrb[0].mxu0
        %v2552 = vadd.f32 %v2402, %v2551
        %v2553 = vpop.f32.mrb[0].mxu0
        %2554 = vdwg.mxu0
        %2555 = vmatprep.subr.mxu0 0.0
        %2556 = vmatpush1.msra.mxu0 %v1070
        %2557 = vmatprep.subr.mxu0 0.0
        %2558 = vmatpush1.msra.mxu0 %v1071
        %2559 = vmatprep.subr.mxu0 0.0
        %2560 = vmatpush1.msra.mxu0 %v1072
        %2561 = vmatprep.subr.mxu0 0.0
        %2562 = vmatpush1.msra.mxu0 %v1073
        %2563 = vmatprep.subr.mxu0 0.0
        %2564 = vmatpush1.msra.mxu0 %v1074
        %2565 = vmatprep.subr.mxu0 0.0
        %2566 = vmatpush1.msra.mxu0 %v1075
        %2567 = vmatprep.subr.mxu0 0.0
        %2568 = vmatpush1.msra.mxu0 %v1076
        %2569 = vmatprep.subr.mxu0 0.0
        %2570 = vmatpush1.msra.mxu0 %v1077
        %2571 = vmatprep.subr.mxu0 0.0
        %2572 = vmatpush1.msra.mxu0 %v1078
        %2573 = vmatprep.subr.mxu0 0.0
        %2574 = vmatpush1.msra.mxu0 %v1079
        %2575 = vmatprep.subr.mxu0 0.0
        %2576 = vmatpush1.msra.mxu0 %v1080
        %2577 = vmatprep.subr.mxu0 0.0
        %2578 = vmatpush1.msra.mxu0 %v1081
        %2579 = vmatprep.subr.mxu0 0.0
        %2580 = vmatpush1.msra.mxu0 %v1082
        %2581 = vmatprep.subr.mxu0 0.0
        %2582 = vmatpush1.msra.mxu0 %v1083
        %2583 = vmatprep.subr.mxu0 0.0
        %2584 = vmatpush1.msra.mxu0 %v1084
        %2585 = vmatprep.subr.mxu0 0.0
        %2586 = vmatpush1.msra.mxu0 %v1085
        %2587 = vmatprep.subr.mxu0 0.0
        %2588 = vmatpush1.msra.mxu0 %v1086
        %2589 = vmatprep.subr.mxu0 0.0
        %2590 = vmatpush1.msra.mxu0 %v1087
        %2591 = vmatprep.subr.mxu0 0.0
        %2592 = vmatpush1.msra.mxu0 %v1088
        %2593 = vmatprep.subr.mxu0 0.0
        %2594 = vmatpush1.msra.mxu0 %v1089
        %2595 = vmatprep.subr.mxu0 0.0
        %2596 = vmatpush1.msra.mxu0 %v1090
        %2597 = vmatprep.subr.mxu0 0.0
        %2598 = vmatpush1.msra.mxu0 %v1091
        %2599 = vmatprep.subr.mxu0 0.0
        %2600 = vmatpush1.msra.mxu0 %v1092
        %2601 = vmatprep.subr.mxu0 0.0
        %2602 = vmatpush1.msra.mxu0 %v1093
        %2603 = vmatprep.subr.mxu0 0.0
        %2604 = vmatpush1.msra.mxu0 %v1094
        %2605 = vmatprep.subr.mxu0 0.0
        %2606 = vmatpush1.msra.mxu0 %v1095
        %2607 = vmatprep.subr.mxu0 0.0
        %2608 = vmatpush1.msra.mxu0 %v1096
        %2609 = vmatprep.subr.mxu0 0.0
        %2610 = vmatpush1.msra.mxu0 %v1097
        %2611 = vmatprep.subr.mxu0 0.0
        %2612 = vmatpush1.msra.mxu0 %v1098
        %2613 = vmatprep.subr.mxu0 0.0
        %2614 = vmatpush1.msra.mxu0 %v1099
        %2615 = vmatprep.subr.mxu0 0.0
        %2616 = vmatpush1.msra.mxu0 %v1100
        %2617 = vmatprep.subr.mxu0 0.0
        %2618 = vmatpush1.msra.mxu0 %v1101
        %2619 = vmatprep.mubr.f32.mxu0 %v215
        %2620 = vmatmul.mubr.f32.gmra.mrb[0].mxu0 %v214
        %v2621 = vpop.f32.mrb[0].mxu0
        %v2622 = vadd.f32 %v2472, %v2621
        %v2623 = vpop.f32.mrb[0].mxu0
        %2624 = vmatprep.mubr.f32.mxu0 %v253
        %2625 = vmatmul.mubr.f32.gmra.mrb[0].mxu0 %v252
        %v2626 = vpop.f32.mrb[0].mxu0
        %v2627 = vadd.f32 %v2477, %v2626
        %v2628 = vpop.f32.mrb[0].mxu0
        %2629 = vmatprep.mubr.f32.mxu0 %v291
        %2630 = vmatmul.mubr.f32.gmra.mrb[0].mxu0 %v290
        %v2631 = vpop.f32.mrb[0].mxu0
        %v2632 = vadd.f32 %v2482, %v2631
        %v2633 = vpop.f32.mrb[0].mxu0
        %2634 = vmatprep.mubr.f32.mxu0 %v329
        %2635 = vmatmul.mubr.f32.gmra.mrb[0].mxu0 %v328
        %v2636 = vpop.f32.mrb[0].mxu0
        %v2637 = vadd.f32 %v2487, %v2636
        %v2638 = vpop.f32.mrb[0].mxu0
        %2639 = vmatprep.mubr.f32.mxu0 %v367
        %2640 = vmatmul.mubr.f32.gmra.mrb[0].mxu0 %v366
        %v2641 = vpop.f32.mrb[0].mxu0
        %v2642 = vadd.f32 %v2492, %v2641
        %v2643 = vpop.f32.mrb[0].mxu0
        %2644 = vmatprep.mubr.f32.mxu0 %v405
        %2645 = vmatmul.mubr.f32.gmra.mrb[0].mxu0 %v404
        %v2646 = vpop.f32.mrb[0].mxu0
        %v2647 = vadd.f32 %v2497, %v2646
        %v2648 = vpop.f32.mrb[0].mxu0
        %2649 = vmatprep.mubr.f32.mxu0 %v443
        %2650 = vmatmul.mubr.f32.gmra.mrb[0].mxu0 %v442
        %v2651 = vpop.f32.mrb[0].mxu0
        %v2652 = vadd.f32 %v2502, %v2651
        %v2653 = vpop.f32.mrb[0].mxu0
        %2654 = vmatprep.mubr.f32.mxu0 %v481
        %2655 = vmatmul.mubr.f32.gmra.mrb[0].mxu0 %v480
        %v2656 = vpop.f32.mrb[0].mxu0
        %v2657 = vadd.f32 %v2507, %v2656
        %v2658 = vpop.f32.mrb[0].mxu0
        %2659 = vmatprep.mubr.f32.mxu0 %v519
        %2660 = vmatmul.mubr.f32.gmra.mrb[0].mxu0 %v518
        %v2661 = vpop.f32.mrb[0].mxu0
        %v2662 = vadd.f32 %v2512, %v2661
        %v2663 = vpop.f32.mrb[0].mxu0
        %2664 = vmatprep.mubr.f32.mxu0 %v557
        %2665 = vmatmul.mubr.f32.gmra.mrb[0].mxu0 %v556
        %v2666 = vpop.f32.mrb[0].mxu0
        %v2667 = vadd.f32 %v2517, %v2666
        %v2668 = vpop.f32.mrb[0].mxu0
        %2669 = vmatprep.mubr.f32.mxu0 %v595
        %2670 = vmatmul.mubr.f32.gmra.mrb[0].mxu0 %v594
        %v2671 = vpop.f32.mrb[0].mxu0
        %v2672 = vadd.f32 %v2522, %v2671
        %v2673 = vpop.f32.mrb[0].mxu0
        %2674 = vmatprep.mubr.f32.mxu0 %v633
        %2675 = vmatmul.mubr.f32.gmra.mrb[0].mxu0 %v632
        %v2676 = vpop.f32.mrb[0].mxu0
        %v2677 = vadd.f32 %v2527, %v2676
        %v2678 = vpop.f32.mrb[0].mxu0
        %2679 = vmatprep.mubr.f32.mxu0 %v671
        %2680 = vmatmul.mubr.f32.gmra.mrb[0].mxu0 %v670
        %v2681 = vpop.f32.mrb[0].mxu0
        %v2682 = vadd.f32 %v2532, %v2681
        %v2683 = vpop.f32.mrb[0].mxu0
        %2684 = vmatprep.mubr.f32.mxu0 %v709
        %2685 = vmatmul.mubr.f32.gmra.mrb[0].mxu0 %v708
        %v2686 = vpop.f32.mrb[0].mxu0
        %v2687 = vadd.f32 %v2537, %v2686
        %v2688 = vpop.f32.mrb[0].mxu0
        %2689 = vmatprep.mubr.f32.mxu0 %v747
        %2690 = vmatmul.mubr.f32.gmra.mrb[0].mxu0 %v746
        %v2691 = vpop.f32.mrb[0].mxu0
        %v2692 = vadd.f32 %v2542, %v2691
        %v2693 = vpop.f32.mrb[0].mxu0
        %2694 = vmatprep.mubr.f32.mxu0 %v785
        %2695 = vmatmul.mubr.f32.gmra.mrb[0].mxu0 %v784
        %v2696 = vpop.f32.mrb[0].mxu0
        %v2697 = vadd.f32 %v2547, %v2696
        %v2698 = vpop.f32.mrb[0].mxu0
        %2699 = vmatprep.mubr.f32.mxu0 %v823
        %2700 = vmatmul.mubr.f32.gmra.mrb[0].mxu0 %v822
        %v2701 = vpop.f32.mrb[0].mxu0
        %v2702 = vadd.f32 %v2552, %v2701
        %v2703 = vpop.f32.mrb[0].mxu0
        %2704 = vdwg.mxu0
        %2705 = vmatprep.subr.mxu0 0.0
        %2706 = vmatpush1.msra.mxu0 %v1102
        %2707 = vmatprep.subr.mxu0 0.0
        %2708 = vmatpush1.msra.mxu0 %v1103
        %2709 = vmatprep.subr.mxu0 0.0
        %2710 = vmatpush1.msra.mxu0 %v1104
        %2711 = vmatprep.subr.mxu0 0.0
        %2712 = vmatpush1.msra.mxu0 %v1105
        %2713 = vmatprep.subr.mxu0 0.0
        %2714 = vmatpush1.msra.mxu0 %v1106
        %2715 = vmatprep.subr.mxu0 0.0
        %2716 = vmatpush1.msra.mxu0 %v1107
        %2717 = vmatprep.subr.mxu0 0.0
        %2718 = vmatpush1.msra.mxu0 %v1108
        %2719 = vmatprep.subr.mxu0 0.0
        %2720 = vmatpush1.msra.mxu0 %v1109
        %2721 = vmatprep.subr.mxu0 0.0
        %2722 = vmatpush1.msra.mxu0 %v1110
        %2723 = vmatprep.subr.mxu0 0.0
        %2724 = vmatpush1.msra.mxu0 %v1111
        %2725 = vmatprep.subr.mxu0 0.0
        %2726 = vmatpush1.msra.mxu0 %v1112
        %2727 = vmatprep.subr.mxu0 0.0
        %2728 = vmatpush1.msra.mxu0 %v1113
        %2729 = vmatprep.subr.mxu0 0.0
        %2730 = vmatpush1.msra.mxu0 %v1114
        %2731 = vmatprep.subr.mxu0 0.0
        %2732 = vmatpush1.msra.mxu0 %v1115
        %2733 = vmatprep.subr.mxu0 0.0
        %2734 = vmatpush1.msra.mxu0 %v1116
        %2735 = vmatprep.subr.mxu0 0.0
        %2736 = vmatpush1.msra.mxu0 %v1117
        %2737 = vmatprep.subr.mxu0 0.0
        %2738 = vmatpush1.msra.mxu0 %v1118
        %2739 = vmatprep.subr.mxu0 0.0
        %2740 = vmatpush1.msra.mxu0 %v1119
        %2741 = vmatprep.subr.mxu0 0.0
        %2742 = vmatpush1.msra.mxu0 %v1120
        %2743 = vmatprep.subr.mxu0 0.0
        %2744 = vmatpush1.msra.mxu0 %v1121
        %2745 = vmatprep.subr.mxu0 0.0
        %2746 = vmatpush1.msra.mxu0 %v1122
        %2747 = vmatprep.subr.mxu0 0.0
        %2748 = vmatpush1.msra.mxu0 %v1123
        %2749 = vmatprep.subr.mxu0 0.0
        %2750 = vmatpush1.msra.mxu0 %v1124
        %2751 = vmatprep.subr.mxu0 0.0
        %2752 = vmatpush1.msra.mxu0 %v1125
        %2753 = vmatprep.subr.mxu0 0.0
        %2754 = vmatpush1.msra.mxu0 %v1126
        %2755 = vmatprep.subr.mxu0 0.0
        %2756 = vmatpush1.msra.mxu0 %v1127
        %2757 = vmatprep.subr.mxu0 0.0
        %2758 = vmatpush1.msra.mxu0 %v1128
        %2759 = vmatprep.subr.mxu0 0.0
        %2760 = vmatpush1.msra.mxu0 %v1129
        %2761 = vmatprep.subr.mxu0 0.0
        %2762 = vmatpush1.msra.mxu0 %v1130
        %2763 = vmatprep.subr.mxu0 0.0
        %2764 = vmatpush1.msra.mxu0 %v1131
        %2765 = vmatprep.subr.mxu0 0.0
        %2766 = vmatpush1.msra.mxu0 %v1132
        %2767 = vmatprep.subr.mxu0 0.0
        %2768 = vmatpush1.msra.mxu0 %v1133
        %2769 = vmatprep.mubr.f32.mxu0 %v217
        %2770 = vmatmul.mubr.f32.gmra.mrb[0].mxu0 %v216
        %v2771 = vpop.f32.mrb[0].mxu0
        %v2772 = vadd.f32 %v2622, %v2771
        %v2773 = vpop.f32.mrb[0].mxu0
        %2774 = vmatprep.mubr.f32.mxu0 %v255
        %2775 = vmatmul.mubr.f32.gmra.mrb[0].mxu0 %v254
        %v2776 = vpop.f32.mrb[0].mxu0
        %v2777 = vadd.f32 %v2627, %v2776
        %v2778 = vpop.f32.mrb[0].mxu0
        %2779 = vmatprep.mubr.f32.mxu0 %v293
        %2780 = vmatmul.mubr.f32.gmra.mrb[0].mxu0 %v292
        %v2781 = vpop.f32.mrb[0].mxu0
        %v2782 = vadd.f32 %v2632, %v2781
        %v2783 = vpop.f32.mrb[0].mxu0
        %2784 = vmatprep.mubr.f32.mxu0 %v331
        %2785 = vmatmul.mubr.f32.gmra.mrb[0].mxu0 %v330
        %v2786 = vpop.f32.mrb[0].mxu0
        %v2787 = vadd.f32 %v2637, %v2786
        %v2788 = vpop.f32.mrb[0].mxu0
        %2789 = vmatprep.mubr.f32.mxu0 %v369
        %2790 = vmatmul.mubr.f32.gmra.mrb[0].mxu0 %v368
        %v2791 = vpop.f32.mrb[0].mxu0
        %v2792 = vadd.f32 %v2642, %v2791
        %v2793 = vpop.f32.mrb[0].mxu0
        %2794 = vmatprep.mubr.f32.mxu0 %v407
        %2795 = vmatmul.mubr.f32.gmra.mrb[0].mxu0 %v406
        %v2796 = vpop.f32.mrb[0].mxu0
        %v2797 = vadd.f32 %v2647, %v2796
        %v2798 = vpop.f32.mrb[0].mxu0
        %2799 = vmatprep.mubr.f32.mxu0 %v445
        %2800 = vmatmul.mubr.f32.gmra.mrb[0].mxu0 %v444
        %v2801 = vpop.f32.mrb[0].mxu0
        %v2802 = vadd.f32 %v2652, %v2801
        %v2803 = vpop.f32.mrb[0].mxu0
        %2804 = vmatprep.mubr.f32.mxu0 %v483
        %2805 = vmatmul.mubr.f32.gmra.mrb[0].mxu0 %v482
        %v2806 = vpop.f32.mrb[0].mxu0
        %v2807 = vadd.f32 %v2657, %v2806
        %v2808 = vpop.f32.mrb[0].mxu0
        %2809 = vmatprep.mubr.f32.mxu0 %v521
        %2810 = vmatmul.mubr.f32.gmra.mrb[0].mxu0 %v520
        %v2811 = vpop.f32.mrb[0].mxu0
        %v2812 = vadd.f32 %v2662, %v2811
        %v2813 = vpop.f32.mrb[0].mxu0
        %2814 = vmatprep.mubr.f32.mxu0 %v559
        %2815 = vmatmul.mubr.f32.gmra.mrb[0].mxu0 %v558
        %v2816 = vpop.f32.mrb[0].mxu0
        %v2817 = vadd.f32 %v2667, %v2816
        %v2818 = vpop.f32.mrb[0].mxu0
        %2819 = vmatprep.mubr.f32.mxu0 %v597
        %2820 = vmatmul.mubr.f32.gmra.mrb[0].mxu0 %v596
        %v2821 = vpop.f32.mrb[0].mxu0
        %v2822 = vadd.f32 %v2672, %v2821
        %v2823 = vpop.f32.mrb[0].mxu0
        %2824 = vmatprep.mubr.f32.mxu0 %v635
        %2825 = vmatmul.mubr.f32.gmra.mrb[0].mxu0 %v634
        %v2826 = vpop.f32.mrb[0].mxu0
        %v2827 = vadd.f32 %v2677, %v2826
        %v2828 = vpop.f32.mrb[0].mxu0
        %2829 = vmatprep.mubr.f32.mxu0 %v673
        %2830 = vmatmul.mubr.f32.gmra.mrb[0].mxu0 %v672
        %v2831 = vpop.f32.mrb[0].mxu0
        %v2832 = vadd.f32 %v2682, %v2831
        %v2833 = vpop.f32.mrb[0].mxu0
        %2834 = vmatprep.mubr.f32.mxu0 %v711
        %2835 = vmatmul.mubr.f32.gmra.mrb[0].mxu0 %v710
        %v2836 = vpop.f32.mrb[0].mxu0
        %v2837 = vadd.f32 %v2687, %v2836
        %v2838 = vpop.f32.mrb[0].mxu0
        %2839 = vmatprep.mubr.f32.mxu0 %v749
        %2840 = vmatmul.mubr.f32.gmra.mrb[0].mxu0 %v748
        %v2841 = vpop.f32.mrb[0].mxu0
        %v2842 = vadd.f32 %v2692, %v2841
        %v2843 = vpop.f32.mrb[0].mxu0
        %2844 = vmatprep.mubr.f32.mxu0 %v787
        %2845 = vmatmul.mubr.f32.gmra.mrb[0].mxu0 %v786
        %v2846 = vpop.f32.mrb[0].mxu0
        %v2847 = vadd.f32 %v2697, %v2846
        %v2848 = vpop.f32.mrb[0].mxu0
        %2849 = vmatprep.mubr.f32.mxu0 %v825
        %2850 = vmatmul.mubr.f32.gmra.mrb[0].mxu0 %v824
        %v2851 = vpop.f32.mrb[0].mxu0
        %v2852 = vadd.f32 %v2702, %v2851
        %v2853 = vpop.f32.mrb[0].mxu0
        %2854 = vdwg.mxu0
        %2855 = vmatprep.subr.mxu0 0.0
        %2856 = vmatpush1.msra.mxu0 %v1134
        %2857 = vmatprep.subr.mxu0 0.0
        %2858 = vmatpush1.msra.mxu0 %v1135
        %2859 = vmatprep.subr.mxu0 0.0
        %2860 = vmatpush1.msra.mxu0 %v1136
        %2861 = vmatprep.subr.mxu0 0.0
        %2862 = vmatpush1.msra.mxu0 %v1137
        %2863 = vmatprep.subr.mxu0 0.0
        %2864 = vmatpush1.msra.mxu0 %v1138
        %2865 = vmatprep.subr.mxu0 0.0
        %2866 = vmatpush1.msra.mxu0 %v1139
        %2867 = vmatprep.subr.mxu0 0.0
        %2868 = vmatpush1.msra.mxu0 %v1140
        %2869 = vmatprep.subr.mxu0 0.0
        %2870 = vmatpush1.msra.mxu0 %v1141
        %2871 = vmatprep.subr.mxu0 0.0
        %2872 = vmatpush1.msra.mxu0 %v1142
        %2873 = vmatprep.subr.mxu0 0.0
        %2874 = vmatpush1.msra.mxu0 %v1143
        %2875 = vmatprep.subr.mxu0 0.0
        %2876 = vmatpush1.msra.mxu0 %v1144
        %2877 = vmatprep.subr.mxu0 0.0
        %2878 = vmatpush1.msra.mxu0 %v1145
        %2879 = vmatprep.subr.mxu0 0.0
        %2880 = vmatpush1.msra.mxu0 %v1146
        %2881 = vmatprep.subr.mxu0 0.0
        %2882 = vmatpush1.msra.mxu0 %v1147
        %2883 = vmatprep.subr.mxu0 0.0
        %2884 = vmatpush1.msra.mxu0 %v1148
        %2885 = vmatprep.subr.mxu0 0.0
        %2886 = vmatpush1.msra.mxu0 %v1149
        %2887 = vmatprep.subr.mxu0 0.0
        %2888 = vmatpush1.msra.mxu0 %v1150
        %2889 = vmatprep.subr.mxu0 0.0
        %2890 = vmatpush1.msra.mxu0 %v1151
        %2891 = vmatprep.subr.mxu0 0.0
        %2892 = vmatpush1.msra.mxu0 %v1152
        %2893 = vmatprep.subr.mxu0 0.0
        %2894 = vmatpush1.msra.mxu0 %v1153
        %2895 = vmatprep.subr.mxu0 0.0
        %2896 = vmatpush1.msra.mxu0 %v1154
        %2897 = vmatprep.subr.mxu0 0.0
        %2898 = vmatpush1.msra.mxu0 %v1155
        %2899 = vmatprep.subr.mxu0 0.0
        %2900 = vmatpush1.msra.mxu0 %v1156
        %2901 = vmatprep.subr.mxu0 0.0
        %2902 = vmatpush1.msra.mxu0 %v1157
        %2903 = vmatprep.subr.mxu0 0.0
        %2904 = vmatpush1.msra.mxu0 %v1158
        %2905 = vmatprep.subr.mxu0 0.0
        %2906 = vmatpush1.msra.mxu0 %v1159
        %2907 = vmatprep.subr.mxu0 0.0
        %2908 = vmatpush1.msra.mxu0 %v1160
        %2909 = vmatprep.subr.mxu0 0.0
        %2910 = vmatpush1.msra.mxu0 %v1161
        %2911 = vmatprep.subr.mxu0 0.0
        %2912 = vmatpush1.msra.mxu0 %v1162
        %2913 = vmatprep.subr.mxu0 0.0
        %2914 = vmatpush1.msra.mxu0 %v1163
        %2915 = vmatprep.subr.mxu0 0.0
        %2916 = vmatpush1.msra.mxu0 %v1164
        %2917 = vmatprep.subr.mxu0 0.0
        %2918 = vmatpush1.msra.mxu0 %v1165
        %2919 = vmatprep.mubr.f32.mxu0 %v219
        %2920 = vmatmul.mubr.f32.gmra.mrb[0].mxu0 %v218
        %v2921 = vpop.f32.mrb[0].mxu0
        %v2922 = vadd.f32 %v2772, %v2921
        %v2923 = vpop.f32.mrb[0].mxu0
        %2924 = vmatprep.mubr.f32.mxu0 %v257
        %2925 = vmatmul.mubr.f32.gmra.mrb[0].mxu0 %v256
        %v2926 = vpop.f32.mrb[0].mxu0
        %v2927 = vadd.f32 %v2777, %v2926
        %v2928 = vpop.f32.mrb[0].mxu0
        %2929 = vmatprep.mubr.f32.mxu0 %v295
        %2930 = vmatmul.mubr.f32.gmra.mrb[0].mxu0 %v294
        %v2931 = vpop.f32.mrb[0].mxu0
        %v2932 = vadd.f32 %v2782, %v2931
        %v2933 = vpop.f32.mrb[0].mxu0
        %2934 = vmatprep.mubr.f32.mxu0 %v333
        %2935 = vmatmul.mubr.f32.gmra.mrb[0].mxu0 %v332
        %v2936 = vpop.f32.mrb[0].mxu0
        %v2937 = vadd.f32 %v2787, %v2936
        %v2938 = vpop.f32.mrb[0].mxu0
        %2939 = vmatprep.mubr.f32.mxu0 %v371
        %2940 = vmatmul.mubr.f32.gmra.mrb[0].mxu0 %v370
        %v2941 = vpop.f32.mrb[0].mxu0
        %v2942 = vadd.f32 %v2792, %v2941
        %v2943 = vpop.f32.mrb[0].mxu0
        %2944 = vmatprep.mubr.f32.mxu0 %v409
        %2945 = vmatmul.mubr.f32.gmra.mrb[0].mxu0 %v408
        %v2946 = vpop.f32.mrb[0].mxu0
        %v2947 = vadd.f32 %v2797, %v2946
        %v2948 = vpop.f32.mrb[0].mxu0
        %2949 = vmatprep.mubr.f32.mxu0 %v447
        %2950 = vmatmul.mubr.f32.gmra.mrb[0].mxu0 %v446
        %v2951 = vpop.f32.mrb[0].mxu0
        %v2952 = vadd.f32 %v2802, %v2951
        %v2953 = vpop.f32.mrb[0].mxu0
        %2954 = vmatprep.mubr.f32.mxu0 %v485
        %2955 = vmatmul.mubr.f32.gmra.mrb[0].mxu0 %v484
        %v2956 = vpop.f32.mrb[0].mxu0
        %v2957 = vadd.f32 %v2807, %v2956
        %v2958 = vpop.f32.mrb[0].mxu0
        %2959 = vmatprep.mubr.f32.mxu0 %v523
        %2960 = vmatmul.mubr.f32.gmra.mrb[0].mxu0 %v522
        %v2961 = vpop.f32.mrb[0].mxu0
        %v2962 = vadd.f32 %v2812, %v2961
        %v2963 = vpop.f32.mrb[0].mxu0
        %2964 = vmatprep.mubr.f32.mxu0 %v561
        %2965 = vmatmul.mubr.f32.gmra.mrb[0].mxu0 %v560
        %v2966 = vpop.f32.mrb[0].mxu0
        %v2967 = vadd.f32 %v2817, %v2966
        %v2968 = vpop.f32.mrb[0].mxu0
        %2969 = vmatprep.mubr.f32.mxu0 %v599
        %2970 = vmatmul.mubr.f32.gmra.mrb[0].mxu0 %v598
        %v2971 = vpop.f32.mrb[0].mxu0
        %v2972 = vadd.f32 %v2822, %v2971
        %v2973 = vpop.f32.mrb[0].mxu0
        %2974 = vmatprep.mubr.f32.mxu0 %v637
        %2975 = vmatmul.mubr.f32.gmra.mrb[0].mxu0 %v636
        %v2976 = vpop.f32.mrb[0].mxu0
        %v2977 = vadd.f32 %v2827, %v2976
        %v2978 = vpop.f32.mrb[0].mxu0
        %2979 = vmatprep.mubr.f32.mxu0 %v675
        %2980 = vmatmul.mubr.f32.gmra.mrb[0].mxu0 %v674
        %v2981 = vpop.f32.mrb[0].mxu0
        %v2982 = vadd.f32 %v2832, %v2981
        %v2983 = vpop.f32.mrb[0].mxu0
        %2984 = vmatprep.mubr.f32.mxu0 %v713
        %2985 = vmatmul.mubr.f32.gmra.mrb[0].mxu0 %v712
        %v2986 = vpop.f32.mrb[0].mxu0
        %v2987 = vadd.f32 %v2837, %v2986
        %v2988 = vpop.f32.mrb[0].mxu0
        %2989 = vmatprep.mubr.f32.mxu0 %v751
        %2990 = vmatmul.mubr.f32.gmra.mrb[0].mxu0 %v750
        %v2991 = vpop.f32.mrb[0].mxu0
        %v2992 = vadd.f32 %v2842, %v2991
        %v2993 = vpop.f32.mrb[0].mxu0
        %2994 = vmatprep.mubr.f32.mxu0 %v789
        %2995 = vmatmul.mubr.f32.gmra.mrb[0].mxu0 %v788
        %v2996 = vpop.f32.mrb[0].mxu0
        %v2997 = vadd.f32 %v2847, %v2996
        %v2998 = vpop.f32.mrb[0].mxu0
        %2999 = vmatprep.mubr.f32.mxu0 %v827
        %3000 = vmatmul.mubr.f32.gmra.mrb[0].mxu0 %v826
        %v3001 = vpop.f32.mrb[0].mxu0
        %v3002 = vadd.f32 %v2852, %v3001
        %v3003 = vpop.f32.mrb[0].mxu0
        %3004 = vdwg.mxu0
        %3005 = vmatprep.subr.mxu0 0.0
        %3006 = vmatpush1.msra.mxu0 %v1166
        %3007 = vmatprep.subr.mxu0 0.0
        %3008 = vmatpush1.msra.mxu0 %v1167
        %3009 = vmatprep.subr.mxu0 0.0
        %3010 = vmatpush1.msra.mxu0 %v1168
        %3011 = vmatprep.subr.mxu0 0.0
        %3012 = vmatpush1.msra.mxu0 %v1169
        %3013 = vmatprep.subr.mxu0 0.0
        %3014 = vmatpush1.msra.mxu0 %v1170
        %3015 = vmatprep.subr.mxu0 0.0
        %3016 = vmatpush1.msra.mxu0 %v1171
        %3017 = vmatprep.subr.mxu0 0.0
        %3018 = vmatpush1.msra.mxu0 %v1172
        %3019 = vmatprep.subr.mxu0 0.0
        %3020 = vmatpush1.msra.mxu0 %v1173
        %3021 = vmatprep.subr.mxu0 0.0
        %3022 = vmatpush1.msra.mxu0 %v1174
        %3023 = vmatprep.subr.mxu0 0.0
        %3024 = vmatpush1.msra.mxu0 %v1175
        %3025 = vmatprep.subr.mxu0 0.0
        %3026 = vmatpush1.msra.mxu0 %v1176
        %3027 = vmatprep.subr.mxu0 0.0
        %3028 = vmatpush1.msra.mxu0 %v1177
        %3029 = vmatprep.subr.mxu0 0.0
        %3030 = vmatpush1.msra.mxu0 %v1178
        %3031 = vmatprep.subr.mxu0 0.0
        %3032 = vmatpush1.msra.mxu0 %v1179
        %3033 = vmatprep.subr.mxu0 0.0
        %3034 = vmatpush1.msra.mxu0 %v1180
        %3035 = vmatprep.subr.mxu0 0.0
        %3036 = vmatpush1.msra.mxu0 %v1181
        %3037 = vmatprep.subr.mxu0 0.0
        %3038 = vmatpush1.msra.mxu0 %v1182
        %3039 = vmatprep.subr.mxu0 0.0
        %3040 = vmatpush1.msra.mxu0 %v1183
        %3041 = vmatprep.subr.mxu0 0.0
        %3042 = vmatpush1.msra.mxu0 %v1184
        %3043 = vmatprep.subr.mxu0 0.0
        %3044 = vmatpush1.msra.mxu0 %v1185
        %3045 = vmatprep.subr.mxu0 0.0
        %3046 = vmatpush1.msra.mxu0 %v1186
        %3047 = vmatprep.subr.mxu0 0.0
        %3048 = vmatpush1.msra.mxu0 %v1187
        %3049 = vmatprep.subr.mxu0 0.0
        %3050 = vmatpush1.msra.mxu0 %v1188
        %3051 = vmatprep.subr.mxu0 0.0
        %3052 = vmatpush1.msra.mxu0 %v1189
        %3053 = vmatprep.subr.mxu0 0.0
        %3054 = vmatpush1.msra.mxu0 %v1190
        %3055 = vmatprep.subr.mxu0 0.0
        %3056 = vmatpush1.msra.mxu0 %v1191
        %3057 = vmatprep.subr.mxu0 0.0
        %3058 = vmatpush1.msra.mxu0 %v1192
        %3059 = vmatprep.subr.mxu0 0.0
        %3060 = vmatpush1.msra.mxu0 %v1193
        %3061 = vmatprep.subr.mxu0 0.0
        %3062 = vmatpush1.msra.mxu0 %v1194
        %3063 = vmatprep.subr.mxu0 0.0
        %3064 = vmatpush1.msra.mxu0 %v1195
        %3065 = vmatprep.subr.mxu0 0.0
        %3066 = vmatpush1.msra.mxu0 %v1196
        %3067 = vmatprep.subr.mxu0 0.0
        %3068 = vmatpush1.msra.mxu0 %v1197
        %3069 = vmatprep.mubr.f32.mxu0 %v221
        %3070 = vmatmul.mubr.f32.gmra.mrb[0].mxu0 %v220
        %v3071 = vpop.f32.mrb[0].mxu0
        %v3072 = vadd.f32 %v2922, %v3071
        %v3073 = vpop.f32.mrb[0].mxu0
        %3074 = vmatprep.mubr.f32.mxu0 %v259
        %3075 = vmatmul.mubr.f32.gmra.mrb[0].mxu0 %v258
        %v3076 = vpop.f32.mrb[0].mxu0
        %v3077 = vadd.f32 %v2927, %v3076
        %v3078 = vpop.f32.mrb[0].mxu0
        %3079 = vmatprep.mubr.f32.mxu0 %v297
        %3080 = vmatmul.mubr.f32.gmra.mrb[0].mxu0 %v296
        %v3081 = vpop.f32.mrb[0].mxu0
        %v3082 = vadd.f32 %v2932, %v3081
        %v3083 = vpop.f32.mrb[0].mxu0
        %3084 = vmatprep.mubr.f32.mxu0 %v335
        %3085 = vmatmul.mubr.f32.gmra.mrb[0].mxu0 %v334
        %v3086 = vpop.f32.mrb[0].mxu0
        %v3087 = vadd.f32 %v2937, %v3086
        %v3088 = vpop.f32.mrb[0].mxu0
        %3089 = vmatprep.mubr.f32.mxu0 %v373
        %3090 = vmatmul.mubr.f32.gmra.mrb[0].mxu0 %v372
        %v3091 = vpop.f32.mrb[0].mxu0
        %v3092 = vadd.f32 %v2942, %v3091
        %v3093 = vpop.f32.mrb[0].mxu0
        %3094 = vmatprep.mubr.f32.mxu0 %v411
        %3095 = vmatmul.mubr.f32.gmra.mrb[0].mxu0 %v410
        %v3096 = vpop.f32.mrb[0].mxu0
        %v3097 = vadd.f32 %v2947, %v3096
        %v3098 = vpop.f32.mrb[0].mxu0
        %3099 = vmatprep.mubr.f32.mxu0 %v449
        %3100 = vmatmul.mubr.f32.gmra.mrb[0].mxu0 %v448
        %v3101 = vpop.f32.mrb[0].mxu0
        %v3102 = vadd.f32 %v2952, %v3101
        %v3103 = vpop.f32.mrb[0].mxu0
        %3104 = vmatprep.mubr.f32.mxu0 %v487
        %3105 = vmatmul.mubr.f32.gmra.mrb[0].mxu0 %v486
        %v3106 = vpop.f32.mrb[0].mxu0
        %v3107 = vadd.f32 %v2957, %v3106
        %v3108 = vpop.f32.mrb[0].mxu0
        %3109 = vmatprep.mubr.f32.mxu0 %v525
        %3110 = vmatmul.mubr.f32.gmra.mrb[0].mxu0 %v524
        %v3111 = vpop.f32.mrb[0].mxu0
        %v3112 = vadd.f32 %v2962, %v3111
        %v3113 = vpop.f32.mrb[0].mxu0
        %3114 = vmatprep.mubr.f32.mxu0 %v563
        %3115 = vmatmul.mubr.f32.gmra.mrb[0].mxu0 %v562
        %v3116 = vpop.f32.mrb[0].mxu0
        %v3117 = vadd.f32 %v2967, %v3116
        %v3118 = vpop.f32.mrb[0].mxu0
        %3119 = vmatprep.mubr.f32.mxu0 %v601
        %3120 = vmatmul.mubr.f32.gmra.mrb[0].mxu0 %v600
        %v3121 = vpop.f32.mrb[0].mxu0
        %v3122 = vadd.f32 %v2972, %v3121
        %v3123 = vpop.f32.mrb[0].mxu0
        %3124 = vmatprep.mubr.f32.mxu0 %v639
        %3125 = vmatmul.mubr.f32.gmra.mrb[0].mxu0 %v638
        %v3126 = vpop.f32.mrb[0].mxu0
        %v3127 = vadd.f32 %v2977, %v3126
        %v3128 = vpop.f32.mrb[0].mxu0
        %3129 = vmatprep.mubr.f32.mxu0 %v677
        %3130 = vmatmul.mubr.f32.gmra.mrb[0].mxu0 %v676
        %v3131 = vpop.f32.mrb[0].mxu0
        %v3132 = vadd.f32 %v2982, %v3131
        %v3133 = vpop.f32.mrb[0].mxu0
        %3134 = vmatprep.mubr.f32.mxu0 %v715
        %3135 = vmatmul.mubr.f32.gmra.mrb[0].mxu0 %v714
        %v3136 = vpop.f32.mrb[0].mxu0
        %v3137 = vadd.f32 %v2987, %v3136
        %v3138 = vpop.f32.mrb[0].mxu0
        %3139 = vmatprep.mubr.f32.mxu0 %v753
        %3140 = vmatmul.mubr.f32.gmra.mrb[0].mxu0 %v752
        %v3141 = vpop.f32.mrb[0].mxu0
        %v3142 = vadd.f32 %v2992, %v3141
        %v3143 = vpop.f32.mrb[0].mxu0
        %3144 = vmatprep.mubr.f32.mxu0 %v791
        %3145 = vmatmul.mubr.f32.gmra.mrb[0].mxu0 %v790
        %v3146 = vpop.f32.mrb[0].mxu0
        %v3147 = vadd.f32 %v2997, %v3146
        %v3148 = vpop.f32.mrb[0].mxu0
        %3149 = vmatprep.mubr.f32.mxu0 %v829
        %3150 = vmatmul.mubr.f32.gmra.mrb[0].mxu0 %v828
        %v3151 = vpop.f32.mrb[0].mxu0
        %v3152 = vadd.f32 %v3002, %v3151
        %v3153 = vpop.f32.mrb[0].mxu0
        %3154 = vdwg.mxu0
        %3155 = vmatprep.subr.mxu0 0.0
        %3156 = vmatpush1.msra.mxu0 %v1198
        %3157 = vmatprep.subr.mxu0 0.0
        %3158 = vmatpush1.msra.mxu0 %v1199
        %3159 = vmatprep.subr.mxu0 0.0
        %3160 = vmatpush1.msra.mxu0 %v1200
        %3161 = vmatprep.subr.mxu0 0.0
        %3162 = vmatpush1.msra.mxu0 %v1201
        %3163 = vmatprep.subr.mxu0 0.0
        %3164 = vmatpush1.msra.mxu0 %v1202
        %3165 = vmatprep.subr.mxu0 0.0
        %3166 = vmatpush1.msra.mxu0 %v1203
        %3167 = vmatprep.subr.mxu0 0.0
        %3168 = vmatpush1.msra.mxu0 %v1204
        %3169 = vmatprep.subr.mxu0 0.0
        %3170 = vmatpush1.msra.mxu0 %v1205
        %3171 = vmatprep.subr.mxu0 0.0
        %3172 = vmatpush1.msra.mxu0 %v1206
        %3173 = vmatprep.subr.mxu0 0.0
        %3174 = vmatpush1.msra.mxu0 %v1207
        %3175 = vmatprep.subr.mxu0 0.0
        %3176 = vmatpush1.msra.mxu0 %v1208
        %3177 = vmatprep.subr.mxu0 0.0
        %3178 = vmatpush1.msra.mxu0 %v1209
        %3179 = vmatprep.subr.mxu0 0.0
        %3180 = vmatpush1.msra.mxu0 %v1210
        %3181 = vmatprep.subr.mxu0 0.0
        %3182 = vmatpush1.msra.mxu0 %v1211
        %3183 = vmatprep.subr.mxu0 0.0
        %3184 = vmatpush1.msra.mxu0 %v1212
        %3185 = vmatprep.subr.mxu0 0.0
        %3186 = vmatpush1.msra.mxu0 %v1213
        %3187 = vmatprep.subr.mxu0 0.0
        %3188 = vmatpush1.msra.mxu0 %v1214
        %3189 = vmatprep.subr.mxu0 0.0
        %3190 = vmatpush1.msra.mxu0 %v1215
        %3191 = vmatprep.subr.mxu0 0.0
        %3192 = vmatpush1.msra.mxu0 %v1216
        %3193 = vmatprep.subr.mxu0 0.0
        %3194 = vmatpush1.msra.mxu0 %v1217
        %3195 = vmatprep.subr.mxu0 0.0
        %3196 = vmatpush1.msra.mxu0 %v1218
        %3197 = vmatprep.subr.mxu0 0.0
        %3198 = vmatpush1.msra.mxu0 %v1219
        %3199 = vmatprep.subr.mxu0 0.0
        %3200 = vmatpush1.msra.mxu0 %v1220
        %3201 = vmatprep.subr.mxu0 0.0
        %3202 = vmatpush1.msra.mxu0 %v1221
        %3203 = vmatprep.subr.mxu0 0.0
        %3204 = vmatpush1.msra.mxu0 %v1222
        %3205 = vmatprep.subr.mxu0 0.0
        %3206 = vmatpush1.msra.mxu0 %v1223
        %3207 = vmatprep.subr.mxu0 0.0
        %3208 = vmatpush1.msra.mxu0 %v1224
        %3209 = vmatprep.subr.mxu0 0.0
        %3210 = vmatpush1.msra.mxu0 %v1225
        %3211 = vmatprep.subr.mxu0 0.0
        %3212 = vmatpush1.msra.mxu0 %v1226
        %3213 = vmatprep.subr.mxu0 0.0
        %3214 = vmatpush1.msra.mxu0 %v1227
        %3215 = vmatprep.subr.mxu0 0.0
        %3216 = vmatpush1.msra.mxu0 %v1228
        %3217 = vmatprep.subr.mxu0 0.0
        %3218 = vmatpush1.msra.mxu0 %v1229
        %3219 = vmatprep.mubr.f32.mxu0 %v223
        %3220 = vmatmul.mubr.f32.gmra.mrb[0].mxu0 %v222
        %v3221 = vpop.f32.mrb[0].mxu0
        %v3222 = vadd.f32 %v3072, %v3221
        %v3223 = vpop.f32.mrb[0].mxu0
        %3224 = vmatprep.mubr.f32.mxu0 %v261
        %3225 = vmatmul.mubr.f32.gmra.mrb[0].mxu0 %v260
        %v3226 = vpop.f32.mrb[0].mxu0
        %v3227 = vadd.f32 %v3077, %v3226
        %v3228 = vpop.f32.mrb[0].mxu0
        %3229 = vmatprep.mubr.f32.mxu0 %v299
        %3230 = vmatmul.mubr.f32.gmra.mrb[0].mxu0 %v298
        %v3231 = vpop.f32.mrb[0].mxu0
        %v3232 = vadd.f32 %v3082, %v3231
        %v3233 = vpop.f32.mrb[0].mxu0
        %3234 = vmatprep.mubr.f32.mxu0 %v337
        %3235 = vmatmul.mubr.f32.gmra.mrb[0].mxu0 %v336
        %v3236 = vpop.f32.mrb[0].mxu0
        %v3237 = vadd.f32 %v3087, %v3236
        %v3238 = vpop.f32.mrb[0].mxu0
        %3239 = vmatprep.mubr.f32.mxu0 %v375
        %3240 = vmatmul.mubr.f32.gmra.mrb[0].mxu0 %v374
        %v3241 = vpop.f32.mrb[0].mxu0
        %v3242 = vadd.f32 %v3092, %v3241
        %v3243 = vpop.f32.mrb[0].mxu0
        %3244 = vmatprep.mubr.f32.mxu0 %v413
        %3245 = vmatmul.mubr.f32.gmra.mrb[0].mxu0 %v412
        %v3246 = vpop.f32.mrb[0].mxu0
        %v3247 = vadd.f32 %v3097, %v3246
        %v3248 = vpop.f32.mrb[0].mxu0
        %3249 = vmatprep.mubr.f32.mxu0 %v451
        %3250 = vmatmul.mubr.f32.gmra.mrb[0].mxu0 %v450
        %v3251 = vpop.f32.mrb[0].mxu0
        %v3252 = vadd.f32 %v3102, %v3251
        %v3253 = vpop.f32.mrb[0].mxu0
        %3254 = vmatprep.mubr.f32.mxu0 %v489
        %3255 = vmatmul.mubr.f32.gmra.mrb[0].mxu0 %v488
        %v3256 = vpop.f32.mrb[0].mxu0
        %v3257 = vadd.f32 %v3107, %v3256
        %v3258 = vpop.f32.mrb[0].mxu0
        %3259 = vmatprep.mubr.f32.mxu0 %v527
        %3260 = vmatmul.mubr.f32.gmra.mrb[0].mxu0 %v526
        %v3261 = vpop.f32.mrb[0].mxu0
        %v3262 = vadd.f32 %v3112, %v3261
        %v3263 = vpop.f32.mrb[0].mxu0
        %3264 = vmatprep.mubr.f32.mxu0 %v565
        %3265 = vmatmul.mubr.f32.gmra.mrb[0].mxu0 %v564
        %v3266 = vpop.f32.mrb[0].mxu0
        %v3267 = vadd.f32 %v3117, %v3266
        %v3268 = vpop.f32.mrb[0].mxu0
        %3269 = vmatprep.mubr.f32.mxu0 %v603
        %3270 = vmatmul.mubr.f32.gmra.mrb[0].mxu0 %v602
        %v3271 = vpop.f32.mrb[0].mxu0
        %v3272 = vadd.f32 %v3122, %v3271
        %v3273 = vpop.f32.mrb[0].mxu0
        %3274 = vmatprep.mubr.f32.mxu0 %v641
        %3275 = vmatmul.mubr.f32.gmra.mrb[0].mxu0 %v640
        %v3276 = vpop.f32.mrb[0].mxu0
        %v3277 = vadd.f32 %v3127, %v3276
        %v3278 = vpop.f32.mrb[0].mxu0
        %3279 = vmatprep.mubr.f32.mxu0 %v679
        %3280 = vmatmul.mubr.f32.gmra.mrb[0].mxu0 %v678
        %v3281 = vpop.f32.mrb[0].mxu0
        %v3282 = vadd.f32 %v3132, %v3281
        %v3283 = vpop.f32.mrb[0].mxu0
        %3284 = vmatprep.mubr.f32.mxu0 %v717
        %3285 = vmatmul.mubr.f32.gmra.mrb[0].mxu0 %v716
        %v3286 = vpop.f32.mrb[0].mxu0
        %v3287 = vadd.f32 %v3137, %v3286
        %v3288 = vpop.f32.mrb[0].mxu0
        %3289 = vmatprep.mubr.f32.mxu0 %v755
        %3290 = vmatmul.mubr.f32.gmra.mrb[0].mxu0 %v754
        %v3291 = vpop.f32.mrb[0].mxu0
        %v3292 = vadd.f32 %v3142, %v3291
        %v3293 = vpop.f32.mrb[0].mxu0
        %3294 = vmatprep.mubr.f32.mxu0 %v793
        %3295 = vmatmul.mubr.f32.gmra.mrb[0].mxu0 %v792
        %v3296 = vpop.f32.mrb[0].mxu0
        %v3297 = vadd.f32 %v3147, %v3296
        %v3298 = vpop.f32.mrb[0].mxu0
        %3299 = vmatprep.mubr.f32.mxu0 %v831
        %3300 = vmatmul.mubr.f32.gmra.mrb[0].mxu0 %v830
        %v3301 = vpop.f32.mrb[0].mxu0
        %v3302 = vadd.f32 %v3152, %v3301
        %v3303 = vpop.f32.mrb[0].mxu0
        %3304 = vdwg.mxu0
        %3305 = vmatprep.subr.mxu0 0.0
        %3306 = vmatpush1.msra.mxu0 %v1230
        %3307 = vmatprep.subr.mxu0 0.0
        %3308 = vmatpush1.msra.mxu0 %v1231
        %3309 = vmatprep.subr.mxu0 0.0
        %3310 = vmatpush1.msra.mxu0 %v1232
        %3311 = vmatprep.subr.mxu0 0.0
        %3312 = vmatpush1.msra.mxu0 %v1233
        %3313 = vmatprep.subr.mxu0 0.0
        %3314 = vmatpush1.msra.mxu0 %v1234
        %3315 = vmatprep.subr.mxu0 0.0
        %3316 = vmatpush1.msra.mxu0 %v1235
        %3317 = vmatprep.subr.mxu0 0.0
        %3318 = vmatpush1.msra.mxu0 %v1236
        %3319 = vmatprep.subr.mxu0 0.0
        %3320 = vmatpush1.msra.mxu0 %v1237
        %3321 = vmatprep.subr.mxu0 0.0
        %3322 = vmatpush1.msra.mxu0 %v1238
        %3323 = vmatprep.subr.mxu0 0.0
        %3324 = vmatpush1.msra.mxu0 %v1239
        %3325 = vmatprep.subr.mxu0 0.0
        %3326 = vmatpush1.msra.mxu0 %v1240
        %3327 = vmatprep.subr.mxu0 0.0
        %3328 = vmatpush1.msra.mxu0 %v1241
        %3329 = vmatprep.subr.mxu0 0.0
        %3330 = vmatpush1.msra.mxu0 %v1242
        %3331 = vmatprep.subr.mxu0 0.0
        %3332 = vmatpush1.msra.mxu0 %v1243
        %3333 = vmatprep.subr.mxu0 0.0
        %3334 = vmatpush1.msra.mxu0 %v1244
        %3335 = vmatprep.subr.mxu0 0.0
        %3336 = vmatpush1.msra.mxu0 %v1245
        %3337 = vmatprep.subr.mxu0 0.0
        %3338 = vmatpush1.msra.mxu0 %v1246
        %3339 = vmatprep.subr.mxu0 0.0
        %3340 = vmatpush1.msra.mxu0 %v1247
        %3341 = vmatprep.subr.mxu0 0.0
        %3342 = vmatpush1.msra.mxu0 %v1248
        %3343 = vmatprep.subr.mxu0 0.0
        %3344 = vmatpush1.msra.mxu0 %v1249
        %3345 = vmatprep.subr.mxu0 0.0
        %3346 = vmatpush1.msra.mxu0 %v1250
        %3347 = vmatprep.subr.mxu0 0.0
        %3348 = vmatpush1.msra.mxu0 %v1251
        %3349 = vmatprep.subr.mxu0 0.0
        %3350 = vmatpush1.msra.mxu0 %v1252
        %3351 = vmatprep.subr.mxu0 0.0
        %3352 = vmatpush1.msra.mxu0 %v1253
        %3353 = vmatprep.subr.mxu0 0.0
        %3354 = vmatpush1.msra.mxu0 %v1254
        %3355 = vmatprep.subr.mxu0 0.0
        %3356 = vmatpush1.msra.mxu0 %v1255
        %3357 = vmatprep.subr.mxu0 0.0
        %3358 = vmatpush1.msra.mxu0 %v1256
        %3359 = vmatprep.subr.mxu0 0.0
        %3360 = vmatpush1.msra.mxu0 %v1257
        %3361 = vmatprep.subr.mxu0 0.0
        %3362 = vmatpush1.msra.mxu0 %v1258
        %3363 = vmatprep.subr.mxu0 0.0
        %3364 = vmatpush1.msra.mxu0 %v1259
        %3365 = vmatprep.subr.mxu0 0.0
        %3366 = vmatpush1.msra.mxu0 %v1260
        %3367 = vmatprep.subr.mxu0 0.0
        %3368 = vmatpush1.msra.mxu0 %v1261
        %3369 = vmatprep.mubr.f32.mxu0 %v225
        %3370 = vmatmul.mubr.f32.gmra.mrb[0].mxu0 %v224
        %v3371 = vpop.f32.mrb[0].mxu0
        %v3372 = vadd.f32 %v3222, %v3371
        %v3373 = vpop.f32.mrb[0].mxu0
        %3374 = vmatprep.mubr.f32.mxu0 %v263
        %3375 = vmatmul.mubr.f32.gmra.mrb[0].mxu0 %v262
        %v3376 = vpop.f32.mrb[0].mxu0
        %v3377 = vadd.f32 %v3227, %v3376
        %v3378 = vpop.f32.mrb[0].mxu0
        %3379 = vmatprep.mubr.f32.mxu0 %v301
        %3380 = vmatmul.mubr.f32.gmra.mrb[0].mxu0 %v300
        %v3381 = vpop.f32.mrb[0].mxu0
        %v3382 = vadd.f32 %v3232, %v3381
        %v3383 = vpop.f32.mrb[0].mxu0
        %3384 = vmatprep.mubr.f32.mxu0 %v339
        %3385 = vmatmul.mubr.f32.gmra.mrb[0].mxu0 %v338
        %v3386 = vpop.f32.mrb[0].mxu0
        %v3387 = vadd.f32 %v3237, %v3386
        %v3388 = vpop.f32.mrb[0].mxu0
        %3389 = vmatprep.mubr.f32.mxu0 %v377
        %3390 = vmatmul.mubr.f32.gmra.mrb[0].mxu0 %v376
        %v3391 = vpop.f32.mrb[0].mxu0
        %v3392 = vadd.f32 %v3242, %v3391
        %v3393 = vpop.f32.mrb[0].mxu0
        %3394 = vmatprep.mubr.f32.mxu0 %v415
        %3395 = vmatmul.mubr.f32.gmra.mrb[0].mxu0 %v414
        %v3396 = vpop.f32.mrb[0].mxu0
        %v3397 = vadd.f32 %v3247, %v3396
        %v3398 = vpop.f32.mrb[0].mxu0
        %3399 = vmatprep.mubr.f32.mxu0 %v453
        %3400 = vmatmul.mubr.f32.gmra.mrb[0].mxu0 %v452
        %v3401 = vpop.f32.mrb[0].mxu0
        %v3402 = vadd.f32 %v3252, %v3401
        %v3403 = vpop.f32.mrb[0].mxu0
        %3404 = vmatprep.mubr.f32.mxu0 %v491
        %3405 = vmatmul.mubr.f32.gmra.mrb[0].mxu0 %v490
        %v3406 = vpop.f32.mrb[0].mxu0
        %v3407 = vadd.f32 %v3257, %v3406
        %v3408 = vpop.f32.mrb[0].mxu0
        %3409 = vmatprep.mubr.f32.mxu0 %v529
        %3410 = vmatmul.mubr.f32.gmra.mrb[0].mxu0 %v528
        %v3411 = vpop.f32.mrb[0].mxu0
        %v3412 = vadd.f32 %v3262, %v3411
        %v3413 = vpop.f32.mrb[0].mxu0
        %3414 = vmatprep.mubr.f32.mxu0 %v567
        %3415 = vmatmul.mubr.f32.gmra.mrb[0].mxu0 %v566
        %v3416 = vpop.f32.mrb[0].mxu0
        %v3417 = vadd.f32 %v3267, %v3416
        %v3418 = vpop.f32.mrb[0].mxu0
        %3419 = vmatprep.mubr.f32.mxu0 %v605
        %3420 = vmatmul.mubr.f32.gmra.mrb[0].mxu0 %v604
        %v3421 = vpop.f32.mrb[0].mxu0
        %v3422 = vadd.f32 %v3272, %v3421
        %v3423 = vpop.f32.mrb[0].mxu0
        %3424 = vmatprep.mubr.f32.mxu0 %v643
        %3425 = vmatmul.mubr.f32.gmra.mrb[0].mxu0 %v642
        %v3426 = vpop.f32.mrb[0].mxu0
        %v3427 = vadd.f32 %v3277, %v3426
        %v3428 = vpop.f32.mrb[0].mxu0
        %3429 = vmatprep.mubr.f32.mxu0 %v681
        %3430 = vmatmul.mubr.f32.gmra.mrb[0].mxu0 %v680
        %v3431 = vpop.f32.mrb[0].mxu0
        %v3432 = vadd.f32 %v3282, %v3431
        %v3433 = vpop.f32.mrb[0].mxu0
        %3434 = vmatprep.mubr.f32.mxu0 %v719
        %3435 = vmatmul.mubr.f32.gmra.mrb[0].mxu0 %v718
        %v3436 = vpop.f32.mrb[0].mxu0
        %v3437 = vadd.f32 %v3287, %v3436
        %v3438 = vpop.f32.mrb[0].mxu0
        %3439 = vmatprep.mubr.f32.mxu0 %v757
        %3440 = vmatmul.mubr.f32.gmra.mrb[0].mxu0 %v756
        %v3441 = vpop.f32.mrb[0].mxu0
        %v3442 = vadd.f32 %v3292, %v3441
        %v3443 = vpop.f32.mrb[0].mxu0
        %3444 = vmatprep.mubr.f32.mxu0 %v795
        %3445 = vmatmul.mubr.f32.gmra.mrb[0].mxu0 %v794
        %v3446 = vpop.f32.mrb[0].mxu0
        %v3447 = vadd.f32 %v3297, %v3446
        %v3448 = vpop.f32.mrb[0].mxu0
        %3449 = vmatprep.mubr.f32.mxu0 %v833
        %3450 = vmatmul.mubr.f32.gmra.mrb[0].mxu0 %v832
        %v3451 = vpop.f32.mrb[0].mxu0
        %v3452 = vadd.f32 %v3302, %v3451
        %v3453 = vpop.f32.mrb[0].mxu0
        %3454 = vdwg.mxu0
        %3455 = vmatprep.subr.mxu0 0.0
        %3456 = vmatpush1.msra.mxu0 %v1262
        %3457 = vmatprep.subr.mxu0 0.0
        %3458 = vmatpush1.msra.mxu0 %v1263
        %3459 = vmatprep.subr.mxu0 0.0
        %3460 = vmatpush1.msra.mxu0 %v1264
        %3461 = vmatprep.subr.mxu0 0.0
        %3462 = vmatpush1.msra.mxu0 %v1265
        %3463 = vmatprep.subr.mxu0 0.0
        %3464 = vmatpush1.msra.mxu0 %v1266
        %3465 = vmatprep.subr.mxu0 0.0
        %3466 = vmatpush1.msra.mxu0 %v1267
        %3467 = vmatprep.subr.mxu0 0.0
        %3468 = vmatpush1.msra.mxu0 %v1268
        %3469 = vmatprep.subr.mxu0 0.0
        %3470 = vmatpush1.msra.mxu0 %v1269
        %3471 = vmatprep.subr.mxu0 0.0
        %3472 = vmatpush1.msra.mxu0 %v1270
        %3473 = vmatprep.subr.mxu0 0.0
        %3474 = vmatpush1.msra.mxu0 %v1271
        %3475 = vmatprep.subr.mxu0 0.0
        %3476 = vmatpush1.msra.mxu0 %v1272
        %3477 = vmatprep.subr.mxu0 0.0
        %3478 = vmatpush1.msra.mxu0 %v1273
        %3479 = vmatprep.subr.mxu0 0.0
        %3480 = vmatpush1.msra.mxu0 %v1274
        %3481 = vmatprep.subr.mxu0 0.0
        %3482 = vmatpush1.msra.mxu0 %v1275
        %3483 = vmatprep.subr.mxu0 0.0
        %3484 = vmatpush1.msra.mxu0 %v1276
        %3485 = vmatprep.subr.mxu0 0.0
        %3486 = vmatpush1.msra.mxu0 %v1277
        %3487 = vmatprep.subr.mxu0 0.0
        %3488 = vmatpush1.msra.mxu0 %v1278
        %3489 = vmatprep.subr.mxu0 0.0
        %3490 = vmatpush1.msra.mxu0 %v1279
        %3491 = vmatprep.subr.mxu0 0.0
        %3492 = vmatpush1.msra.mxu0 %v1280
        %3493 = vmatprep.subr.mxu0 0.0
        %3494 = vmatpush1.msra.mxu0 %v1281
        %3495 = vmatprep.subr.mxu0 0.0
        %3496 = vmatpush1.msra.mxu0 %v1282
        %3497 = vmatprep.subr.mxu0 0.0
        %3498 = vmatpush1.msra.mxu0 %v1283
        %3499 = vmatprep.subr.mxu0 0.0
        %3500 = vmatpush1.msra.mxu0 %v1284
        %3501 = vmatprep.subr.mxu0 0.0
        %3502 = vmatpush1.msra.mxu0 %v1285
        %3503 = vmatprep.subr.mxu0 0.0
        %3504 = vmatpush1.msra.mxu0 %v1286
        %3505 = vmatprep.subr.mxu0 0.0
        %3506 = vmatpush1.msra.mxu0 %v1287
        %3507 = vmatprep.subr.mxu0 0.0
        %3508 = vmatpush1.msra.mxu0 %v1288
        %3509 = vmatprep.subr.mxu0 0.0
        %3510 = vmatpush1.msra.mxu0 %v1289
        %3511 = vmatprep.subr.mxu0 0.0
        %3512 = vmatpush1.msra.mxu0 %v1290
        %3513 = vmatprep.subr.mxu0 0.0
        %3514 = vmatpush1.msra.mxu0 %v1291
        %3515 = vmatprep.subr.mxu0 0.0
        %3516 = vmatpush1.msra.mxu0 %v1292
        %3517 = vmatprep.subr.mxu0 0.0
        %3518 = vmatpush1.msra.mxu0 %v1293
        %3519 = vmatprep.mubr.f32.mxu0 %v227
        %3520 = vmatmul.mubr.f32.gmra.mrb[0].mxu0 %v226
        %v3521 = vpop.f32.mrb[0].mxu0
        %v3522 = vadd.f32 %v3372, %v3521
        %v3523 = vpop.f32.mrb[0].mxu0
        %3524 = vmatprep.mubr.f32.mxu0 %v265
        %3525 = vmatmul.mubr.f32.gmra.mrb[0].mxu0 %v264
        %v3526 = vpop.f32.mrb[0].mxu0
        %v3527 = vadd.f32 %v3377, %v3526
        %v3528 = vpop.f32.mrb[0].mxu0
        %3529 = vmatprep.mubr.f32.mxu0 %v303
        %3530 = vmatmul.mubr.f32.gmra.mrb[0].mxu0 %v302
        %v3531 = vpop.f32.mrb[0].mxu0
        %v3532 = vadd.f32 %v3382, %v3531
        %v3533 = vpop.f32.mrb[0].mxu0
        %3534 = vmatprep.mubr.f32.mxu0 %v341
        %3535 = vmatmul.mubr.f32.gmra.mrb[0].mxu0 %v340
        %v3536 = vpop.f32.mrb[0].mxu0
        %v3537 = vadd.f32 %v3387, %v3536
        %v3538 = vpop.f32.mrb[0].mxu0
        %3539 = vmatprep.mubr.f32.mxu0 %v379
        %3540 = vmatmul.mubr.f32.gmra.mrb[0].mxu0 %v378
        %v3541 = vpop.f32.mrb[0].mxu0
        %v3542 = vadd.f32 %v3392, %v3541
        %v3543 = vpop.f32.mrb[0].mxu0
        %3544 = vmatprep.mubr.f32.mxu0 %v417
        %3545 = vmatmul.mubr.f32.gmra.mrb[0].mxu0 %v416
        %v3546 = vpop.f32.mrb[0].mxu0
        %v3547 = vadd.f32 %v3397, %v3546
        %v3548 = vpop.f32.mrb[0].mxu0
        %3549 = vmatprep.mubr.f32.mxu0 %v455
        %3550 = vmatmul.mubr.f32.gmra.mrb[0].mxu0 %v454
        %v3551 = vpop.f32.mrb[0].mxu0
        %v3552 = vadd.f32 %v3402, %v3551
        %v3553 = vpop.f32.mrb[0].mxu0
        %3554 = vmatprep.mubr.f32.mxu0 %v493
        %3555 = vmatmul.mubr.f32.gmra.mrb[0].mxu0 %v492
        %v3556 = vpop.f32.mrb[0].mxu0
        %v3557 = vadd.f32 %v3407, %v3556
        %v3558 = vpop.f32.mrb[0].mxu0
        %3559 = vmatprep.mubr.f32.mxu0 %v531
        %3560 = vmatmul.mubr.f32.gmra.mrb[0].mxu0 %v530
        %v3561 = vpop.f32.mrb[0].mxu0
        %v3562 = vadd.f32 %v3412, %v3561
        %v3563 = vpop.f32.mrb[0].mxu0
        %3564 = vmatprep.mubr.f32.mxu0 %v569
        %3565 = vmatmul.mubr.f32.gmra.mrb[0].mxu0 %v568
        %v3566 = vpop.f32.mrb[0].mxu0
        %v3567 = vadd.f32 %v3417, %v3566
        %v3568 = vpop.f32.mrb[0].mxu0
        %3569 = vmatprep.mubr.f32.mxu0 %v607
        %3570 = vmatmul.mubr.f32.gmra.mrb[0].mxu0 %v606
        %v3571 = vpop.f32.mrb[0].mxu0
        %v3572 = vadd.f32 %v3422, %v3571
        %v3573 = vpop.f32.mrb[0].mxu0
        %3574 = vmatprep.mubr.f32.mxu0 %v645
        %3575 = vmatmul.mubr.f32.gmra.mrb[0].mxu0 %v644
        %v3576 = vpop.f32.mrb[0].mxu0
        %v3577 = vadd.f32 %v3427, %v3576
        %v3578 = vpop.f32.mrb[0].mxu0
        %3579 = vmatprep.mubr.f32.mxu0 %v683
        %3580 = vmatmul.mubr.f32.gmra.mrb[0].mxu0 %v682
        %v3581 = vpop.f32.mrb[0].mxu0
        %v3582 = vadd.f32 %v3432, %v3581
        %v3583 = vpop.f32.mrb[0].mxu0
        %3584 = vmatprep.mubr.f32.mxu0 %v721
        %3585 = vmatmul.mubr.f32.gmra.mrb[0].mxu0 %v720
        %v3586 = vpop.f32.mrb[0].mxu0
        %v3587 = vadd.f32 %v3437, %v3586
        %v3588 = vpop.f32.mrb[0].mxu0
        %3589 = vmatprep.mubr.f32.mxu0 %v759
        %3590 = vmatmul.mubr.f32.gmra.mrb[0].mxu0 %v758
        %v3591 = vpop.f32.mrb[0].mxu0
        %v3592 = vadd.f32 %v3442, %v3591
        %v3593 = vpop.f32.mrb[0].mxu0
        %3594 = vmatprep.mubr.f32.mxu0 %v797
        %3595 = vmatmul.mubr.f32.gmra.mrb[0].mxu0 %v796
        %v3596 = vpop.f32.mrb[0].mxu0
        %v3597 = vadd.f32 %v3447, %v3596
        %v3598 = vpop.f32.mrb[0].mxu0
        %3599 = vmatprep.mubr.f32.mxu0 %v835
        %3600 = vmatmul.mubr.f32.gmra.mrb[0].mxu0 %v834
        %v3601 = vpop.f32.mrb[0].mxu0
        %v3602 = vadd.f32 %v3452, %v3601
        %v3603 = vpop.f32.mrb[0].mxu0
        %3604 = vdwg.mxu0
        %3605 = vmatprep.subr.mxu0 0.0
        %3606 = vmatpush1.msra.mxu0 %v1294
        %3607 = vmatprep.subr.mxu0 0.0
        %3608 = vmatpush1.msra.mxu0 %v1295
        %3609 = vmatprep.subr.mxu0 0.0
        %3610 = vmatpush1.msra.mxu0 %v1296
        %3611 = vmatprep.subr.mxu0 0.0
        %3612 = vmatpush1.msra.mxu0 %v1297
        %3613 = vmatprep.subr.mxu0 0.0
        %3614 = vmatpush1.msra.mxu0 %v1298
        %3615 = vmatprep.subr.mxu0 0.0
        %3616 = vmatpush1.msra.mxu0 %v1299
        %3617 = vmatprep.subr.mxu0 0.0
        %3618 = vmatpush1.msra.mxu0 %v1300
        %3619 = vmatprep.subr.mxu0 0.0
        %3620 = vmatpush1.msra.mxu0 %v1301
        %3621 = vmatprep.subr.mxu0 0.0
        %3622 = vmatpush1.msra.mxu0 %v1302
        %3623 = vmatprep.subr.mxu0 0.0
        %3624 = vmatpush1.msra.mxu0 %v1303
        %3625 = vmatprep.subr.mxu0 0.0
        %3626 = vmatpush1.msra.mxu0 %v1304
        %3627 = vmatprep.subr.mxu0 0.0
        %3628 = vmatpush1.msra.mxu0 %v1305
        %3629 = vmatprep.subr.mxu0 0.0
        %3630 = vmatpush1.msra.mxu0 %v1306
        %3631 = vmatprep.subr.mxu0 0.0
        %3632 = vmatpush1.msra.mxu0 %v1307
        %3633 = vmatprep.subr.mxu0 0.0
        %3634 = vmatpush1.msra.mxu0 %v1308
        %3635 = vmatprep.subr.mxu0 0.0
        %3636 = vmatpush1.msra.mxu0 %v1309
        %3637 = vmatprep.subr.mxu0 0.0
        %3638 = vmatpush1.msra.mxu0 %v1310
        %3639 = vmatprep.subr.mxu0 0.0
        %3640 = vmatpush1.msra.mxu0 %v1311
        %3641 = vmatprep.subr.mxu0 0.0
        %3642 = vmatpush1.msra.mxu0 %v1312
        %3643 = vmatprep.subr.mxu0 0.0
        %3644 = vmatpush1.msra.mxu0 %v1313
        %3645 = vmatprep.subr.mxu0 0.0
        %3646 = vmatpush1.msra.mxu0 %v1314
        %3647 = vmatprep.subr.mxu0 0.0
        %3648 = vmatpush1.msra.mxu0 %v1315
        %3649 = vmatprep.subr.mxu0 0.0
        %3650 = vmatpush1.msra.mxu0 %v1316
        %3651 = vmatprep.subr.mxu0 0.0
        %3652 = vmatpush1.msra.mxu0 %v1317
        %3653 = vmatprep.subr.mxu0 0.0
        %3654 = vmatpush1.msra.mxu0 %v1318
        %3655 = vmatprep.subr.mxu0 0.0
        %3656 = vmatpush1.msra.mxu0 %v1319
        %3657 = vmatprep.subr.mxu0 0.0
        %3658 = vmatpush1.msra.mxu0 %v1320
        %3659 = vmatprep.subr.mxu0 0.0
        %3660 = vmatpush1.msra.mxu0 %v1321
        %3661 = vmatprep.subr.mxu0 0.0
        %3662 = vmatpush1.msra.mxu0 %v1322
        %3663 = vmatprep.subr.mxu0 0.0
        %3664 = vmatpush1.msra.mxu0 %v1323
        %3665 = vmatprep.subr.mxu0 0.0
        %3666 = vmatpush1.msra.mxu0 %v1324
        %3667 = vmatprep.subr.mxu0 0.0
        %3668 = vmatpush1.msra.mxu0 %v1325
        %3669 = vmatprep.mubr.f32.mxu0 %v229
        %3670 = vmatmul.mubr.f32.gmra.mrb[0].mxu0 %v228
        %v3671 = vpop.f32.mrb[0].mxu0
        %v3672 = vadd.f32 %v3522, %v3671
        %v3673 = vpop.f32.mrb[0].mxu0
        %3674 = vmatprep.mubr.f32.mxu0 %v267
        %3675 = vmatmul.mubr.f32.gmra.mrb[0].mxu0 %v266
        %v3676 = vpop.f32.mrb[0].mxu0
        %v3677 = vadd.f32 %v3527, %v3676
        %v3678 = vpop.f32.mrb[0].mxu0
        %3679 = vmatprep.mubr.f32.mxu0 %v305
        %3680 = vmatmul.mubr.f32.gmra.mrb[0].mxu0 %v304
        %v3681 = vpop.f32.mrb[0].mxu0
        %v3682 = vadd.f32 %v3532, %v3681
        %v3683 = vpop.f32.mrb[0].mxu0
        %3684 = vmatprep.mubr.f32.mxu0 %v343
        %3685 = vmatmul.mubr.f32.gmra.mrb[0].mxu0 %v342
        %v3686 = vpop.f32.mrb[0].mxu0
        %v3687 = vadd.f32 %v3537, %v3686
        %v3688 = vpop.f32.mrb[0].mxu0
        %3689 = vmatprep.mubr.f32.mxu0 %v381
        %3690 = vmatmul.mubr.f32.gmra.mrb[0].mxu0 %v380
        %v3691 = vpop.f32.mrb[0].mxu0
        %v3692 = vadd.f32 %v3542, %v3691
        %v3693 = vpop.f32.mrb[0].mxu0
        %3694 = vmatprep.mubr.f32.mxu0 %v419
        %3695 = vmatmul.mubr.f32.gmra.mrb[0].mxu0 %v418
        %v3696 = vpop.f32.mrb[0].mxu0
        %v3697 = vadd.f32 %v3547, %v3696
        %v3698 = vpop.f32.mrb[0].mxu0
        %3699 = vmatprep.mubr.f32.mxu0 %v457
        %3700 = vmatmul.mubr.f32.gmra.mrb[0].mxu0 %v456
        %v3701 = vpop.f32.mrb[0].mxu0
        %v3702 = vadd.f32 %v3552, %v3701
        %v3703 = vpop.f32.mrb[0].mxu0
        %3704 = vmatprep.mubr.f32.mxu0 %v495
        %3705 = vmatmul.mubr.f32.gmra.mrb[0].mxu0 %v494
        %v3706 = vpop.f32.mrb[0].mxu0
        %v3707 = vadd.f32 %v3557, %v3706
        %v3708 = vpop.f32.mrb[0].mxu0
        %3709 = vmatprep.mubr.f32.mxu0 %v533
        %3710 = vmatmul.mubr.f32.gmra.mrb[0].mxu0 %v532
        %v3711 = vpop.f32.mrb[0].mxu0
        %v3712 = vadd.f32 %v3562, %v3711
        %v3713 = vpop.f32.mrb[0].mxu0
        %3714 = vmatprep.mubr.f32.mxu0 %v571
        %3715 = vmatmul.mubr.f32.gmra.mrb[0].mxu0 %v570
        %v3716 = vpop.f32.mrb[0].mxu0
        %v3717 = vadd.f32 %v3567, %v3716
        %v3718 = vpop.f32.mrb[0].mxu0
        %3719 = vmatprep.mubr.f32.mxu0 %v609
        %3720 = vmatmul.mubr.f32.gmra.mrb[0].mxu0 %v608
        %v3721 = vpop.f32.mrb[0].mxu0
        %v3722 = vadd.f32 %v3572, %v3721
        %v3723 = vpop.f32.mrb[0].mxu0
        %3724 = vmatprep.mubr.f32.mxu0 %v647
        %3725 = vmatmul.mubr.f32.gmra.mrb[0].mxu0 %v646
        %v3726 = vpop.f32.mrb[0].mxu0
        %v3727 = vadd.f32 %v3577, %v3726
        %v3728 = vpop.f32.mrb[0].mxu0
        %3729 = vmatprep.mubr.f32.mxu0 %v685
        %3730 = vmatmul.mubr.f32.gmra.mrb[0].mxu0 %v684
        %v3731 = vpop.f32.mrb[0].mxu0
        %v3732 = vadd.f32 %v3582, %v3731
        %v3733 = vpop.f32.mrb[0].mxu0
        %3734 = vmatprep.mubr.f32.mxu0 %v723
        %3735 = vmatmul.mubr.f32.gmra.mrb[0].mxu0 %v722
        %v3736 = vpop.f32.mrb[0].mxu0
        %v3737 = vadd.f32 %v3587, %v3736
        %v3738 = vpop.f32.mrb[0].mxu0
        %3739 = vmatprep.mubr.f32.mxu0 %v761
        %3740 = vmatmul.mubr.f32.gmra.mrb[0].mxu0 %v760
        %v3741 = vpop.f32.mrb[0].mxu0
        %v3742 = vadd.f32 %v3592, %v3741
        %v3743 = vpop.f32.mrb[0].mxu0
        %3744 = vmatprep.mubr.f32.mxu0 %v799
        %3745 = vmatmul.mubr.f32.gmra.mrb[0].mxu0 %v798
        %v3746 = vpop.f32.mrb[0].mxu0
        %v3747 = vadd.f32 %v3597, %v3746
        %v3748 = vpop.f32.mrb[0].mxu0
        %3749 = vmatprep.mubr.f32.mxu0 %v837
        %3750 = vmatmul.mubr.f32.gmra.mrb[0].mxu0 %v836
        %v3751 = vpop.f32.mrb[0].mxu0
        %v3752 = vadd.f32 %v3602, %v3751
        %v3753 = vpop.f32.mrb[0].mxu0
        %3754 = vdwg.mxu0
        %3755 = vmatprep.subr.mxu0 0.0
        %3756 = vmatpush1.msra.mxu0 %v1326
        %3757 = vmatprep.subr.mxu0 0.0
        %3758 = vmatpush1.msra.mxu0 %v1327
        %3759 = vmatprep.subr.mxu0 0.0
        %3760 = vmatpush1.msra.mxu0 %v1328
        %3761 = vmatprep.subr.mxu0 0.0
        %3762 = vmatpush1.msra.mxu0 %v1329
        %3763 = vmatprep.subr.mxu0 0.0
        %3764 = vmatpush1.msra.mxu0 %v1330
        %3765 = vmatprep.subr.mxu0 0.0
        %3766 = vmatpush1.msra.mxu0 %v1331
        %3767 = vmatprep.subr.mxu0 0.0
        %3768 = vmatpush1.msra.mxu0 %v1332
        %3769 = vmatprep.subr.mxu0 0.0
        %3770 = vmatpush1.msra.mxu0 %v1333
        %3771 = vmatprep.subr.mxu0 0.0
        %3772 = vmatpush1.msra.mxu0 %v1334
        %3773 = vmatprep.subr.mxu0 0.0
        %3774 = vmatpush1.msra.mxu0 %v1335
        %3775 = vmatprep.subr.mxu0 0.0
        %3776 = vmatpush1.msra.mxu0 %v1336
        %3777 = vmatprep.subr.mxu0 0.0
        %3778 = vmatpush1.msra.mxu0 %v1337
        %3779 = vmatprep.subr.mxu0 0.0
        %3780 = vmatpush1.msra.mxu0 %v1338
        %3781 = vmatprep.subr.mxu0 0.0
        %3782 = vmatpush1.msra.mxu0 %v1339
        %3783 = vmatprep.subr.mxu0 0.0
        %3784 = vmatpush1.msra.mxu0 %v1340
        %3785 = vmatprep.subr.mxu0 0.0
        %3786 = vmatpush1.msra.mxu0 %v1341
        %3787 = vmatprep.subr.mxu0 0.0
        %3788 = vmatpush1.msra.mxu0 %v1342
        %3789 = vmatprep.subr.mxu0 0.0
        %3790 = vmatpush1.msra.mxu0 %v1343
        %3791 = vmatprep.subr.mxu0 0.0
        %3792 = vmatpush1.msra.mxu0 %v1344
        %3793 = vmatprep.subr.mxu0 0.0
        %3794 = vmatpush1.msra.mxu0 %v1345
        %3795 = vmatprep.subr.mxu0 0.0
        %3796 = vmatpush1.msra.mxu0 %v1346
        %3797 = vmatprep.subr.mxu0 0.0
        %3798 = vmatpush1.msra.mxu0 %v1347
        %3799 = vmatprep.subr.mxu0 0.0
        %3800 = vmatpush1.msra.mxu0 %v1348
        %3801 = vmatprep.subr.mxu0 0.0
        %3802 = vmatpush1.msra.mxu0 %v1349
        %3803 = vmatprep.subr.mxu0 0.0
        %3804 = vmatpush1.msra.mxu0 %v1350
        %3805 = vmatprep.subr.mxu0 0.0
        %3806 = vmatpush1.msra.mxu0 %v1351
        %3807 = vmatprep.subr.mxu0 0.0
        %3808 = vmatpush1.msra.mxu0 %v1352
        %3809 = vmatprep.subr.mxu0 0.0
        %3810 = vmatpush1.msra.mxu0 %v1353
        %3811 = vmatprep.subr.mxu0 0.0
        %3812 = vmatpush1.msra.mxu0 %v1354
        %3813 = vmatprep.subr.mxu0 0.0
        %3814 = vmatpush1.msra.mxu0 %v1355
        %3815 = vmatprep.subr.mxu0 0.0
        %3816 = vmatpush1.msra.mxu0 %v1356
        %3817 = vmatprep.subr.mxu0 0.0
        %3818 = vmatpush1.msra.mxu0 %v1357
        %3819 = vmatprep.mubr.f32.mxu0 %v231
        %3820 = vmatmul.mubr.f32.gmra.mrb[0].mxu0 %v230
        %v3821 = vpop.f32.mrb[0].mxu0
        %v3822 = vadd.f32 %v3672, %v3821
        %v3823 = vpop.f32.mrb[0].mxu0
        %3824 = vmatprep.mubr.f32.mxu0 %v269
        %3825 = vmatmul.mubr.f32.gmra.mrb[0].mxu0 %v268
        %v3826 = vpop.f32.mrb[0].mxu0
        %v3827 = vadd.f32 %v3677, %v3826
        %v3828 = vpop.f32.mrb[0].mxu0
        %3829 = vmatprep.mubr.f32.mxu0 %v307
        %3830 = vmatmul.mubr.f32.gmra.mrb[0].mxu0 %v306
        %v3831 = vpop.f32.mrb[0].mxu0
        %v3832 = vadd.f32 %v3682, %v3831
        %v3833 = vpop.f32.mrb[0].mxu0
        %3834 = vmatprep.mubr.f32.mxu0 %v345
        %3835 = vmatmul.mubr.f32.gmra.mrb[0].mxu0 %v344
        %v3836 = vpop.f32.mrb[0].mxu0
        %v3837 = vadd.f32 %v3687, %v3836
        %v3838 = vpop.f32.mrb[0].mxu0
        %3839 = vmatprep.mubr.f32.mxu0 %v383
        %3840 = vmatmul.mubr.f32.gmra.mrb[0].mxu0 %v382
        %v3841 = vpop.f32.mrb[0].mxu0
        %v3842 = vadd.f32 %v3692, %v3841
        %v3843 = vpop.f32.mrb[0].mxu0
        %3844 = vmatprep.mubr.f32.mxu0 %v421
        %3845 = vmatmul.mubr.f32.gmra.mrb[0].mxu0 %v420
        %v3846 = vpop.f32.mrb[0].mxu0
        %v3847 = vadd.f32 %v3697, %v3846
        %v3848 = vpop.f32.mrb[0].mxu0
        %3849 = vmatprep.mubr.f32.mxu0 %v459
        %3850 = vmatmul.mubr.f32.gmra.mrb[0].mxu0 %v458
        %v3851 = vpop.f32.mrb[0].mxu0
        %v3852 = vadd.f32 %v3702, %v3851
        %v3853 = vpop.f32.mrb[0].mxu0
        %3854 = vmatprep.mubr.f32.mxu0 %v497
        %3855 = vmatmul.mubr.f32.gmra.mrb[0].mxu0 %v496
        %v3856 = vpop.f32.mrb[0].mxu0
        %v3857 = vadd.f32 %v3707, %v3856
        %v3858 = vpop.f32.mrb[0].mxu0
        %3859 = vmatprep.mubr.f32.mxu0 %v535
        %3860 = vmatmul.mubr.f32.gmra.mrb[0].mxu0 %v534
        %v3861 = vpop.f32.mrb[0].mxu0
        %v3862 = vadd.f32 %v3712, %v3861
        %v3863 = vpop.f32.mrb[0].mxu0
        %3864 = vmatprep.mubr.f32.mxu0 %v573
        %3865 = vmatmul.mubr.f32.gmra.mrb[0].mxu0 %v572
        %v3866 = vpop.f32.mrb[0].mxu0
        %v3867 = vadd.f32 %v3717, %v3866
        %v3868 = vpop.f32.mrb[0].mxu0
        %3869 = vmatprep.mubr.f32.mxu0 %v611
        %3870 = vmatmul.mubr.f32.gmra.mrb[0].mxu0 %v610
        %v3871 = vpop.f32.mrb[0].mxu0
        %v3872 = vadd.f32 %v3722, %v3871
        %v3873 = vpop.f32.mrb[0].mxu0
        %3874 = vmatprep.mubr.f32.mxu0 %v649
        %3875 = vmatmul.mubr.f32.gmra.mrb[0].mxu0 %v648
        %v3876 = vpop.f32.mrb[0].mxu0
        %v3877 = vadd.f32 %v3727, %v3876
        %v3878 = vpop.f32.mrb[0].mxu0
        %3879 = vmatprep.mubr.f32.mxu0 %v687
        %3880 = vmatmul.mubr.f32.gmra.mrb[0].mxu0 %v686
        %v3881 = vpop.f32.mrb[0].mxu0
        %v3882 = vadd.f32 %v3732, %v3881
        %v3883 = vpop.f32.mrb[0].mxu0
        %3884 = vmatprep.mubr.f32.mxu0 %v725
        %3885 = vmatmul.mubr.f32.gmra.mrb[0].mxu0 %v724
        %v3886 = vpop.f32.mrb[0].mxu0
        %v3887 = vadd.f32 %v3737, %v3886
        %v3888 = vpop.f32.mrb[0].mxu0
        %3889 = vmatprep.mubr.f32.mxu0 %v763
        %3890 = vmatmul.mubr.f32.gmra.mrb[0].mxu0 %v762
        %v3891 = vpop.f32.mrb[0].mxu0
        %v3892 = vadd.f32 %v3742, %v3891
        %v3893 = vpop.f32.mrb[0].mxu0
        %3894 = vmatprep.mubr.f32.mxu0 %v801
        %3895 = vmatmul.mubr.f32.gmra.mrb[0].mxu0 %v800
        %v3896 = vpop.f32.mrb[0].mxu0
        %v3897 = vadd.f32 %v3747, %v3896
        %v3898 = vpop.f32.mrb[0].mxu0
        %3899 = vmatprep.mubr.f32.mxu0 %v839
        %3900 = vmatmul.mubr.f32.gmra.mrb[0].mxu0 %v838
        %v3901 = vpop.f32.mrb[0].mxu0
        %v3902 = vadd.f32 %v3752, %v3901
        %v3903 = vpop.f32.mrb[0].mxu0
        %3904 = vdwg.mxu0
        %3905 = vmatprep.subr.mxu0 0.0
        %3906 = vmatpush1.msra.mxu0 %v1358
        %3907 = vmatprep.subr.mxu0 0.0
        %3908 = vmatpush1.msra.mxu0 %v1359
        %3909 = vmatprep.subr.mxu0 0.0
        %3910 = vmatpush1.msra.mxu0 %v1360
        %3911 = vmatprep.subr.mxu0 0.0
        %3912 = vmatpush1.msra.mxu0 %v1361
        %3913 = vmatprep.subr.mxu0 0.0
        %3914 = vmatpush1.msra.mxu0 %v1362
        %3915 = vmatprep.subr.mxu0 0.0
        %3916 = vmatpush1.msra.mxu0 %v1363
        %3917 = vmatprep.subr.mxu0 0.0
        %3918 = vmatpush1.msra.mxu0 %v1364
        %3919 = vmatprep.subr.mxu0 0.0
        %3920 = vmatpush1.msra.mxu0 %v1365
        %3921 = vmatprep.subr.mxu0 0.0
        %3922 = vmatpush1.msra.mxu0 %v1366
        %3923 = vmatprep.subr.mxu0 0.0
        %3924 = vmatpush1.msra.mxu0 %v1367
        %3925 = vmatprep.subr.mxu0 0.0
        %3926 = vmatpush1.msra.mxu0 %v1368
        %3927 = vmatprep.subr.mxu0 0.0
        %3928 = vmatpush1.msra.mxu0 %v1369
        %3929 = vmatprep.subr.mxu0 0.0
        %3930 = vmatpush1.msra.mxu0 %v1370
        %3931 = vmatprep.subr.mxu0 0.0
        %3932 = vmatpush1.msra.mxu0 %v1371
        %3933 = vmatprep.subr.mxu0 0.0
        %3934 = vmatpush1.msra.mxu0 %v1372
        %3935 = vmatprep.subr.mxu0 0.0
        %3936 = vmatpush1.msra.mxu0 %v1373
        %3937 = vmatprep.subr.mxu0 0.0
        %3938 = vmatpush1.msra.mxu0 %v1374
        %3939 = vmatprep.subr.mxu0 0.0
        %3940 = vmatpush1.msra.mxu0 %v1375
        %3941 = vmatprep.subr.mxu0 0.0
        %3942 = vmatpush1.msra.mxu0 %v1376
        %3943 = vmatprep.subr.mxu0 0.0
        %3944 = vmatpush1.msra.mxu0 %v1377
        %3945 = vmatprep.subr.mxu0 0.0
        %3946 = vmatpush1.msra.mxu0 %v1378
        %3947 = vmatprep.subr.mxu0 0.0
        %3948 = vmatpush1.msra.mxu0 %v1379
        %3949 = vmatprep.subr.mxu0 0.0
        %3950 = vmatpush1.msra.mxu0 %v1380
        %3951 = vmatprep.subr.mxu0 0.0
        %3952 = vmatpush1.msra.mxu0 %v1381
        %3953 = vmatprep.subr.mxu0 0.0
        %3954 = vmatpush1.msra.mxu0 %v1382
        %3955 = vmatprep.subr.mxu0 0.0
        %3956 = vmatpush1.msra.mxu0 %v1383
        %3957 = vmatprep.subr.mxu0 0.0
        %3958 = vmatpush1.msra.mxu0 %v1384
        %3959 = vmatprep.subr.mxu0 0.0
        %3960 = vmatpush1.msra.mxu0 %v1385
        %3961 = vmatprep.subr.mxu0 0.0
        %3962 = vmatpush1.msra.mxu0 %v1386
        %3963 = vmatprep.subr.mxu0 0.0
        %3964 = vmatpush1.msra.mxu0 %v1387
        %3965 = vmatprep.subr.mxu0 0.0
        %3966 = vmatpush1.msra.mxu0 %v1388
        %3967 = vmatprep.subr.mxu0 0.0
        %3968 = vmatpush1.msra.mxu0 %v1389
        %3969 = vmatprep.mubr.f32.mxu0 %v233
        %3970 = vmatmul.mubr.f32.gmra.mrb[0].mxu0 %v232
        %v3971 = vpop.f32.mrb[0].mxu0
        %v3972 = vadd.f32 %v3822, %v3971
        %v3973 = vpop.f32.mrb[0].mxu0
        %3974 = vmatprep.mubr.f32.mxu0 %v271
        %3975 = vmatmul.mubr.f32.gmra.mrb[0].mxu0 %v270
        %v3976 = vpop.f32.mrb[0].mxu0
        %v3977 = vadd.f32 %v3827, %v3976
        %v3978 = vpop.f32.mrb[0].mxu0
        %3979 = vmatprep.mubr.f32.mxu0 %v309
        %3980 = vmatmul.mubr.f32.gmra.mrb[0].mxu0 %v308
        %v3981 = vpop.f32.mrb[0].mxu0
        %v3982 = vadd.f32 %v3832, %v3981
        %v3983 = vpop.f32.mrb[0].mxu0
        %3984 = vmatprep.mubr.f32.mxu0 %v347
        %3985 = vmatmul.mubr.f32.gmra.mrb[0].mxu0 %v346
        %v3986 = vpop.f32.mrb[0].mxu0
        %v3987 = vadd.f32 %v3837, %v3986
        %v3988 = vpop.f32.mrb[0].mxu0
        %3989 = vmatprep.mubr.f32.mxu0 %v385
        %3990 = vmatmul.mubr.f32.gmra.mrb[0].mxu0 %v384
        %v3991 = vpop.f32.mrb[0].mxu0
        %v3992 = vadd.f32 %v3842, %v3991
        %v3993 = vpop.f32.mrb[0].mxu0
        %3994 = vmatprep.mubr.f32.mxu0 %v423
        %3995 = vmatmul.mubr.f32.gmra.mrb[0].mxu0 %v422
        %v3996 = vpop.f32.mrb[0].mxu0
        %v3997 = vadd.f32 %v3847, %v3996
        %v3998 = vpop.f32.mrb[0].mxu0
        %3999 = vmatprep.mubr.f32.mxu0 %v461
        %4000 = vmatmul.mubr.f32.gmra.mrb[0].mxu0 %v460
        %v4001 = vpop.f32.mrb[0].mxu0
        %v4002 = vadd.f32 %v3852, %v4001
        %v4003 = vpop.f32.mrb[0].mxu0
        %4004 = vmatprep.mubr.f32.mxu0 %v499
        %4005 = vmatmul.mubr.f32.gmra.mrb[0].mxu0 %v498
        %v4006 = vpop.f32.mrb[0].mxu0
        %v4007 = vadd.f32 %v3857, %v4006
        %v4008 = vpop.f32.mrb[0].mxu0
        %4009 = vmatprep.mubr.f32.mxu0 %v537
        %4010 = vmatmul.mubr.f32.gmra.mrb[0].mxu0 %v536
        %v4011 = vpop.f32.mrb[0].mxu0
        %v4012 = vadd.f32 %v3862, %v4011
        %v4013 = vpop.f32.mrb[0].mxu0
        %4014 = vmatprep.mubr.f32.mxu0 %v575
        %4015 = vmatmul.mubr.f32.gmra.mrb[0].mxu0 %v574
        %v4016 = vpop.f32.mrb[0].mxu0
        %v4017 = vadd.f32 %v3867, %v4016
        %v4018 = vpop.f32.mrb[0].mxu0
        %4019 = vmatprep.mubr.f32.mxu0 %v613
        %4020 = vmatmul.mubr.f32.gmra.mrb[0].mxu0 %v612
        %v4021 = vpop.f32.mrb[0].mxu0
        %v4022 = vadd.f32 %v3872, %v4021
        %v4023 = vpop.f32.mrb[0].mxu0
        %4024 = vmatprep.mubr.f32.mxu0 %v651
        %4025 = vmatmul.mubr.f32.gmra.mrb[0].mxu0 %v650
        %v4026 = vpop.f32.mrb[0].mxu0
        %v4027 = vadd.f32 %v3877, %v4026
        %v4028 = vpop.f32.mrb[0].mxu0
        %4029 = vmatprep.mubr.f32.mxu0 %v689
        %4030 = vmatmul.mubr.f32.gmra.mrb[0].mxu0 %v688
        %v4031 = vpop.f32.mrb[0].mxu0
        %v4032 = vadd.f32 %v3882, %v4031
        %v4033 = vpop.f32.mrb[0].mxu0
        %4034 = vmatprep.mubr.f32.mxu0 %v727
        %4035 = vmatmul.mubr.f32.gmra.mrb[0].mxu0 %v726
        %v4036 = vpop.f32.mrb[0].mxu0
        %v4037 = vadd.f32 %v3887, %v4036
        %v4038 = vpop.f32.mrb[0].mxu0
        %4039 = vmatprep.mubr.f32.mxu0 %v765
        %4040 = vmatmul.mubr.f32.gmra.mrb[0].mxu0 %v764
        %v4041 = vpop.f32.mrb[0].mxu0
        %v4042 = vadd.f32 %v3892, %v4041
        %v4043 = vpop.f32.mrb[0].mxu0
        %4044 = vmatprep.mubr.f32.mxu0 %v803
        %4045 = vmatmul.mubr.f32.gmra.mrb[0].mxu0 %v802
        %v4046 = vpop.f32.mrb[0].mxu0
        %v4047 = vadd.f32 %v3897, %v4046
        %v4048 = vpop.f32.mrb[0].mxu0
        %4049 = vmatprep.mubr.f32.mxu0 %v841
        %4050 = vmatmul.mubr.f32.gmra.mrb[0].mxu0 %v840
        %v4051 = vpop.f32.mrb[0].mxu0
        %v4052 = vadd.f32 %v3902, %v4051
        %v4053 = vpop.f32.mrb[0].mxu0
        %4054 = vdwg.mxu0
        %4055 = vmatprep.subr.mxu0 0.0
        %4056 = vmatpush1.msra.mxu0 %v1390
        %4057 = vmatprep.subr.mxu0 0.0
        %4058 = vmatpush1.msra.mxu0 %v1391
        %4059 = vmatprep.subr.mxu0 0.0
        %4060 = vmatpush1.msra.mxu0 %v1392
        %4061 = vmatprep.subr.mxu0 0.0
        %4062 = vmatpush1.msra.mxu0 %v1393
        %4063 = vmatprep.subr.mxu0 0.0
        %4064 = vmatpush1.msra.mxu0 %v1394
        %4065 = vmatprep.subr.mxu0 0.0
        %4066 = vmatpush1.msra.mxu0 %v1395
        %4067 = vmatprep.subr.mxu0 0.0
        %4068 = vmatpush1.msra.mxu0 %v1396
        %4069 = vmatprep.subr.mxu0 0.0
        %4070 = vmatpush1.msra.mxu0 %v1397
        %4071 = vmatprep.subr.mxu0 0.0
        %4072 = vmatpush1.msra.mxu0 %v1398
        %4073 = vmatprep.subr.mxu0 0.0
        %4074 = vmatpush1.msra.mxu0 %v1399
        %4075 = vmatprep.subr.mxu0 0.0
        %4076 = vmatpush1.msra.mxu0 %v1400
        %4077 = vmatprep.subr.mxu0 0.0
        %4078 = vmatpush1.msra.mxu0 %v1401
        %4079 = vmatprep.subr.mxu0 0.0
        %4080 = vmatpush1.msra.mxu0 %v1402
        %4081 = vmatprep.subr.mxu0 0.0
        %4082 = vmatpush1.msra.mxu0 %v1403
        %4083 = vmatprep.subr.mxu0 0.0
        %4084 = vmatpush1.msra.mxu0 %v1404
        %4085 = vmatprep.subr.mxu0 0.0
        %4086 = vmatpush1.msra.mxu0 %v1405
        %4087 = vmatprep.subr.mxu0 0.0
        %4088 = vmatpush1.msra.mxu0 %v1406
        %4089 = vmatprep.subr.mxu0 0.0
        %4090 = vmatpush1.msra.mxu0 %v1407
        %4091 = vmatprep.subr.mxu0 0.0
        %4092 = vmatpush1.msra.mxu0 %v1408
        %4093 = vmatprep.subr.mxu0 0.0
        %4094 = vmatpush1.msra.mxu0 %v1409
        %4095 = vmatprep.subr.mxu0 0.0
        %4096 = vmatpush1.msra.mxu0 %v1410
        %4097 = vmatprep.subr.mxu0 0.0
        %4098 = vmatpush1.msra.mxu0 %v1411
        %4099 = vmatprep.subr.mxu0 0.0
        %4100 = vmatpush1.msra.mxu0 %v1412
        %4101 = vmatprep.subr.mxu0 0.0
        %4102 = vmatpush1.msra.mxu0 %v1413
        %4103 = vmatprep.subr.mxu0 0.0
        %4104 = vmatpush1.msra.mxu0 %v1414
        %4105 = vmatprep.subr.mxu0 0.0
        %4106 = vmatpush1.msra.mxu0 %v1415
        %4107 = vmatprep.subr.mxu0 0.0
        %4108 = vmatpush1.msra.mxu0 %v1416
        %4109 = vmatprep.subr.mxu0 0.0
        %4110 = vmatpush1.msra.mxu0 %v1417
        %4111 = vmatprep.subr.mxu0 0.0
        %4112 = vmatpush1.msra.mxu0 %v1418
        %4113 = vmatprep.subr.mxu0 0.0
        %4114 = vmatpush1.msra.mxu0 %v1419
        %4115 = vmatprep.subr.mxu0 0.0
        %4116 = vmatpush1.msra.mxu0 %v1420
        %4117 = vmatprep.subr.mxu0 0.0
        %4118 = vmatpush1.msra.mxu0 %v1421
        %4119 = vmatprep.mubr.f32.mxu0 %v235
        %4120 = vmatmul.mubr.f32.gmra.mrb[0].mxu0 %v234
        %v4121 = vpop.f32.mrb[0].mxu0
        %v4122 = vadd.f32 %v3972, %v4121
        %v4123 = vpop.f32.mrb[0].mxu0
        %4124 = vmatprep.mubr.f32.mxu0 %v273
        %4125 = vmatmul.mubr.f32.gmra.mrb[0].mxu0 %v272
        %v4126 = vpop.f32.mrb[0].mxu0
        %v4127 = vadd.f32 %v3977, %v4126
        %v4128 = vpop.f32.mrb[0].mxu0
        %4129 = vmatprep.mubr.f32.mxu0 %v311
        %4130 = vmatmul.mubr.f32.gmra.mrb[0].mxu0 %v310
        %v4131 = vpop.f32.mrb[0].mxu0
        %v4132 = vadd.f32 %v3982, %v4131
        %v4133 = vpop.f32.mrb[0].mxu0
        %4134 = vmatprep.mubr.f32.mxu0 %v349
        %4135 = vmatmul.mubr.f32.gmra.mrb[0].mxu0 %v348
        %v4136 = vpop.f32.mrb[0].mxu0
        %v4137 = vadd.f32 %v3987, %v4136
        %v4138 = vpop.f32.mrb[0].mxu0
        %4139 = vmatprep.mubr.f32.mxu0 %v387
        %4140 = vmatmul.mubr.f32.gmra.mrb[0].mxu0 %v386
        %v4141 = vpop.f32.mrb[0].mxu0
        %v4142 = vadd.f32 %v3992, %v4141
        %v4143 = vpop.f32.mrb[0].mxu0
        %4144 = vmatprep.mubr.f32.mxu0 %v425
        %4145 = vmatmul.mubr.f32.gmra.mrb[0].mxu0 %v424
        %v4146 = vpop.f32.mrb[0].mxu0
        %v4147 = vadd.f32 %v3997, %v4146
        %v4148 = vpop.f32.mrb[0].mxu0
        %4149 = vmatprep.mubr.f32.mxu0 %v463
        %4150 = vmatmul.mubr.f32.gmra.mrb[0].mxu0 %v462
        %v4151 = vpop.f32.mrb[0].mxu0
        %v4152 = vadd.f32 %v4002, %v4151
        %v4153 = vpop.f32.mrb[0].mxu0
        %4154 = vmatprep.mubr.f32.mxu0 %v501
        %4155 = vmatmul.mubr.f32.gmra.mrb[0].mxu0 %v500
        %v4156 = vpop.f32.mrb[0].mxu0
        %v4157 = vadd.f32 %v4007, %v4156
        %v4158 = vpop.f32.mrb[0].mxu0
        %4159 = vmatprep.mubr.f32.mxu0 %v539
        %4160 = vmatmul.mubr.f32.gmra.mrb[0].mxu0 %v538
        %v4161 = vpop.f32.mrb[0].mxu0
        %v4162 = vadd.f32 %v4012, %v4161
        %v4163 = vpop.f32.mrb[0].mxu0
        %4164 = vmatprep.mubr.f32.mxu0 %v577
        %4165 = vmatmul.mubr.f32.gmra.mrb[0].mxu0 %v576
        %v4166 = vpop.f32.mrb[0].mxu0
        %v4167 = vadd.f32 %v4017, %v4166
        %v4168 = vpop.f32.mrb[0].mxu0
        %4169 = vmatprep.mubr.f32.mxu0 %v615
        %4170 = vmatmul.mubr.f32.gmra.mrb[0].mxu0 %v614
        %v4171 = vpop.f32.mrb[0].mxu0
        %v4172 = vadd.f32 %v4022, %v4171
        %v4173 = vpop.f32.mrb[0].mxu0
        %4174 = vmatprep.mubr.f32.mxu0 %v653
        %4175 = vmatmul.mubr.f32.gmra.mrb[0].mxu0 %v652
        %v4176 = vpop.f32.mrb[0].mxu0
        %v4177 = vadd.f32 %v4027, %v4176
        %v4178 = vpop.f32.mrb[0].mxu0
        %4179 = vmatprep.mubr.f32.mxu0 %v691
        %4180 = vmatmul.mubr.f32.gmra.mrb[0].mxu0 %v690
        %v4181 = vpop.f32.mrb[0].mxu0
        %v4182 = vadd.f32 %v4032, %v4181
        %v4183 = vpop.f32.mrb[0].mxu0
        %4184 = vmatprep.mubr.f32.mxu0 %v729
        %4185 = vmatmul.mubr.f32.gmra.mrb[0].mxu0 %v728
        %v4186 = vpop.f32.mrb[0].mxu0
        %v4187 = vadd.f32 %v4037, %v4186
        %v4188 = vpop.f32.mrb[0].mxu0
        %4189 = vmatprep.mubr.f32.mxu0 %v767
        %4190 = vmatmul.mubr.f32.gmra.mrb[0].mxu0 %v766
        %v4191 = vpop.f32.mrb[0].mxu0
        %v4192 = vadd.f32 %v4042, %v4191
        %v4193 = vpop.f32.mrb[0].mxu0
        %4194 = vmatprep.mubr.f32.mxu0 %v805
        %4195 = vmatmul.mubr.f32.gmra.mrb[0].mxu0 %v804
        %v4196 = vpop.f32.mrb[0].mxu0
        %v4197 = vadd.f32 %v4047, %v4196
        %v4198 = vpop.f32.mrb[0].mxu0
        %4199 = vmatprep.mubr.f32.mxu0 %v843
        %4200 = vmatmul.mubr.f32.gmra.mrb[0].mxu0 %v842
        %v4201 = vpop.f32.mrb[0].mxu0
        %v4202 = vadd.f32 %v4052, %v4201
        %v4203 = vpop.f32.mrb[0].mxu0
        %4204 = vdwg.mxu0
        %4205 = vmatprep.subr.mxu0 0.0
        %4206 = vmatpush1.msra.mxu0 %v1422
        %4207 = vmatprep.subr.mxu0 0.0
        %4208 = vmatpush1.msra.mxu0 %v1423
        %4209 = vmatprep.subr.mxu0 0.0
        %4210 = vmatpush1.msra.mxu0 %v1424
        %4211 = vmatprep.subr.mxu0 0.0
        %4212 = vmatpush1.msra.mxu0 %v1425
        %4213 = vmatprep.subr.mxu0 0.0
        %4214 = vmatpush1.msra.mxu0 %v1426
        %4215 = vmatprep.subr.mxu0 0.0
        %4216 = vmatpush1.msra.mxu0 %v1427
        %4217 = vmatprep.subr.mxu0 0.0
        %4218 = vmatpush1.msra.mxu0 %v1428
        %4219 = vmatprep.subr.mxu0 0.0
        %4220 = vmatpush1.msra.mxu0 %v1429
        %4221 = vmatprep.subr.mxu0 0.0
        %4222 = vmatpush1.msra.mxu0 %v1430
        %4223 = vmatprep.subr.mxu0 0.0
        %4224 = vmatpush1.msra.mxu0 %v1431
        %4225 = vmatprep.subr.mxu0 0.0
        %4226 = vmatpush1.msra.mxu0 %v1432
        %4227 = vmatprep.subr.mxu0 0.0
        %4228 = vmatpush1.msra.mxu0 %v1433
        %4229 = vmatprep.subr.mxu0 0.0
        %4230 = vmatpush1.msra.mxu0 %v1434
        %4231 = vmatprep.subr.mxu0 0.0
        %4232 = vmatpush1.msra.mxu0 %v1435
        %4233 = vmatprep.subr.mxu0 0.0
        %4234 = vmatpush1.msra.mxu0 %v1436
        %4235 = vmatprep.subr.mxu0 0.0
        %4236 = vmatpush1.msra.mxu0 %v1437
        %4237 = vmatprep.subr.mxu0 0.0
        %4238 = vmatpush1.msra.mxu0 %v1438
        %4239 = vmatprep.subr.mxu0 0.0
        %4240 = vmatpush1.msra.mxu0 %v1439
        %4241 = vmatprep.subr.mxu0 0.0
        %4242 = vmatpush1.msra.mxu0 %v1440
        %4243 = vmatprep.subr.mxu0 0.0
        %4244 = vmatpush1.msra.mxu0 %v1441
        %4245 = vmatprep.subr.mxu0 0.0
        %4246 = vmatpush1.msra.mxu0 %v1442
        %4247 = vmatprep.subr.mxu0 0.0
        %4248 = vmatpush1.msra.mxu0 %v1443
        %4249 = vmatprep.subr.mxu0 0.0
        %4250 = vmatpush1.msra.mxu0 %v1444
        %4251 = vmatprep.subr.mxu0 0.0
        %4252 = vmatpush1.msra.mxu0 %v1445
        %4253 = vmatprep.subr.mxu0 0.0
        %4254 = vmatpush1.msra.mxu0 0.0
        %4255 = vmatprep.subr.mxu0 0.0
        %4256 = vmatpush1.msra.mxu0 0.0
        %4257 = vmatprep.subr.mxu0 0.0
        %4258 = vmatpush1.msra.mxu0 0.0
        %4259 = vmatprep.subr.mxu0 0.0
        %4260 = vmatpush1.msra.mxu0 0.0
        %4261 = vmatprep.subr.mxu0 0.0
        %4262 = vmatpush1.msra.mxu0 0.0
        %4263 = vmatprep.subr.mxu0 0.0
        %4264 = vmatpush1.msra.mxu0 0.0
        %4265 = vmatprep.subr.mxu0 0.0
        %4266 = vmatpush1.msra.mxu0 0.0
        %4267 = vmatprep.subr.mxu0 0.0
        %4268 = vmatpush1.msra.mxu0 0.0
        %4269 = vmatprep.mubr.f32.mxu0 %v1455
        %4270 = vmatmul.mubr.f32.gmra.mrb[0].mxu0 %v236
        %v4271 = vpop.f32.mrb[0].mxu0
        %v4272 = vadd.f32 %v4122, %v4271
        %v4273 = vpop.f32.mrb[0].mxu0
        %4274 = vmatprep.mubr.f32.mxu0 %v1458
        %4275 = vmatmul.mubr.f32.gmra.mrb[0].mxu0 %v274
        %v4276 = vpop.f32.mrb[0].mxu0
        %v4277 = vadd.f32 %v4127, %v4276
        %v4278 = vpop.f32.mrb[0].mxu0
        %4279 = vmatprep.mubr.f32.mxu0 %v1461
        %4280 = vmatmul.mubr.f32.gmra.mrb[0].mxu0 %v312
        %v4281 = vpop.f32.mrb[0].mxu0
        %v4282 = vadd.f32 %v4132, %v4281
        %v4283 = vpop.f32.mrb[0].mxu0
        %4284 = vmatprep.mubr.f32.mxu0 %v1464
        %4285 = vmatmul.mubr.f32.gmra.mrb[0].mxu0 %v350
        %v4286 = vpop.f32.mrb[0].mxu0
        %v4287 = vadd.f32 %v4137, %v4286
        %v4288 = vpop.f32.mrb[0].mxu0
        %4289 = vmatprep.mubr.f32.mxu0 %v1467
        %4290 = vmatmul.mubr.f32.gmra.mrb[0].mxu0 %v388
        %v4291 = vpop.f32.mrb[0].mxu0
        %v4292 = vadd.f32 %v4142, %v4291
        %v4293 = vpop.f32.mrb[0].mxu0
        %4294 = vmatprep.mubr.f32.mxu0 %v1470
        %4295 = vmatmul.mubr.f32.gmra.mrb[0].mxu0 %v426
        %v4296 = vpop.f32.mrb[0].mxu0
        %v4297 = vadd.f32 %v4147, %v4296
        %v4298 = vpop.f32.mrb[0].mxu0
        %4299 = vmatprep.mubr.f32.mxu0 %v1473
        %4300 = vmatmul.mubr.f32.gmra.mrb[0].mxu0 %v464
        %v4301 = vpop.f32.mrb[0].mxu0
        %v4302 = vadd.f32 %v4152, %v4301
        %v4303 = vpop.f32.mrb[0].mxu0
        %4304 = vmatprep.mubr.f32.mxu0 %v1476
        %4305 = vmatmul.mubr.f32.gmra.mrb[0].mxu0 %v502
        %v4306 = vpop.f32.mrb[0].mxu0
        %v4307 = vadd.f32 %v4157, %v4306
        %v4308 = vpop.f32.mrb[0].mxu0
        %4309 = vmatprep.mubr.f32.mxu0 %v1479
        %4310 = vmatmul.mubr.f32.gmra.mrb[0].mxu0 %v540
        %v4311 = vpop.f32.mrb[0].mxu0
        %v4312 = vadd.f32 %v4162, %v4311
        %v4313 = vpop.f32.mrb[0].mxu0
        %4314 = vmatprep.mubr.f32.mxu0 %v1482
        %4315 = vmatmul.mubr.f32.gmra.mrb[0].mxu0 %v578
        %v4316 = vpop.f32.mrb[0].mxu0
        %v4317 = vadd.f32 %v4167, %v4316
        %v4318 = vpop.f32.mrb[0].mxu0
        %4319 = vmatprep.mubr.f32.mxu0 %v1485
        %4320 = vmatmul.mubr.f32.gmra.mrb[0].mxu0 %v616
        %v4321 = vpop.f32.mrb[0].mxu0
        %v4322 = vadd.f32 %v4172, %v4321
        %v4323 = vpop.f32.mrb[0].mxu0
        %4324 = vmatprep.mubr.f32.mxu0 %v1488
        %4325 = vmatmul.mubr.f32.gmra.mrb[0].mxu0 %v654
        %v4326 = vpop.f32.mrb[0].mxu0
        %v4327 = vadd.f32 %v4177, %v4326
        %v4328 = vpop.f32.mrb[0].mxu0
        %4329 = vmatprep.mubr.f32.mxu0 %v1491
        %4330 = vmatmul.mubr.f32.gmra.mrb[0].mxu0 %v692
        %v4331 = vpop.f32.mrb[0].mxu0
        %v4332 = vadd.f32 %v4182, %v4331
        %v4333 = vpop.f32.mrb[0].mxu0
        %4334 = vmatprep.mubr.f32.mxu0 %v1494
        %4335 = vmatmul.mubr.f32.gmra.mrb[0].mxu0 %v730
        %v4336 = vpop.f32.mrb[0].mxu0
        %v4337 = vadd.f32 %v4187, %v4336
        %v4338 = vpop.f32.mrb[0].mxu0
        %4339 = vmatprep.mubr.f32.mxu0 %v1497
        %4340 = vmatmul.mubr.f32.gmra.mrb[0].mxu0 %v768
        %v4341 = vpop.f32.mrb[0].mxu0
        %v4342 = vadd.f32 %v4192, %v4341
        %v4343 = vpop.f32.mrb[0].mxu0
        %4344 = vmatprep.mubr.f32.mxu0 %v1500
        %4345 = vmatmul.mubr.f32.gmra.mrb[0].mxu0 %v806
        %v4346 = vpop.f32.mrb[0].mxu0
        %v4347 = vadd.f32 %v4197, %v4346
        %v4348 = vpop.f32.mrb[0].mxu0
        %4349 = vmatprep.mubr.f32.mxu0 %v1503
        %4350 = vmatmul.mubr.f32.gmra.mrb[0].mxu0 %v844
        %v4351 = vpop.f32.mrb[0].mxu0
        %v4352 = vadd.f32 %v4202, %v4351
        %v4353 = vpop.f32.mrb[0].mxu0
        %4354 = vdwg.mxu0
        %4355 = vst [vmem:[%s177] sm:$0xff] %v4272
        %4356 = vst [vmem:[%s177 + $0x8] sm:$0xff] %v4277
        %4357 = vst [vmem:[%s177 + $0x10] sm:$0xff] %v4282
        %4358 = vst [vmem:[%s177 + $0x18] sm:$0xff] %v4287
        %4359 = vst [vmem:[%s177 + $0x20] sm:$0xff] %v4292
        %4360 = vst [vmem:[%s177 + $0x28] sm:$0xff] %v4297
        %4361 = vst [vmem:[%s177 + $0x30] sm:$0xff] %v4302
        %4362 = vst [vmem:[%s177 + $0x38] sm:$0xff] %v4307
        %4363 = vst [vmem:[%s177 + $0x40] sm:$0xff] %v4312
        %4364 = vst [vmem:[%s177 + $0x48] sm:$0xff] %v4317
        %4365 = vst [vmem:[%s177 + $0x50] sm:$0xff] %v4322
        %4366 = vst [vmem:[%s177 + $0x58] sm:$0xff] %v4327
        %4367 = vst [vmem:[%s177 + $0x60] sm:$0xff] %v4332
        %4368 = vst [vmem:[%s177 + $0x68] sm:$0xff] %v4337
        %4369 = vst [vmem:[%s177 + $0x70] sm:$0xff] %v4342
        %4370 = vst [vmem:[%s177 + $0x78] sm:$0xff] %v4347
        %4371 = vst [vmem:[%s177 + $0x80] sm:$0xff] %v4352
        %s4372 = sand.u32 %s90, 1
        %s4373 = sand.u32 %s90, 1
        %s4374 = smul.addr %s4373, 136
        %s4375 = scalar_lea.vmem [#allocation2], %s4374
        // Predicated region
        $region33: #{_lambda_.1} parent=31 // pred_check
          %p4376 = pneg %p100
        $region34: #{_lambda_.1} parent=31 // pred_check_branch
          %4378 = sbr.rel (%p4376) target = $region36
        $region35: #{_lambda_.1} parent=31 // pred_region
          %s4379 = smul.u32 17, %s14
          %s4380 = ssub.s32 33, %s4379
          %p4381 = scmp.lt.s32.totalorder %s4380, 17
          %s4382 = scalar_select %p4381, %s4380, 17
          %s4383 = smul.u32 128, %s4382
          %p4384 = scmp.ne.s32.totalorder 0, %s4383
          %s4385 = smul.addr %s4379, 8
          %s4386 = scalar_lea.vmem %s3, %s4385
          // Predicated region
          $region37: #{_lambda_.1} parent=35 // pred_check
            %p4387 = pneg %p4384
          $region38: #{_lambda_.1} parent=35 // pred_check_branch
            %4389 = sbr.rel (%p4387) target = $region40
          $region39: #{_lambda_.1} parent=35 // pred_region
            // Predicated region
            $region41: #{_lambda_.1} parent=39 // pred_check
              _
            $region42: #{_lambda_.1} parent=39 // pred_check_branch
              %4391 = sbr.rel (0) target = $region44
            $region43: #{_lambda_.1} parent=39 // pred_region
              // Predicated region
              $region63: #{_lambda_.1} parent=43 // pred_check
                _
              $region64: #{_lambda_.1} parent=43 // pred_check_branch
                %4473 = sbr.rel (0) target = $region66
              $region65: #{_lambda_.1} parent=43 // pred_region
                %s4474 = sdiv.u32.pop %s4382, 17
                %s4475 = srem.u32.pop %s4382, 17
                // While loop
                $region67: #{_lambda_.1} parent=65 // loop_pre_header
                  _
                $region68: #{_lambda_.1} parent=65 // loop_header
                  %s4477 = sphi 0, %s4479
                  %p4478 = scmp.ge.s32.totalorder %s4477, %s4474
                  %s4482 = sphi 0, %s4521
                  %s4483 = sphi %s4375, %s4524
                  %s4484 = sphi %s4386, %s4525
                $region69: #{_lambda_.1} parent=65 // loop_header_branch
                  %4481 = sbr.rel (%p4478) target = $region73
                $region70: #{_lambda_.1} parent=65 // loop_body
                  %v4485 = vld [vmem:[%s4483] sm:$0xff]
                  %4486 = vst [vmem:[%s4484] sm:$0xff] %v4485
                  %v4487 = vld [vmem:[%s4483 + $0x8] sm:$0xff]
                  %4488 = vst [vmem:[%s4484 + $0x8] sm:$0xff] %v4487
                  %v4489 = vld [vmem:[%s4483 + $0x10] sm:$0xff]
                  %4490 = vst [vmem:[%s4484 + $0x10] sm:$0xff] %v4489
                  %v4491 = vld [vmem:[%s4483 + $0x18] sm:$0xff]
                  %4492 = vst [vmem:[%s4484 + $0x18] sm:$0xff] %v4491
                  %v4493 = vld [vmem:[%s4483 + $0x20] sm:$0xff]
                  %4494 = vst [vmem:[%s4484 + $0x20] sm:$0xff] %v4493
                  %v4495 = vld [vmem:[%s4483 + $0x28] sm:$0xff]
                  %4496 = vst [vmem:[%s4484 + $0x28] sm:$0xff] %v4495
                  %v4497 = vld [vmem:[%s4483 + $0x30] sm:$0xff]
                  %4498 = vst [vmem:[%s4484 + $0x30] sm:$0xff] %v4497
                  %v4499 = vld [vmem:[%s4483 + $0x38] sm:$0xff]
                  %4500 = vst [vmem:[%s4484 + $0x38] sm:$0xff] %v4499
                  %v4501 = vld [vmem:[%s4483 + $0x40] sm:$0xff]
                  %4502 = vst [vmem:[%s4484 + $0x40] sm:$0xff] %v4501
                  %v4503 = vld [vmem:[%s4483 + $0x48] sm:$0xff]
                  %4504 = vst [vmem:[%s4484 + $0x48] sm:$0xff] %v4503
                  %v4505 = vld [vmem:[%s4483 + $0x50] sm:$0xff]
                  %4506 = vst [vmem:[%s4484 + $0x50] sm:$0xff] %v4505
                  %v4507 = vld [vmem:[%s4483 + $0x58] sm:$0xff]
                  %4508 = vst [vmem:[%s4484 + $0x58] sm:$0xff] %v4507
                  %v4509 = vld [vmem:[%s4483 + $0x60] sm:$0xff]
                  %4510 = vst [vmem:[%s4484 + $0x60] sm:$0xff] %v4509
                  %v4511 = vld [vmem:[%s4483 + $0x68] sm:$0xff]
                  %4512 = vst [vmem:[%s4484 + $0x68] sm:$0xff] %v4511
                  %v4513 = vld [vmem:[%s4483 + $0x70] sm:$0xff]
                  %4514 = vst [vmem:[%s4484 + $0x70] sm:$0xff] %v4513
                  %v4515 = vld [vmem:[%s4483 + $0x78] sm:$0xff]
                  %4516 = vst [vmem:[%s4484 + $0x78] sm:$0xff] %v4515
                  %v4517 = vld [vmem:[%s4483 + $0x80] sm:$0xff]
                  %4518 = vst [vmem:[%s4484 + $0x80] sm:$0xff] %v4517
                  %s4519 = sadd.s32 1, %s4482
                  %p4520 = scmp.ge.s32.totalorder %s4519, %s4474
                  %s4521 = scalar_select %p4520, 0, %s4519
                  %s4522 = smul.u32 %s4521, 136
                  %s4523 = smul.u32 %s4521, 136
                  %s4524 = scalar_lea.vmem %s4375, %s4522 [#allocation2]
                  %s4525 = scalar_lea.vmem %s4386, %s4523
                $region71: #{_lambda_.1} parent=65 // loop_footer
                  %s4479 = sadd.s32 %s4477, 1
                $region72: #{_lambda_.1} parent=65 // loop_footer_branch
                  %4476 = sbr.rel target = $region68
                $region73: #{_lambda_.1} parent=65 // loop_exit
                  _
                %s4526 = sdiv.u32.pop %s4382, 17
                %s4527 = srem.u32.pop %s4382, 17
                %s4528 = smul.u32 %s4526, 17
                %s4529 = smul.u32 8, %s4528
                %s4530 = scalar_lea.vmem %s4375, %s4529 [#allocation2]
                %s4531 = smul.u32 8, %s4528
                %s4532 = scalar_lea.vmem %s4386, %s4531
                // While loop
                $region74: #{_lambda_.1} parent=65 // loop_pre_header
                  _
                $region75: #{_lambda_.1} parent=65 // loop_header
                  %s4534 = sphi 0, %s4536
                  %p4535 = scmp.ge.s32.totalorder %s4534, %s4527
                  %s4539 = sphi 0, %s4546
                  %s4540 = sphi %s4530, %s4549
                  %s4541 = sphi %s4532, %s4550
                $region76: #{_lambda_.1} parent=65 // loop_header_branch
                  %4538 = sbr.rel (%p4535) target = $region80
                $region77: #{_lambda_.1} parent=65 // loop_body
                  %v4542 = vld [vmem:[%s4540] sm:$0xff]
                  %4543 = vst [vmem:[%s4541] sm:$0xff] %v4542
                  %s4544 = sadd.s32 1, %s4539
                  %p4545 = scmp.ge.s32.totalorder %s4544, %s4527
                  %s4546 = scalar_select %p4545, 0, %s4544
                  %s4547 = smul.u32 %s4546, 8
                  %s4548 = smul.u32 %s4546, 8
                  %s4549 = scalar_lea.vmem %s4530, %s4547 [#allocation2]
                  %s4550 = scalar_lea.vmem %s4532, %s4548
                $region78: #{_lambda_.1} parent=65 // loop_footer
                  %s4536 = sadd.s32 %s4534, 1
                $region79: #{_lambda_.1} parent=65 // loop_footer_branch
                  %4533 = sbr.rel target = $region75
                $region80: #{_lambda_.1} parent=65 // loop_exit
                  _
              $region66: #{_lambda_.1} parent=43 // pred_fallthru
                _
              // Predicated region
              $region81: #{_lambda_.1} parent=43 // pred_check
                _
              $region82: #{_lambda_.1} parent=43 // pred_check_branch
                %4552 = sbr.rel target = $region84
              $region83: #{_lambda_.1} parent=43 // pred_region
                _
              $region84: #{_lambda_.1} parent=43 // pred_fallthru
                _
            $region44: #{_lambda_.1} parent=39 // pred_fallthru
              _
            // Predicated region
            $region45: #{_lambda_.1} parent=39 // pred_check
              _
            $region46: #{_lambda_.1} parent=39 // pred_check_branch
              %4393 = sbr.rel target = $region48
            $region47: #{_lambda_.1} parent=39 // pred_region
              %s4395 = sdiv.u32.pop %s4382, 17
              %s4396 = srem.u32.pop %s4382, 17
              // While loop
              $region49: #{_lambda_.1} parent=47 // loop_pre_header
                _
              $region50: #{_lambda_.1} parent=47 // loop_header
                %s4398 = sphi 0, %s4400
                %p4399 = scmp.ge.s32.totalorder %s4398, %s4395
                %s4403 = sphi 0, %s4442
                %s4404 = sphi %s4375, %s4445
                %s4405 = sphi %s4386, %s4446
              $region51: #{_lambda_.1} parent=47 // loop_header_branch
                %4402 = sbr.rel (%p4399) target = $region55
              $region52: #{_lambda_.1} parent=47 // loop_body
                %v4406 = vld [vmem:[%s4404] sm:$0xff]
                %4407 = vst [vmem:[%s4405] sm:$0xff] %v4406
                %v4408 = vld [vmem:[%s4404 + $0x8] sm:$0xff]
                %4409 = vst [vmem:[%s4405 + $0x8] sm:$0xff] %v4408
                %v4410 = vld [vmem:[%s4404 + $0x10] sm:$0xff]
                %4411 = vst [vmem:[%s4405 + $0x10] sm:$0xff] %v4410
                %v4412 = vld [vmem:[%s4404 + $0x18] sm:$0xff]
                %4413 = vst [vmem:[%s4405 + $0x18] sm:$0xff] %v4412
                %v4414 = vld [vmem:[%s4404 + $0x20] sm:$0xff]
                %4415 = vst [vmem:[%s4405 + $0x20] sm:$0xff] %v4414
                %v4416 = vld [vmem:[%s4404 + $0x28] sm:$0xff]
                %4417 = vst [vmem:[%s4405 + $0x28] sm:$0xff] %v4416
                %v4418 = vld [vmem:[%s4404 + $0x30] sm:$0xff]
                %4419 = vst [vmem:[%s4405 + $0x30] sm:$0xff] %v4418
                %v4420 = vld [vmem:[%s4404 + $0x38] sm:$0xff]
                %4421 = vst [vmem:[%s4405 + $0x38] sm:$0xff] %v4420
                %v4422 = vld [vmem:[%s4404 + $0x40] sm:$0xff]
                %4423 = vst [vmem:[%s4405 + $0x40] sm:$0xff] %v4422
                %v4424 = vld [vmem:[%s4404 + $0x48] sm:$0xff]
                %4425 = vst [vmem:[%s4405 + $0x48] sm:$0xff] %v4424
                %v4426 = vld [vmem:[%s4404 + $0x50] sm:$0xff]
                %4427 = vst [vmem:[%s4405 + $0x50] sm:$0xff] %v4426
                %v4428 = vld [vmem:[%s4404 + $0x58] sm:$0xff]
                %4429 = vst [vmem:[%s4405 + $0x58] sm:$0xff] %v4428
                %v4430 = vld [vmem:[%s4404 + $0x60] sm:$0xff]
                %4431 = vst [vmem:[%s4405 + $0x60] sm:$0xff] %v4430
                %v4432 = vld [vmem:[%s4404 + $0x68] sm:$0xff]
                %4433 = vst [vmem:[%s4405 + $0x68] sm:$0xff] %v4432
                %v4434 = vld [vmem:[%s4404 + $0x70] sm:$0xff]
                %4435 = vst [vmem:[%s4405 + $0x70] sm:$0xff] %v4434
                %v4436 = vld [vmem:[%s4404 + $0x78] sm:$0xff]
                %4437 = vst [vmem:[%s4405 + $0x78] sm:$0xff] %v4436
                %v4438 = vld [vmem:[%s4404 + $0x80] sm:$0xff]
                %4439 = vst [vmem:[%s4405 + $0x80] sm:$0xff] %v4438
                %s4440 = sadd.s32 1, %s4403
                %p4441 = scmp.ge.s32.totalorder %s4440, %s4395
                %s4442 = scalar_select %p4441, 0, %s4440
                %s4443 = smul.u32 %s4442, 136
                %s4444 = smul.u32 %s4442, 136
                %s4445 = scalar_lea.vmem %s4375, %s4443 [#allocation2]
                %s4446 = scalar_lea.vmem %s4386, %s4444
              $region53: #{_lambda_.1} parent=47 // loop_footer
                %s4400 = sadd.s32 %s4398, 1
              $region54: #{_lambda_.1} parent=47 // loop_footer_branch
                %4397 = sbr.rel target = $region50
              $region55: #{_lambda_.1} parent=47 // loop_exit
                _
              %s4447 = sdiv.u32.pop %s4382, 17
              %s4448 = srem.u32.pop %s4382, 17
              %s4449 = smul.u32 %s4447, 17
              %s4450 = smul.u32 8, %s4449
              %s4451 = scalar_lea.vmem %s4375, %s4450 [#allocation2]
              %s4452 = smul.u32 8, %s4449
              %s4453 = scalar_lea.vmem %s4386, %s4452
              // While loop
              $region56: #{_lambda_.1} parent=47 // loop_pre_header
                _
              $region57: #{_lambda_.1} parent=47 // loop_header
                %s4455 = sphi 0, %s4457
                %p4456 = scmp.ge.s32.totalorder %s4455, %s4448
                %s4460 = sphi 0, %s4467
                %s4461 = sphi %s4451, %s4470
                %s4462 = sphi %s4453, %s4471
              $region58: #{_lambda_.1} parent=47 // loop_header_branch
                %4459 = sbr.rel (%p4456) target = $region62
              $region59: #{_lambda_.1} parent=47 // loop_body
                %v4463 = vld [vmem:[%s4461] sm:$0xff]
                %4464 = vst [vmem:[%s4462] sm:$0xff] %v4463
                %s4465 = sadd.s32 1, %s4460
                %p4466 = scmp.ge.s32.totalorder %s4465, %s4448
                %s4467 = scalar_select %p4466, 0, %s4465
                %s4468 = smul.u32 %s4467, 8
                %s4469 = smul.u32 %s4467, 8
                %s4470 = scalar_lea.vmem %s4451, %s4468 [#allocation2]
                %s4471 = scalar_lea.vmem %s4453, %s4469
              $region60: #{_lambda_.1} parent=47 // loop_footer
                %s4457 = sadd.s32 %s4455, 1
              $region61: #{_lambda_.1} parent=47 // loop_footer_branch
                %4454 = sbr.rel target = $region57
              $region62: #{_lambda_.1} parent=47 // loop_exit
                _
            $region48: #{_lambda_.1} parent=39 // pred_fallthru
              _
          $region40: #{_lambda_.1} parent=35 // pred_fallthru
            _
          %4553 = vnop
        $region36: #{_lambda_.1} parent=31 // pred_fallthru
          _
      $region32: #{_lambda_.1} parent=5 // pred_fallthru
        _
      %p4554 = scmp.le.s32.totalorder 2, %s9
      // Predicated region
      $region85: #{_lambda_.1} parent=5 // pred_check
        %p4555 = pneg %p4554
      $region86: #{_lambda_.1} parent=5 // pred_check_branch
        %4557 = sbr.rel (%p4555) target = $region88
      $region87: #{_lambda_.1} parent=5 // pred_region
        %s4558 = ssub.s32 %s9, 2
        // Predicated region
        $region89: #{_lambda_.1} parent=87 // pred_check
          %p4559 = pneg %p106
        $region90: #{_lambda_.1} parent=87 // pred_check_branch
          %4561 = sbr.rel (%p4559) target = $region92
        $region91: #{_lambda_.1} parent=87 // pred_region
          %s4562 = sand.u32 %s91, 1
          %s4563 = sand.u32 %s91, 1
          %s4564 = smul.addr %s4563, 136
          %s4565 = scalar_lea.vmem [#allocation2], %s4564
        $region92: #{_lambda_.1} parent=87 // pred_fallthru
          _
      $region88: #{_lambda_.1} parent=5 // pred_fallthru
        _
    $region6: #{_lambda_.1} parent=1 // loop_footer
      %s13 = sadd.s32 1, %s9
    $region7: #{_lambda_.1} parent=1 // loop_footer_branch
      %8 = sbr.rel target = $region3
    $region8: #{_lambda_.1} parent=1 // loop_exit
      _

</llo_original>
